<compile_context>
chip_gen: v7x
topology: tpu7x:2x2x1
jax: 0.10.0
libtpu: 0.0.40
codegen_flags: <defaults>
</compile_context>

<pallas_src>
import math

import jax
import jax.numpy as jnp
from jax.experimental import pallas as pl
from jax.experimental.pallas import tpu as pltpu

# ---- config mirroring NeRFRenderer.__init__ defaults ------------------------
N_COARSE = 128         # torch default n_coarse (lane-dense: K == 128 lanes)
N_FINE = 0             # default -> fine/importance pass disabled
NOISE_STD = 0.0
WHITE_BKGD = False
LINDISP = False
HIDDEN = 32            # synthetic NeRF field MLP hidden width
CHUNK = 32             # inner row chunk (keeps all accumulators vreg-resident)
LOG_EPS = math.log(1e-10)


# ------------------- one-time probe of pltpu.roll convention -----------------
_ROLL_DIR = None


def _probe_roll_direction():
    """+1: pltpu.roll matches jnp.roll (out[i] = in[i-shift]);
       -1: opposite convention; 0: unavailable -> use concat fallback."""
    def kern(x_ref, o_ref):
        o_ref[...] = pltpu.roll(x_ref[...], shift=1, axis=1)

    try:
        x = jnp.broadcast_to(
            jnp.arange(128, dtype=jnp.float32)[None, :], (8, 128))
        y = jax.device_get(pl.pallas_call(
            kern, out_shape=jax.ShapeDtypeStruct((8, 128), jnp.float32))(x))
        if float(y[0, 1]) == 0.0 and float(y[0, 0]) == 127.0:
            return 1
        if float(y[0, 0]) == 1.0:
            return -1
    except Exception:
        pass
    return 0


def _roll_direction():
    global _ROLL_DIR
    if _ROLL_DIR is None:
        _ROLL_DIR = _probe_roll_direction()
    return _ROLL_DIR


# ==================== fused MLP + composite Pallas kernel ====================
def _make_nerf_kernel(write_weights, roll_dir):
    def kernel(rays_ref, z_ref, w1_ref, b1_ref, w2_ref, b2_ref, *out_refs):
        # rays_ref (TR,8) VMEM; z_ref (TR,K) VMEM
        # w1_ref (3,H), b1_ref (1,H) VMEM (resident); w2_ref (4H,), b2_ref (4,) SMEM
        if write_weights:
            w_out_ref, rgbd_ref = out_refs
        else:
            (rgbd_ref,) = out_refs
            w_out_ref = None
        tile_r, k = z_ref.shape
        hid = w1_ref.shape[1]
        n_chunks = tile_r // CHUNK

        # hoisted once per grid step
        w1v = w1_ref[...]                                   # (3, H)
        b1v = b1_ref[...]                                   # (1, H)
        lane = jax.lax.broadcasted_iota(jnp.int32, (CHUNK, k), 1)

        def chunk_body(ci, carry):
            row0 = pl.multiple_of(ci * CHUNK, CHUNK)
            rays = rays_ref[pl.ds(row0, CHUNK), :]          # (CHUNK, 8)
            z = z_ref[pl.ds(row0, CHUNK), :]                # (CHUNK, K)

            # ---- NeRF field MLP, per-sample points never materialized ------
            # point(r,k) = o_r + z[r,k] * d_r is affine in z, so
            #   preact_j(r,k) = a_mat[r,j] + z[r,k] * b_mat[r,j]
            a_mat = (rays[:, 0:1] * w1v[0:1, :] + rays[:, 1:2] * w1v[1:2, :] +
                     rays[:, 2:3] * w1v[2:3, :] + b1v)      # (CHUNK, H)
            b_mat = (rays[:, 3:4] * w1v[0:1, :] + rays[:, 4:5] * w1v[1:2, :] +
                     rays[:, 5:6] * w1v[2:3, :])            # (CHUNK, H)

            acc_r = jnp.zeros((CHUNK, k), jnp.float32)
            acc_g = jnp.zeros((CHUNK, k), jnp.float32)
            acc_b = jnp.zeros((CHUNK, k), jnp.float32)
            acc_s = jnp.zeros((CHUNK, k), jnp.float32)
            for j in range(hid):               # statically unrolled (H = 32)
                h = jnp.maximum(a_mat[:, j:j + 1] + z * b_mat[:, j:j + 1], 0.0)
                # layer-2 weights come from SMEM: free scalar-operand splats
                acc_r = acc_r + h * w2_ref[0 * hid + j]
                acc_g = acc_g + h * w2_ref[1 * hid + j]
                acc_b = acc_b + h * w2_ref[2 * hid + j]
                acc_s = acc_s + h * w2_ref[3 * hid + j]
            sigma = jnp.maximum(acc_s + b2_ref[3], 0.0)     # relu(sigma + bias)

            # ---- volume-rendering composite ((CHUNK,K), K=128 lane-dense) ---
            far = rays[:, 7:8]
            deltas = jnp.concatenate(
                [z[:, 1:] - z[:, :-1], far - z[:, -1:]], axis=-1)
            neg = -deltas * sigma                 # == log(1 - alpha), exactly
            alphas = 1.0 - jnp.exp(neg)
            log_surv = jnp.maximum(neg, LOG_EPS)  # reference's +1e-10 floor

            # exclusive cumprod = exp(exclusive prefix-sum of log_surv)
            # Kogge-Stone, log2(K)=7 rounds; shift via roll + iota-mask select.
            csum = log_surv
            s = 1
            while s < k:
                if roll_dir != 0:
                    shift = s if roll_dir == 1 else k - s
                    shifted = jnp.where(
                        lane >= s, pltpu.roll(csum, shift=shift, axis=1), 0.0)
                else:   # fallback: proven concat-based shift
                    shifted = jnp.concatenate(
                        [jnp.zeros((CHUNK, s), jnp.float32), csum[:, :k - s]],
                        axis=-1)
                csum = csum + shifted
                s *= 2
            weights = alphas * jnp.exp(csum - log_surv)
            if write_weights:
                w_out_ref[pl.ds(row0, CHUNK), :] = weights

            wsum = jnp.sum(weights, axis=-1, keepdims=True)
            r_sum = (jnp.sum(weights * acc_r, axis=-1, keepdims=True)
                     + b2_ref[0] * wsum)                    # rgb bias folded in
            g_sum = (jnp.sum(weights * acc_g, axis=-1, keepdims=True)
                     + b2_ref[1] * wsum)
            b_sum = (jnp.sum(weights * acc_b, axis=-1, keepdims=True)
                     + b2_ref[2] * wsum)
            if WHITE_BKGD:
                r_sum = r_sum + 1.0 - wsum
                g_sum = g_sum + 1.0 - wsum
                b_sum = b_sum + 1.0 - wsum
            d_sum = jnp.sum(weights * z, axis=-1, keepdims=True)
            rgbd_ref[pl.ds(row0, CHUNK), :] = jnp.concatenate(
                [r_sum, g_sum, b_sum, d_sum], axis=-1)
            return carry

        jax.lax.fori_loop(0, n_chunks, chunk_body, 0)

    return kernel


def fused_render(rays_f, z, params, *, tile_r=512, want_weights=True):
    """rays_f [R,8], z [R,K] -> (weights [R,K] | None, rgb [R,3], depth [R])."""
    rcount = rays_f.shape[0]
    k = z.shape[1]

    # tile_r: multiple of CHUNK; shrink so the "parallel" grid has >= 2 steps
    # when there are enough rays (v7x has 2 TensorCores per chip).
    tile_r = max(CHUNK, (tile_r // CHUNK) * CHUNK)
    if rcount < 2 * tile_r:
        tile_r = max(CHUNK, -(-((rcount + 1) // 2) // CHUNK) * CHUNK)
    n_tiles = -(-rcount // tile_r)
    rpad = n_tiles * tile_r
    if rpad != rcount:
        # zero-padding invariant: z == 0 and rays == 0 for pad rows =>
        # deltas == 0 => alphas == 0 => weights == 0 (pad rows sliced off below)
        pad = rpad - rcount
        rays_f = jnp.concatenate(
            [rays_f, jnp.zeros((pad, 8), jnp.float32)], axis=0)
        z = jnp.concatenate([z, jnp.zeros((pad, k), jnp.float32)], axis=0)

    hid = HIDDEN
    w1 = params["w1"].astype(jnp.float32)                       # (3, H) VMEM
    b1 = params["b1"].reshape(1, hid).astype(jnp.float32)       # (1, H) VMEM
    w2f = params["w2"].T.reshape(-1).astype(jnp.float32)        # (4*H,) SMEM
    b2 = params["b2"].reshape(4).astype(jnp.float32)            # (4,)   SMEM

    out_shape = []
    out_specs = []
    if want_weights:
        out_shape.append(jax.ShapeDtypeStruct((rpad, k), jnp.float32))
        out_specs.append(pl.BlockSpec((tile_r, k), lambda i: (i, 0)))
    out_shape.append(jax.ShapeDtypeStruct((rpad, 4), jnp.float32))
    out_specs.append(pl.BlockSpec((tile_r, 4), lambda i: (i, 0)))

    outs = pl.pallas_call(
        _make_nerf_kernel(want_weights, _roll_direction()),
        out_shape=tuple(out_shape),
        grid_spec=pltpu.PrefetchScalarGridSpec(
            num_scalar_prefetch=0,
            grid=(n_tiles,),
            in_specs=[
                pl.BlockSpec((tile_r, 8), lambda i: (i, 0)),        # rays
                pl.BlockSpec((tile_r, k), lambda i: (i, 0)),        # z samples
                pl.BlockSpec((3, hid), lambda i: (0, 0)),           # w1 resident
                pl.BlockSpec((1, hid), lambda i: (0, 0)),           # b1 resident
                pl.BlockSpec(memory_space=pltpu.MemorySpace.SMEM),  # w2 flat
                pl.BlockSpec(memory_space=pltpu.MemorySpace.SMEM),  # b2
            ],
            out_specs=tuple(out_specs),
        ),
        compiler_params=pltpu.CompilerParams(
            dimension_semantics=("parallel",)),
    )(rays_f, z, w1, b1, w2f, b2)

    if want_weights:
        weights, rgbd = outs
        weights = weights[:rcount]
    else:
        rgbd = outs[0] if isinstance(outs, (tuple, list)) else outs
        weights = None
    rgb = rgbd[:rcount, 0:3]
    depth = rgbd[:rcount, 3]
    return weights, rgb, depth


# ============================== glue (JAX) ===================================
def sample_coarse(rays_f, key):
    """Stratified sampling, matching NeRFRenderer.sample_coarse."""
    near, far = rays_f[:, 6:7], rays_f[:, 7:8]
    step = 1.0 / N_COARSE
    z_steps = jnp.linspace(0.0, 1.0 - step, N_COARSE, dtype=jnp.float32)[None, :]
    z_steps = z_steps + jax.random.uniform(
        key, (rays_f.shape[0], N_COARSE), dtype=jnp.float32) * step
    if not LINDISP:
        return near * (1.0 - z_steps) + far * z_steps
    return 1.0 / (1.0 / near * (1.0 - z_steps) + 1.0 / far * z_steps)


def nerf_renderer_forward(params, rays, key, want_weights=True):
    """rays [SB,B,8] -> dict(coarse=dict(rgb[SB,B,3], depth[SB,B], weights[SB,B,K]))."""
    sb = rays.shape[0]
    rays_f = rays.reshape(-1, 8).astype(jnp.float32)
    z = sample_coarse(rays_f, key)
    weights, rgb, depth = fused_render(rays_f, z, params,
                                       want_weights=want_weights)
    out = {"coarse": {"rgb": rgb.reshape(sb, -1, 3),
                      "depth": depth.reshape(sb, -1)}}
    if want_weights:
        out["coarse"]["weights"] = weights.reshape(sb, -1, N_COARSE)
    return out


def init_params(key):
    k1, k2, k3, k4 = jax.random.split(key, 4)
    return {
        "w1": jax.random.normal(k1, (3, HIDDEN), jnp.float32) * 0.5,
        "b1": jax.random.normal(k2, (HIDDEN,), jnp.float32) * 0.1,
        "w2": jax.random.normal(k3, (HIDDEN, 4), jnp.float32) * 0.3,
        "b2": jax.random.normal(k4, (4,), jnp.float32) * 0.1,
    }


# =========================== pure-JAX reference ==============================
def reference_forward(params, rays, key):
    sb = rays.shape[0]
    rays_f = rays.reshape(-1, 8).astype(jnp.float32)
    near, far = rays_f[:, 6:7], rays_f[:, 7:8]
    z = sample_coarse(rays_f, key)
    pts = rays_f[:, None, 0:3] + z[:, :, None] * rays_f[:, None, 3:6]
    pts = pts.reshape(-1, 3)
    hp = jnp.maximum(
        jnp.dot(pts, params["w1"], precision=jax.lax.Precision.HIGHEST)
        + params["b1"][None, :], 0.0)
    raw = (jnp.dot(hp, params["w2"], precision=jax.lax.Precision.HIGHEST)
           + params["b2"][None, :]).reshape(-1, N_COARSE, 4)
    rgbs, sig = raw[..., :3], raw[..., 3]
    deltas = jnp.concatenate([z[:, 1:] - z[:, :-1], far - z[:, -1:]], axis=-1)
    alphas = 1.0 - jnp.exp(-deltas * jnp.maximum(sig, 0.0))
    ash = jnp.concatenate(
        [jnp.ones_like(alphas[:, :1]), 1.0 - alphas + 1e-10], axis=-1)
    t = jnp.cumprod(ash, axis=-1)
    weights = alphas * t[:, :-1]
    rgb = jnp.sum(weights[..., None] * rgbs, axis=-2)
    if WHITE_BKGD:
        rgb = rgb + 1.0 - jnp.sum(weights, axis=-1, keepdims=True)
    depth = jnp.sum(weights * z, axis=-1)
    return (weights.reshape(sb, -1, N_COARSE),
            rgb.reshape(sb, -1, 3),
            depth.reshape(sb, -1))


# ================================== main =====================================
if __name__ == "__main__":
    key = jax.random.PRNGKey(0)
    k_o, k_d, k_n, k_p, k_s = jax.random.split(key, 5)

    SB, B = 2, 512                                   # rays: [SB, B, 8]
    origins = jax.random.normal(k_o, (SB, B, 3), dtype=jnp.float32)
    dirs = jax.random.normal(k_d, (SB, B, 3), dtype=jnp.float32)
    dirs = dirs / jnp.linalg.norm(dirs, axis=-1, keepdims=True)
    near = 1.0 + 0.1 * jax.random.uniform(k_n, (SB, B, 1), dtype=jnp.float32)
    far = near + 2.0
    rays = jnp.concatenate([origins, dirs, near, far], axis=-1)

    params = init_params(k_p)

    fwd = jax.jit(lambda p, r, k: nerf_renderer_forward(p, r, k, want_weights=True))
    out = fwd(params, rays, k_s)
    jax.block_until_ready(out)

    w_ref, rgb_ref, d_ref = reference_forward(params, rays, k_s)
    assert jnp.allclose(out["coarse"]["rgb"], rgb_ref, atol=5e-4, rtol=5e-4)
    assert jnp.allclose(out["coarse"]["depth"], d_ref, atol=5e-4, rtol=5e-4)
    assert jnp.allclose(out["coarse"]["weights"], w_ref, atol=5e-4, rtol=5e-4)
    print("KERNEL_OK")
</pallas_src>

<mosaic_0001>
module attributes {stable_mosaic.version = 11 : i64} {
  func.func @kernel(%arg0: i32, %arg1: memref<512x8xf32, #tpu.memory_space<vmem>>, %arg2: memref<512x128xf32, #tpu.memory_space<vmem>>, %arg3: memref<3x32xf32, #tpu.memory_space<vmem>>, %arg4: memref<1x32xf32, #tpu.memory_space<vmem>>, %arg5: memref<128xf32, #tpu.memory_space<smem>>, %arg6: memref<4xf32, #tpu.memory_space<smem>>, %arg7: memref<512x128xf32, #tpu.memory_space<vmem>>, %arg8: memref<512x4xf32, #tpu.memory_space<vmem>>) attributes {dimension_semantics = [#tpu.dimension_semantics<parallel>], iteration_bounds = array<i64: 2>, scalar_prefetch = 0 : i64, scratch_operands = 0 : i64, tpu.core_type = #tpu.core_type<tc>, window_params = [{transform_indices = @transform_0, window_bounds = array<i64: 512, 8>}, {transform_indices = @transform_1, window_bounds = array<i64: 512, 128>}, {pipeline_mode = #tpu.pipeline_mode<synchronous>, transform_indices = @transform_2, window_bounds = array<i64: 3, 32>}, {pipeline_mode = #tpu.pipeline_mode<synchronous>, transform_indices = @transform_3, window_bounds = array<i64: 1, 32>}, {transform_indices = @transform_4, window_bounds = array<i64: 128>}, {transform_indices = @transform_5, window_bounds = array<i64: 4>}, {transform_indices = @transform_6, window_bounds = array<i64: 512, 128>}, {transform_indices = @transform_7, window_bounds = array<i64: 512, 4>}]} {
    %c0 = arith.constant 0 : index
    %c0_0 = arith.constant 0 : index
    %0 = vector.load %arg3[%c0, %c0_0] : memref<3x32xf32, #tpu.memory_space<vmem>>, vector<3x32xf32>
    %c0_1 = arith.constant 0 : index
    %c0_2 = arith.constant 0 : index
    %1 = vector.load %arg4[%c0_1, %c0_2] : memref<1x32xf32, #tpu.memory_space<vmem>>, vector<1x32xf32>
    %c0_i32 = arith.constant 0 : i32
    %c16_i32 = arith.constant 16 : i32
    %2 = arith.addi %c0_i32, %c16_i32 : i32
    %c1_i32 = arith.constant 1 : i32
    scf.for %arg9 = %c0_i32 to %2 step %c1_i32  : i32 {
      %c32_i32 = arith.constant 32 : i32
      %3 = arith.muli %arg9, %c32_i32 : i32
      %4 = tpu.assume_multiple %3, 32 : i32
      %5 = arith.index_cast %4 : i32 to index
      %c0_4 = arith.constant 0 : index
      %6 = vector.load %arg1[%5, %c0_4] : memref<512x8xf32, #tpu.memory_space<vmem>>, vector<32x8xf32>
      %7 = arith.index_cast %4 : i32 to index
      %c0_5 = arith.constant 0 : index
      %8 = vector.load %arg2[%7, %c0_5] : memref<512x128xf32, #tpu.memory_space<vmem>>, vector<32x128xf32>
      %9 = vector.extract_strided_slice %6 {offsets = [0, 0], sizes = [32, 1], strides = [1, 1]} : vector<32x8xf32> to vector<32x1xf32>
      %10 = vector.extract_strided_slice %0 {offsets = [0, 0], sizes = [1, 32], strides = [1, 1]} : vector<3x32xf32> to vector<1x32xf32>
      %11 = vector.broadcast %9 : vector<32x1xf32> to vector<32x32xf32>
      %12 = vector.broadcast %10 : vector<1x32xf32> to vector<32x32xf32>
      %13 = arith.mulf %11, %12 : vector<32x32xf32>
      %14 = vector.extract_strided_slice %6 {offsets = [0, 1], sizes = [32, 1], strides = [1, 1]} : vector<32x8xf32> to vector<32x1xf32>
      %15 = vector.extract_strided_slice %0 {offsets = [1, 0], sizes = [1, 32], strides = [1, 1]} : vector<3x32xf32> to vector<1x32xf32>
      %16 = vector.broadcast %14 : vector<32x1xf32> to vector<32x32xf32>
      %17 = vector.broadcast %15 : vector<1x32xf32> to vector<32x32xf32>
      %18 = arith.mulf %16, %17 : vector<32x32xf32>
      %19 = arith.addf %13, %18 : vector<32x32xf32>
      %20 = vector.extract_strided_slice %6 {offsets = [0, 2], sizes = [32, 1], strides = [1, 1]} : vector<32x8xf32> to vector<32x1xf32>
      %21 = vector.extract_strided_slice %0 {offsets = [2, 0], sizes = [1, 32], strides = [1, 1]} : vector<3x32xf32> to vector<1x32xf32>
      %22 = vector.broadcast %20 : vector<32x1xf32> to vector<32x32xf32>
      %23 = vector.broadcast %21 : vector<1x32xf32> to vector<32x32xf32>
      %24 = arith.mulf %22, %23 : vector<32x32xf32>
      %25 = arith.addf %19, %24 : vector<32x32xf32>
      %26 = vector.broadcast %1 : vector<1x32xf32> to vector<32x32xf32>
      %27 = arith.addf %25, %26 : vector<32x32xf32>
      %28 = vector.extract_strided_slice %6 {offsets = [0, 3], sizes = [32, 1], strides = [1, 1]} : vector<32x8xf32> to vector<32x1xf32>
      %29 = vector.extract_strided_slice %0 {offsets = [0, 0], sizes = [1, 32], strides = [1, 1]} : vector<3x32xf32> to vector<1x32xf32>
      %30 = vector.broadcast %28 : vector<32x1xf32> to vector<32x32xf32>
      %31 = vector.broadcast %29 : vector<1x32xf32> to vector<32x32xf32>
      %32 = arith.mulf %30, %31 : vector<32x32xf32>
      %33 = vector.extract_strided_slice %6 {offsets = [0, 4], sizes = [32, 1], strides = [1, 1]} : vector<32x8xf32> to vector<32x1xf32>
      %34 = vector.extract_strided_slice %0 {offsets = [1, 0], sizes = [1, 32], strides = [1, 1]} : vector<3x32xf32> to vector<1x32xf32>
      %35 = vector.broadcast %33 : vector<32x1xf32> to vector<32x32xf32>
      %36 = vector.broadcast %34 : vector<1x32xf32> to vector<32x32xf32>
      %37 = arith.mulf %35, %36 : vector<32x32xf32>
      %38 = arith.addf %32, %37 : vector<32x32xf32>
      %39 = vector.extract_strided_slice %6 {offsets = [0, 5], sizes = [32, 1], strides = [1, 1]} : vector<32x8xf32> to vector<32x1xf32>
      %40 = vector.extract_strided_slice %0 {offsets = [2, 0], sizes = [1, 32], strides = [1, 1]} : vector<3x32xf32> to vector<1x32xf32>
      %41 = vector.broadcast %39 : vector<32x1xf32> to vector<32x32xf32>
      %42 = vector.broadcast %40 : vector<1x32xf32> to vector<32x32xf32>
      %43 = arith.mulf %41, %42 : vector<32x32xf32>
      %44 = arith.addf %38, %43 : vector<32x32xf32>
      %cst = arith.constant 0.000000e+00 : f32
      %45 = vector.broadcast %cst : f32 to vector<32x128xf32>
      %cst_6 = arith.constant 0.000000e+00 : f32
      %46 = vector.broadcast %cst_6 : f32 to vector<32x128xf32>
      %cst_7 = arith.constant 0.000000e+00 : f32
      %47 = vector.broadcast %cst_7 : f32 to vector<32x128xf32>
      %cst_8 = arith.constant 0.000000e+00 : f32
      %48 = vector.broadcast %cst_8 : f32 to vector<32x128xf32>
      %49 = vector.extract_strided_slice %27 {offsets = [0, 0], sizes = [32, 1], strides = [1, 1]} : vector<32x32xf32> to vector<32x1xf32>
      %50 = vector.extract_strided_slice %44 {offsets = [0, 0], sizes = [32, 1], strides = [1, 1]} : vector<32x32xf32> to vector<32x1xf32>
      %51 = vector.broadcast %50 : vector<32x1xf32> to vector<32x128xf32>
      %52 = arith.mulf %8, %51 : vector<32x128xf32>
      %53 = vector.broadcast %49 : vector<32x1xf32> to vector<32x128xf32>
      %54 = arith.addf %53, %52 : vector<32x128xf32>
      %cst_9 = arith.constant 0.000000e+00 : f32
      %55 = vector.broadcast %cst_9 : f32 to vector<32x128xf32>
      %56 = arith.maximumf %54, %55 : vector<32x128xf32>
      %c0_10 = arith.constant 0 : index
      %57 = memref.load %arg5[%c0_10] : memref<128xf32, #tpu.memory_space<smem>>
      %58 = vector.broadcast %57 : f32 to vector<32x128xf32>
      %59 = arith.mulf %56, %58 : vector<32x128xf32>
      %60 = arith.addf %45, %59 : vector<32x128xf32>
      %c32 = arith.constant 32 : index
      %61 = memref.load %arg5[%c32] : memref<128xf32, #tpu.memory_space<smem>>
      %62 = vector.broadcast %61 : f32 to vector<32x128xf32>
      %63 = arith.mulf %56, %62 : vector<32x128xf32>
      %64 = arith.addf %46, %63 : vector<32x128xf32>
      %c64 = arith.constant 64 : index
      %65 = memref.load %arg5[%c64] : memref<128xf32, #tpu.memory_space<smem>>
      %66 = vector.broadcast %65 : f32 to vector<32x128xf32>
      %67 = arith.mulf %56, %66 : vector<32x128xf32>
      %68 = arith.addf %47, %67 : vector<32x128xf32>
      %c96 = arith.constant 96 : index
      %69 = memref.load %arg5[%c96] : memref<128xf32, #tpu.memory_space<smem>>
      %70 = vector.broadcast %69 : f32 to vector<32x128xf32>
      %71 = arith.mulf %56, %70 : vector<32x128xf32>
      %72 = arith.addf %48, %71 : vector<32x128xf32>
      %73 = vector.extract_strided_slice %27 {offsets = [0, 1], sizes = [32, 1], strides = [1, 1]} : vector<32x32xf32> to vector<32x1xf32>
      %74 = vector.extract_strided_slice %44 {offsets = [0, 1], sizes = [32, 1], strides = [1, 1]} : vector<32x32xf32> to vector<32x1xf32>
      %75 = vector.broadcast %74 : vector<32x1xf32> to vector<32x128xf32>
      %76 = arith.mulf %8, %75 : vector<32x128xf32>
      %77 = vector.broadcast %73 : vector<32x1xf32> to vector<32x128xf32>
      %78 = arith.addf %77, %76 : vector<32x128xf32>
      %cst_11 = arith.constant 0.000000e+00 : f32
      %79 = vector.broadcast %cst_11 : f32 to vector<32x128xf32>
      %80 = arith.maximumf %78, %79 : vector<32x128xf32>
      %c1 = arith.constant 1 : index
      %81 = memref.load %arg5[%c1] : memref<128xf32, #tpu.memory_space<smem>>
      %82 = vector.broadcast %81 : f32 to vector<32x128xf32>
      %83 = arith.mulf %80, %82 : vector<32x128xf32>
      %84 = arith.addf %60, %83 : vector<32x128xf32>
      %c33 = arith.constant 33 : index
      %85 = memref.load %arg5[%c33] : memref<128xf32, #tpu.memory_space<smem>>
      %86 = vector.broadcast %85 : f32 to vector<32x128xf32>
      %87 = arith.mulf %80, %86 : vector<32x128xf32>
      %88 = arith.addf %64, %87 : vector<32x128xf32>
      %c65 = arith.constant 65 : index
      %89 = memref.load %arg5[%c65] : memref<128xf32, #tpu.memory_space<smem>>
      %90 = vector.broadcast %89 : f32 to vector<32x128xf32>
      %91 = arith.mulf %80, %90 : vector<32x128xf32>
      %92 = arith.addf %68, %91 : vector<32x128xf32>
      %c97 = arith.constant 97 : index
      %93 = memref.load %arg5[%c97] : memref<128xf32, #tpu.memory_space<smem>>
      %94 = vector.broadcast %93 : f32 to vector<32x128xf32>
      %95 = arith.mulf %80, %94 : vector<32x128xf32>
      %96 = arith.addf %72, %95 : vector<32x128xf32>
      %97 = vector.extract_strided_slice %27 {offsets = [0, 2], sizes = [32, 1], strides = [1, 1]} : vector<32x32xf32> to vector<32x1xf32>
      %98 = vector.extract_strided_slice %44 {offsets = [0, 2], sizes = [32, 1], strides = [1, 1]} : vector<32x32xf32> to vector<32x1xf32>
      %99 = vector.broadcast %98 : vector<32x1xf32> to vector<32x128xf32>
      %100 = arith.mulf %8, %99 : vector<32x128xf32>
      %101 = vector.broadcast %97 : vector<32x1xf32> to vector<32x128xf32>
      %102 = arith.addf %101, %100 : vector<32x128xf32>
      %cst_12 = arith.constant 0.000000e+00 : f32
      %103 = vector.broadcast %cst_12 : f32 to vector<32x128xf32>
      %104 = arith.maximumf %102, %103 : vector<32x128xf32>
      %c2 = arith.constant 2 : index
      %105 = memref.load %arg5[%c2] : memref<128xf32, #tpu.memory_space<smem>>
      %106 = vector.broadcast %105 : f32 to vector<32x128xf32>
      %107 = arith.mulf %104, %106 : vector<32x128xf32>
      %108 = arith.addf %84, %107 : vector<32x128xf32>
      %c34 = arith.constant 34 : index
      %109 = memref.load %arg5[%c34] : memref<128xf32, #tpu.memory_space<smem>>
      %110 = vector.broadcast %109 : f32 to vector<32x128xf32>
      %111 = arith.mulf %104, %110 : vector<32x128xf32>
      %112 = arith.addf %88, %111 : vector<32x128xf32>
      %c66 = arith.constant 66 : index
      %113 = memref.load %arg5[%c66] : memref<128xf32, #tpu.memory_space<smem>>
      %114 = vector.broadcast %113 : f32 to vector<32x128xf32>
      %115 = arith.mulf %104, %114 : vector<32x128xf32>
      %116 = arith.addf %92, %115 : vector<32x128xf32>
      %c98 = arith.constant 98 : index
      %117 = memref.load %arg5[%c98] : memref<128xf32, #tpu.memory_space<smem>>
      %118 = vector.broadcast %117 : f32 to vector<32x128xf32>
      %119 = arith.mulf %104, %118 : vector<32x128xf32>
      %120 = arith.addf %96, %119 : vector<32x128xf32>
      %121 = vector.extract_strided_slice %27 {offsets = [0, 3], sizes = [32, 1], strides = [1, 1]} : vector<32x32xf32> to vector<32x1xf32>
      %122 = vector.extract_strided_slice %44 {offsets = [0, 3], sizes = [32, 1], strides = [1, 1]} : vector<32x32xf32> to vector<32x1xf32>
      %123 = vector.broadcast %122 : vector<32x1xf32> to vector<32x128xf32>
      %124 = arith.mulf %8, %123 : vector<32x128xf32>
      %125 = vector.broadcast %121 : vector<32x1xf32> to vector<32x128xf32>
      %126 = arith.addf %125, %124 : vector<32x128xf32>
      %cst_13 = arith.constant 0.000000e+00 : f32
      %127 = vector.broadcast %cst_13 : f32 to vector<32x128xf32>
      %128 = arith.maximumf %126, %127 : vector<32x128xf32>
      %c3 = arith.constant 3 : index
      %129 = memref.load %arg5[%c3] : memref<128xf32, #tpu.memory_space<smem>>
      %130 = vector.broadcast %129 : f32 to vector<32x128xf32>
      %131 = arith.mulf %128, %130 : vector<32x128xf32>
      %132 = arith.addf %108, %131 : vector<32x128xf32>
      %c35 = arith.constant 35 : index
      %133 = memref.load %arg5[%c35] : memref<128xf32, #tpu.memory_space<smem>>
      %134 = vector.broadcast %133 : f32 to vector<32x128xf32>
      %135 = arith.mulf %128, %134 : vector<32x128xf32>
      %136 = arith.addf %112, %135 : vector<32x128xf32>
      %c67 = arith.constant 67 : index
      %137 = memref.load %arg5[%c67] : memref<128xf32, #tpu.memory_space<smem>>
      %138 = vector.broadcast %137 : f32 to vector<32x128xf32>
      %139 = arith.mulf %128, %138 : vector<32x128xf32>
      %140 = arith.addf %116, %139 : vector<32x128xf32>
      %c99 = arith.constant 99 : index
      %141 = memref.load %arg5[%c99] : memref<128xf32, #tpu.memory_space<smem>>
      %142 = vector.broadcast %141 : f32 to vector<32x128xf32>
      %143 = arith.mulf %128, %142 : vector<32x128xf32>
      %144 = arith.addf %120, %143 : vector<32x128xf32>
      %145 = vector.extract_strided_slice %27 {offsets = [0, 4], sizes = [32, 1], strides = [1, 1]} : vector<32x32xf32> to vector<32x1xf32>
      %146 = vector.extract_strided_slice %44 {offsets = [0, 4], sizes = [32, 1], strides = [1, 1]} : vector<32x32xf32> to vector<32x1xf32>
      %147 = vector.broadcast %146 : vector<32x1xf32> to vector<32x128xf32>
      %148 = arith.mulf %8, %147 : vector<32x128xf32>
      %149 = vector.broadcast %145 : vector<32x1xf32> to vector<32x128xf32>
      %150 = arith.addf %149, %148 : vector<32x128xf32>
      %cst_14 = arith.constant 0.000000e+00 : f32
      %151 = vector.broadcast %cst_14 : f32 to vector<32x128xf32>
      %152 = arith.maximumf %150, %151 : vector<32x128xf32>
      %c4 = arith.constant 4 : index
      %153 = memref.load %arg5[%c4] : memref<128xf32, #tpu.memory_space<smem>>
      %154 = vector.broadcast %153 : f32 to vector<32x128xf32>
      %155 = arith.mulf %152, %154 : vector<32x128xf32>
      %156 = arith.addf %132, %155 : vector<32x128xf32>
      %c36 = arith.constant 36 : index
      %157 = memref.load %arg5[%c36] : memref<128xf32, #tpu.memory_space<smem>>
      %158 = vector.broadcast %157 : f32 to vector<32x128xf32>
      %159 = arith.mulf %152, %158 : vector<32x128xf32>
      %160 = arith.addf %136, %159 : vector<32x128xf32>
      %c68 = arith.constant 68 : index
      %161 = memref.load %arg5[%c68] : memref<128xf32, #tpu.memory_space<smem>>
      %162 = vector.broadcast %161 : f32 to vector<32x128xf32>
      %163 = arith.mulf %152, %162 : vector<32x128xf32>
      %164 = arith.addf %140, %163 : vector<32x128xf32>
      %c100 = arith.constant 100 : index
      %165 = memref.load %arg5[%c100] : memref<128xf32, #tpu.memory_space<smem>>
      %166 = vector.broadcast %165 : f32 to vector<32x128xf32>
      %167 = arith.mulf %152, %166 : vector<32x128xf32>
      %168 = arith.addf %144, %167 : vector<32x128xf32>
      %169 = vector.extract_strided_slice %27 {offsets = [0, 5], sizes = [32, 1], strides = [1, 1]} : vector<32x32xf32> to vector<32x1xf32>
      %170 = vector.extract_strided_slice %44 {offsets = [0, 5], sizes = [32, 1], strides = [1, 1]} : vector<32x32xf32> to vector<32x1xf32>
      %171 = vector.broadcast %170 : vector<32x1xf32> to vector<32x128xf32>
      %172 = arith.mulf %8, %171 : vector<32x128xf32>
      %173 = vector.broadcast %169 : vector<32x1xf32> to vector<32x128xf32>
      %174 = arith.addf %173, %172 : vector<32x128xf32>
      %cst_15 = arith.constant 0.000000e+00 : f32
      %175 = vector.broadcast %cst_15 : f32 to vector<32x128xf32>
      %176 = arith.maximumf %174, %175 : vector<32x128xf32>
      %c5 = arith.constant 5 : index
      %177 = memref.load %arg5[%c5] : memref<128xf32, #tpu.memory_space<smem>>
      %178 = vector.broadcast %177 : f32 to vector<32x128xf32>
      %179 = arith.mulf %176, %178 : vector<32x128xf32>
      %180 = arith.addf %156, %179 : vector<32x128xf32>
      %c37 = arith.constant 37 : index
      %181 = memref.load %arg5[%c37] : memref<128xf32, #tpu.memory_space<smem>>
      %182 = vector.broadcast %181 : f32 to vector<32x128xf32>
      %183 = arith.mulf %176, %182 : vector<32x128xf32>
      %184 = arith.addf %160, %183 : vector<32x128xf32>
      %c69 = arith.constant 69 : index
      %185 = memref.load %arg5[%c69] : memref<128xf32, #tpu.memory_space<smem>>
      %186 = vector.broadcast %185 : f32 to vector<32x128xf32>
      %187 = arith.mulf %176, %186 : vector<32x128xf32>
      %188 = arith.addf %164, %187 : vector<32x128xf32>
      %c101 = arith.constant 101 : index
      %189 = memref.load %arg5[%c101] : memref<128xf32, #tpu.memory_space<smem>>
      %190 = vector.broadcast %189 : f32 to vector<32x128xf32>
      %191 = arith.mulf %176, %190 : vector<32x128xf32>
      %192 = arith.addf %168, %191 : vector<32x128xf32>
      %193 = vector.extract_strided_slice %27 {offsets = [0, 6], sizes = [32, 1], strides = [1, 1]} : vector<32x32xf32> to vector<32x1xf32>
      %194 = vector.extract_strided_slice %44 {offsets = [0, 6], sizes = [32, 1], strides = [1, 1]} : vector<32x32xf32> to vector<32x1xf32>
      %195 = vector.broadcast %194 : vector<32x1xf32> to vector<32x128xf32>
      %196 = arith.mulf %8, %195 : vector<32x128xf32>
      %197 = vector.broadcast %193 : vector<32x1xf32> to vector<32x128xf32>
      %198 = arith.addf %197, %196 : vector<32x128xf32>
      %cst_16 = arith.constant 0.000000e+00 : f32
      %199 = vector.broadcast %cst_16 : f32 to vector<32x128xf32>
      %200 = arith.maximumf %198, %199 : vector<32x128xf32>
      %c6 = arith.constant 6 : index
      %201 = memref.load %arg5[%c6] : memref<128xf32, #tpu.memory_space<smem>>
      %202 = vector.broadcast %201 : f32 to vector<32x128xf32>
      %203 = arith.mulf %200, %202 : vector<32x128xf32>
      %204 = arith.addf %180, %203 : vector<32x128xf32>
      %c38 = arith.constant 38 : index
      %205 = memref.load %arg5[%c38] : memref<128xf32, #tpu.memory_space<smem>>
      %206 = vector.broadcast %205 : f32 to vector<32x128xf32>
      %207 = arith.mulf %200, %206 : vector<32x128xf32>
      %208 = arith.addf %184, %207 : vector<32x128xf32>
      %c70 = arith.constant 70 : index
      %209 = memref.load %arg5[%c70] : memref<128xf32, #tpu.memory_space<smem>>
      %210 = vector.broadcast %209 : f32 to vector<32x128xf32>
      %211 = arith.mulf %200, %210 : vector<32x128xf32>
      %212 = arith.addf %188, %211 : vector<32x128xf32>
      %c102 = arith.constant 102 : index
      %213 = memref.load %arg5[%c102] : memref<128xf32, #tpu.memory_space<smem>>
      %214 = vector.broadcast %213 : f32 to vector<32x128xf32>
      %215 = arith.mulf %200, %214 : vector<32x128xf32>
      %216 = arith.addf %192, %215 : vector<32x128xf32>
      %217 = vector.extract_strided_slice %27 {offsets = [0, 7], sizes = [32, 1], strides = [1, 1]} : vector<32x32xf32> to vector<32x1xf32>
      %218 = vector.extract_strided_slice %44 {offsets = [0, 7], sizes = [32, 1], strides = [1, 1]} : vector<32x32xf32> to vector<32x1xf32>
      %219 = vector.broadcast %218 : vector<32x1xf32> to vector<32x128xf32>
      %220 = arith.mulf %8, %219 : vector<32x128xf32>
      %221 = vector.broadcast %217 : vector<32x1xf32> to vector<32x128xf32>
      %222 = arith.addf %221, %220 : vector<32x128xf32>
      %cst_17 = arith.constant 0.000000e+00 : f32
      %223 = vector.broadcast %cst_17 : f32 to vector<32x128xf32>
      %224 = arith.maximumf %222, %223 : vector<32x128xf32>
      %c7 = arith.constant 7 : index
      %225 = memref.load %arg5[%c7] : memref<128xf32, #tpu.memory_space<smem>>
      %226 = vector.broadcast %225 : f32 to vector<32x128xf32>
      %227 = arith.mulf %224, %226 : vector<32x128xf32>
      %228 = arith.addf %204, %227 : vector<32x128xf32>
      %c39 = arith.constant 39 : index
      %229 = memref.load %arg5[%c39] : memref<128xf32, #tpu.memory_space<smem>>
      %230 = vector.broadcast %229 : f32 to vector<32x128xf32>
      %231 = arith.mulf %224, %230 : vector<32x128xf32>
      %232 = arith.addf %208, %231 : vector<32x128xf32>
      %c71 = arith.constant 71 : index
      %233 = memref.load %arg5[%c71] : memref<128xf32, #tpu.memory_space<smem>>
      %234 = vector.broadcast %233 : f32 to vector<32x128xf32>
      %235 = arith.mulf %224, %234 : vector<32x128xf32>
      %236 = arith.addf %212, %235 : vector<32x128xf32>
      %c103 = arith.constant 103 : index
      %237 = memref.load %arg5[%c103] : memref<128xf32, #tpu.memory_space<smem>>
      %238 = vector.broadcast %237 : f32 to vector<32x128xf32>
      %239 = arith.mulf %224, %238 : vector<32x128xf32>
      %240 = arith.addf %216, %239 : vector<32x128xf32>
      %241 = vector.extract_strided_slice %27 {offsets = [0, 8], sizes = [32, 1], strides = [1, 1]} : vector<32x32xf32> to vector<32x1xf32>
      %242 = vector.extract_strided_slice %44 {offsets = [0, 8], sizes = [32, 1], strides = [1, 1]} : vector<32x32xf32> to vector<32x1xf32>
      %243 = vector.broadcast %242 : vector<32x1xf32> to vector<32x128xf32>
      %244 = arith.mulf %8, %243 : vector<32x128xf32>
      %245 = vector.broadcast %241 : vector<32x1xf32> to vector<32x128xf32>
      %246 = arith.addf %245, %244 : vector<32x128xf32>
      %cst_18 = arith.constant 0.000000e+00 : f32
      %247 = vector.broadcast %cst_18 : f32 to vector<32x128xf32>
      %248 = arith.maximumf %246, %247 : vector<32x128xf32>
      %c8 = arith.constant 8 : index
      %249 = memref.load %arg5[%c8] : memref<128xf32, #tpu.memory_space<smem>>
      %250 = vector.broadcast %249 : f32 to vector<32x128xf32>
      %251 = arith.mulf %248, %250 : vector<32x128xf32>
      %252 = arith.addf %228, %251 : vector<32x128xf32>
      %c40 = arith.constant 40 : index
      %253 = memref.load %arg5[%c40] : memref<128xf32, #tpu.memory_space<smem>>
      %254 = vector.broadcast %253 : f32 to vector<32x128xf32>
      %255 = arith.mulf %248, %254 : vector<32x128xf32>
      %256 = arith.addf %232, %255 : vector<32x128xf32>
      %c72 = arith.constant 72 : index
      %257 = memref.load %arg5[%c72] : memref<128xf32, #tpu.memory_space<smem>>
      %258 = vector.broadcast %257 : f32 to vector<32x128xf32>
      %259 = arith.mulf %248, %258 : vector<32x128xf32>
      %260 = arith.addf %236, %259 : vector<32x128xf32>
      %c104 = arith.constant 104 : index
      %261 = memref.load %arg5[%c104] : memref<128xf32, #tpu.memory_space<smem>>
      %262 = vector.broadcast %261 : f32 to vector<32x128xf32>
      %263 = arith.mulf %248, %262 : vector<32x128xf32>
      %264 = arith.addf %240, %263 : vector<32x128xf32>
      %265 = vector.extract_strided_slice %27 {offsets = [0, 9], sizes = [32, 1], strides = [1, 1]} : vector<32x32xf32> to vector<32x1xf32>
      %266 = vector.extract_strided_slice %44 {offsets = [0, 9], sizes = [32, 1], strides = [1, 1]} : vector<32x32xf32> to vector<32x1xf32>
      %267 = vector.broadcast %266 : vector<32x1xf32> to vector<32x128xf32>
      %268 = arith.mulf %8, %267 : vector<32x128xf32>
      %269 = vector.broadcast %265 : vector<32x1xf32> to vector<32x128xf32>
      %270 = arith.addf %269, %268 : vector<32x128xf32>
      %cst_19 = arith.constant 0.000000e+00 : f32
      %271 = vector.broadcast %cst_19 : f32 to vector<32x128xf32>
      %272 = arith.maximumf %270, %271 : vector<32x128xf32>
      %c9 = arith.constant 9 : index
      %273 = memref.load %arg5[%c9] : memref<128xf32, #tpu.memory_space<smem>>
      %274 = vector.broadcast %273 : f32 to vector<32x128xf32>
      %275 = arith.mulf %272, %274 : vector<32x128xf32>
      %276 = arith.addf %252, %275 : vector<32x128xf32>
      %c41 = arith.constant 41 : index
      %277 = memref.load %arg5[%c41] : memref<128xf32, #tpu.memory_space<smem>>
      %278 = vector.broadcast %277 : f32 to vector<32x128xf32>
      %279 = arith.mulf %272, %278 : vector<32x128xf32>
      %280 = arith.addf %256, %279 : vector<32x128xf32>
      %c73 = arith.constant 73 : index
      %281 = memref.load %arg5[%c73] : memref<128xf32, #tpu.memory_space<smem>>
      %282 = vector.broadcast %281 : f32 to vector<32x128xf32>
      %283 = arith.mulf %272, %282 : vector<32x128xf32>
      %284 = arith.addf %260, %283 : vector<32x128xf32>
      %c105 = arith.constant 105 : index
      %285 = memref.load %arg5[%c105] : memref<128xf32, #tpu.memory_space<smem>>
      %286 = vector.broadcast %285 : f32 to vector<32x128xf32>
      %287 = arith.mulf %272, %286 : vector<32x128xf32>
      %288 = arith.addf %264, %287 : vector<32x128xf32>
      %289 = vector.extract_strided_slice %27 {offsets = [0, 10], sizes = [32, 1], strides = [1, 1]} : vector<32x32xf32> to vector<32x1xf32>
      %290 = vector.extract_strided_slice %44 {offsets = [0, 10], sizes = [32, 1], strides = [1, 1]} : vector<32x32xf32> to vector<32x1xf32>
      %291 = vector.broadcast %290 : vector<32x1xf32> to vector<32x128xf32>
      %292 = arith.mulf %8, %291 : vector<32x128xf32>
      %293 = vector.broadcast %289 : vector<32x1xf32> to vector<32x128xf32>
      %294 = arith.addf %293, %292 : vector<32x128xf32>
      %cst_20 = arith.constant 0.000000e+00 : f32
      %295 = vector.broadcast %cst_20 : f32 to vector<32x128xf32>
      %296 = arith.maximumf %294, %295 : vector<32x128xf32>
      %c10 = arith.constant 10 : index
      %297 = memref.load %arg5[%c10] : memref<128xf32, #tpu.memory_space<smem>>
      %298 = vector.broadcast %297 : f32 to vector<32x128xf32>
      %299 = arith.mulf %296, %298 : vector<32x128xf32>
      %300 = arith.addf %276, %299 : vector<32x128xf32>
      %c42 = arith.constant 42 : index
      %301 = memref.load %arg5[%c42] : memref<128xf32, #tpu.memory_space<smem>>
      %302 = vector.broadcast %301 : f32 to vector<32x128xf32>
      %303 = arith.mulf %296, %302 : vector<32x128xf32>
      %304 = arith.addf %280, %303 : vector<32x128xf32>
      %c74 = arith.constant 74 : index
      %305 = memref.load %arg5[%c74] : memref<128xf32, #tpu.memory_space<smem>>
      %306 = vector.broadcast %305 : f32 to vector<32x128xf32>
      %307 = arith.mulf %296, %306 : vector<32x128xf32>
      %308 = arith.addf %284, %307 : vector<32x128xf32>
      %c106 = arith.constant 106 : index
      %309 = memref.load %arg5[%c106] : memref<128xf32, #tpu.memory_space<smem>>
      %310 = vector.broadcast %309 : f32 to vector<32x128xf32>
      %311 = arith.mulf %296, %310 : vector<32x128xf32>
      %312 = arith.addf %288, %311 : vector<32x128xf32>
      %313 = vector.extract_strided_slice %27 {offsets = [0, 11], sizes = [32, 1], strides = [1, 1]} : vector<32x32xf32> to vector<32x1xf32>
      %314 = vector.extract_strided_slice %44 {offsets = [0, 11], sizes = [32, 1], strides = [1, 1]} : vector<32x32xf32> to vector<32x1xf32>
      %315 = vector.broadcast %314 : vector<32x1xf32> to vector<32x128xf32>
      %316 = arith.mulf %8, %315 : vector<32x128xf32>
      %317 = vector.broadcast %313 : vector<32x1xf32> to vector<32x128xf32>
      %318 = arith.addf %317, %316 : vector<32x128xf32>
      %cst_21 = arith.constant 0.000000e+00 : f32
      %319 = vector.broadcast %cst_21 : f32 to vector<32x128xf32>
      %320 = arith.maximumf %318, %319 : vector<32x128xf32>
      %c11 = arith.constant 11 : index
      %321 = memref.load %arg5[%c11] : memref<128xf32, #tpu.memory_space<smem>>
      %322 = vector.broadcast %321 : f32 to vector<32x128xf32>
      %323 = arith.mulf %320, %322 : vector<32x128xf32>
      %324 = arith.addf %300, %323 : vector<32x128xf32>
      %c43 = arith.constant 43 : index
      %325 = memref.load %arg5[%c43] : memref<128xf32, #tpu.memory_space<smem>>
      %326 = vector.broadcast %325 : f32 to vector<32x128xf32>
      %327 = arith.mulf %320, %326 : vector<32x128xf32>
      %328 = arith.addf %304, %327 : vector<32x128xf32>
      %c75 = arith.constant 75 : index
      %329 = memref.load %arg5[%c75] : memref<128xf32, #tpu.memory_space<smem>>
      %330 = vector.broadcast %329 : f32 to vector<32x128xf32>
      %331 = arith.mulf %320, %330 : vector<32x128xf32>
      %332 = arith.addf %308, %331 : vector<32x128xf32>
      %c107 = arith.constant 107 : index
      %333 = memref.load %arg5[%c107] : memref<128xf32, #tpu.memory_space<smem>>
      %334 = vector.broadcast %333 : f32 to vector<32x128xf32>
      %335 = arith.mulf %320, %334 : vector<32x128xf32>
      %336 = arith.addf %312, %335 : vector<32x128xf32>
      %337 = vector.extract_strided_slice %27 {offsets = [0, 12], sizes = [32, 1], strides = [1, 1]} : vector<32x32xf32> to vector<32x1xf32>
      %338 = vector.extract_strided_slice %44 {offsets = [0, 12], sizes = [32, 1], strides = [1, 1]} : vector<32x32xf32> to vector<32x1xf32>
      %339 = vector.broadcast %338 : vector<32x1xf32> to vector<32x128xf32>
      %340 = arith.mulf %8, %339 : vector<32x128xf32>
      %341 = vector.broadcast %337 : vector<32x1xf32> to vector<32x128xf32>
      %342 = arith.addf %341, %340 : vector<32x128xf32>
      %cst_22 = arith.constant 0.000000e+00 : f32
      %343 = vector.broadcast %cst_22 : f32 to vector<32x128xf32>
      %344 = arith.maximumf %342, %343 : vector<32x128xf32>
      %c12 = arith.constant 12 : index
      %345 = memref.load %arg5[%c12] : memref<128xf32, #tpu.memory_space<smem>>
      %346 = vector.broadcast %345 : f32 to vector<32x128xf32>
      %347 = arith.mulf %344, %346 : vector<32x128xf32>
      %348 = arith.addf %324, %347 : vector<32x128xf32>
      %c44 = arith.constant 44 : index
      %349 = memref.load %arg5[%c44] : memref<128xf32, #tpu.memory_space<smem>>
      %350 = vector.broadcast %349 : f32 to vector<32x128xf32>
      %351 = arith.mulf %344, %350 : vector<32x128xf32>
      %352 = arith.addf %328, %351 : vector<32x128xf32>
      %c76 = arith.constant 76 : index
      %353 = memref.load %arg5[%c76] : memref<128xf32, #tpu.memory_space<smem>>
      %354 = vector.broadcast %353 : f32 to vector<32x128xf32>
      %355 = arith.mulf %344, %354 : vector<32x128xf32>
      %356 = arith.addf %332, %355 : vector<32x128xf32>
      %c108 = arith.constant 108 : index
      %357 = memref.load %arg5[%c108] : memref<128xf32, #tpu.memory_space<smem>>
      %358 = vector.broadcast %357 : f32 to vector<32x128xf32>
      %359 = arith.mulf %344, %358 : vector<32x128xf32>
      %360 = arith.addf %336, %359 : vector<32x128xf32>
      %361 = vector.extract_strided_slice %27 {offsets = [0, 13], sizes = [32, 1], strides = [1, 1]} : vector<32x32xf32> to vector<32x1xf32>
      %362 = vector.extract_strided_slice %44 {offsets = [0, 13], sizes = [32, 1], strides = [1, 1]} : vector<32x32xf32> to vector<32x1xf32>
      %363 = vector.broadcast %362 : vector<32x1xf32> to vector<32x128xf32>
      %364 = arith.mulf %8, %363 : vector<32x128xf32>
      %365 = vector.broadcast %361 : vector<32x1xf32> to vector<32x128xf32>
      %366 = arith.addf %365, %364 : vector<32x128xf32>
      %cst_23 = arith.constant 0.000000e+00 : f32
      %367 = vector.broadcast %cst_23 : f32 to vector<32x128xf32>
      %368 = arith.maximumf %366, %367 : vector<32x128xf32>
      %c13 = arith.constant 13 : index
      %369 = memref.load %arg5[%c13] : memref<128xf32, #tpu.memory_space<smem>>
      %370 = vector.broadcast %369 : f32 to vector<32x128xf32>
      %371 = arith.mulf %368, %370 : vector<32x128xf32>
      %372 = arith.addf %348, %371 : vector<32x128xf32>
      %c45 = arith.constant 45 : index
      %373 = memref.load %arg5[%c45] : memref<128xf32, #tpu.memory_space<smem>>
      %374 = vector.broadcast %373 : f32 to vector<32x128xf32>
      %375 = arith.mulf %368, %374 : vector<32x128xf32>
      %376 = arith.addf %352, %375 : vector<32x128xf32>
      %c77 = arith.constant 77 : index
      %377 = memref.load %arg5[%c77] : memref<128xf32, #tpu.memory_space<smem>>
      %378 = vector.broadcast %377 : f32 to vector<32x128xf32>
      %379 = arith.mulf %368, %378 : vector<32x128xf32>
      %380 = arith.addf %356, %379 : vector<32x128xf32>
      %c109 = arith.constant 109 : index
      %381 = memref.load %arg5[%c109] : memref<128xf32, #tpu.memory_space<smem>>
      %382 = vector.broadcast %381 : f32 to vector<32x128xf32>
      %383 = arith.mulf %368, %382 : vector<32x128xf32>
      %384 = arith.addf %360, %383 : vector<32x128xf32>
      %385 = vector.extract_strided_slice %27 {offsets = [0, 14], sizes = [32, 1], strides = [1, 1]} : vector<32x32xf32> to vector<32x1xf32>
      %386 = vector.extract_strided_slice %44 {offsets = [0, 14], sizes = [32, 1], strides = [1, 1]} : vector<32x32xf32> to vector<32x1xf32>
      %387 = vector.broadcast %386 : vector<32x1xf32> to vector<32x128xf32>
      %388 = arith.mulf %8, %387 : vector<32x128xf32>
      %389 = vector.broadcast %385 : vector<32x1xf32> to vector<32x128xf32>
      %390 = arith.addf %389, %388 : vector<32x128xf32>
      %cst_24 = arith.constant 0.000000e+00 : f32
      %391 = vector.broadcast %cst_24 : f32 to vector<32x128xf32>
      %392 = arith.maximumf %390, %391 : vector<32x128xf32>
      %c14 = arith.constant 14 : index
      %393 = memref.load %arg5[%c14] : memref<128xf32, #tpu.memory_space<smem>>
      %394 = vector.broadcast %393 : f32 to vector<32x128xf32>
      %395 = arith.mulf %392, %394 : vector<32x128xf32>
      %396 = arith.addf %372, %395 : vector<32x128xf32>
      %c46 = arith.constant 46 : index
      %397 = memref.load %arg5[%c46] : memref<128xf32, #tpu.memory_space<smem>>
      %398 = vector.broadcast %397 : f32 to vector<32x128xf32>
      %399 = arith.mulf %392, %398 : vector<32x128xf32>
      %400 = arith.addf %376, %399 : vector<32x128xf32>
      %c78 = arith.constant 78 : index
      %401 = memref.load %arg5[%c78] : memref<128xf32, #tpu.memory_space<smem>>
      %402 = vector.broadcast %401 : f32 to vector<32x128xf32>
      %403 = arith.mulf %392, %402 : vector<32x128xf32>
      %404 = arith.addf %380, %403 : vector<32x128xf32>
      %c110 = arith.constant 110 : index
      %405 = memref.load %arg5[%c110] : memref<128xf32, #tpu.memory_space<smem>>
      %406 = vector.broadcast %405 : f32 to vector<32x128xf32>
      %407 = arith.mulf %392, %406 : vector<32x128xf32>
      %408 = arith.addf %384, %407 : vector<32x128xf32>
      %409 = vector.extract_strided_slice %27 {offsets = [0, 15], sizes = [32, 1], strides = [1, 1]} : vector<32x32xf32> to vector<32x1xf32>
      %410 = vector.extract_strided_slice %44 {offsets = [0, 15], sizes = [32, 1], strides = [1, 1]} : vector<32x32xf32> to vector<32x1xf32>
      %411 = vector.broadcast %410 : vector<32x1xf32> to vector<32x128xf32>
      %412 = arith.mulf %8, %411 : vector<32x128xf32>
      %413 = vector.broadcast %409 : vector<32x1xf32> to vector<32x128xf32>
      %414 = arith.addf %413, %412 : vector<32x128xf32>
      %cst_25 = arith.constant 0.000000e+00 : f32
      %415 = vector.broadcast %cst_25 : f32 to vector<32x128xf32>
      %416 = arith.maximumf %414, %415 : vector<32x128xf32>
      %c15 = arith.constant 15 : index
      %417 = memref.load %arg5[%c15] : memref<128xf32, #tpu.memory_space<smem>>
      %418 = vector.broadcast %417 : f32 to vector<32x128xf32>
      %419 = arith.mulf %416, %418 : vector<32x128xf32>
      %420 = arith.addf %396, %419 : vector<32x128xf32>
      %c47 = arith.constant 47 : index
      %421 = memref.load %arg5[%c47] : memref<128xf32, #tpu.memory_space<smem>>
      %422 = vector.broadcast %421 : f32 to vector<32x128xf32>
      %423 = arith.mulf %416, %422 : vector<32x128xf32>
      %424 = arith.addf %400, %423 : vector<32x128xf32>
      %c79 = arith.constant 79 : index
      %425 = memref.load %arg5[%c79] : memref<128xf32, #tpu.memory_space<smem>>
      %426 = vector.broadcast %425 : f32 to vector<32x128xf32>
      %427 = arith.mulf %416, %426 : vector<32x128xf32>
      %428 = arith.addf %404, %427 : vector<32x128xf32>
      %c111 = arith.constant 111 : index
      %429 = memref.load %arg5[%c111] : memref<128xf32, #tpu.memory_space<smem>>
      %430 = vector.broadcast %429 : f32 to vector<32x128xf32>
      %431 = arith.mulf %416, %430 : vector<32x128xf32>
      %432 = arith.addf %408, %431 : vector<32x128xf32>
      %433 = vector.extract_strided_slice %27 {offsets = [0, 16], sizes = [32, 1], strides = [1, 1]} : vector<32x32xf32> to vector<32x1xf32>
      %434 = vector.extract_strided_slice %44 {offsets = [0, 16], sizes = [32, 1], strides = [1, 1]} : vector<32x32xf32> to vector<32x1xf32>
      %435 = vector.broadcast %434 : vector<32x1xf32> to vector<32x128xf32>
      %436 = arith.mulf %8, %435 : vector<32x128xf32>
      %437 = vector.broadcast %433 : vector<32x1xf32> to vector<32x128xf32>
      %438 = arith.addf %437, %436 : vector<32x128xf32>
      %cst_26 = arith.constant 0.000000e+00 : f32
      %439 = vector.broadcast %cst_26 : f32 to vector<32x128xf32>
      %440 = arith.maximumf %438, %439 : vector<32x128xf32>
      %c16 = arith.constant 16 : index
      %441 = memref.load %arg5[%c16] : memref<128xf32, #tpu.memory_space<smem>>
      %442 = vector.broadcast %441 : f32 to vector<32x128xf32>
      %443 = arith.mulf %440, %442 : vector<32x128xf32>
      %444 = arith.addf %420, %443 : vector<32x128xf32>
      %c48 = arith.constant 48 : index
      %445 = memref.load %arg5[%c48] : memref<128xf32, #tpu.memory_space<smem>>
      %446 = vector.broadcast %445 : f32 to vector<32x128xf32>
      %447 = arith.mulf %440, %446 : vector<32x128xf32>
      %448 = arith.addf %424, %447 : vector<32x128xf32>
      %c80 = arith.constant 80 : index
      %449 = memref.load %arg5[%c80] : memref<128xf32, #tpu.memory_space<smem>>
      %450 = vector.broadcast %449 : f32 to vector<32x128xf32>
      %451 = arith.mulf %440, %450 : vector<32x128xf32>
      %452 = arith.addf %428, %451 : vector<32x128xf32>
      %c112 = arith.constant 112 : index
      %453 = memref.load %arg5[%c112] : memref<128xf32, #tpu.memory_space<smem>>
      %454 = vector.broadcast %453 : f32 to vector<32x128xf32>
      %455 = arith.mulf %440, %454 : vector<32x128xf32>
      %456 = arith.addf %432, %455 : vector<32x128xf32>
      %457 = vector.extract_strided_slice %27 {offsets = [0, 17], sizes = [32, 1], strides = [1, 1]} : vector<32x32xf32> to vector<32x1xf32>
      %458 = vector.extract_strided_slice %44 {offsets = [0, 17], sizes = [32, 1], strides = [1, 1]} : vector<32x32xf32> to vector<32x1xf32>
      %459 = vector.broadcast %458 : vector<32x1xf32> to vector<32x128xf32>
      %460 = arith.mulf %8, %459 : vector<32x128xf32>
      %461 = vector.broadcast %457 : vector<32x1xf32> to vector<32x128xf32>
      %462 = arith.addf %461, %460 : vector<32x128xf32>
      %cst_27 = arith.constant 0.000000e+00 : f32
      %463 = vector.broadcast %cst_27 : f32 to vector<32x128xf32>
      %464 = arith.maximumf %462, %463 : vector<32x128xf32>
      %c17 = arith.constant 17 : index
      %465 = memref.load %arg5[%c17] : memref<128xf32, #tpu.memory_space<smem>>
      %466 = vector.broadcast %465 : f32 to vector<32x128xf32>
      %467 = arith.mulf %464, %466 : vector<32x128xf32>
      %468 = arith.addf %444, %467 : vector<32x128xf32>
      %c49 = arith.constant 49 : index
      %469 = memref.load %arg5[%c49] : memref<128xf32, #tpu.memory_space<smem>>
      %470 = vector.broadcast %469 : f32 to vector<32x128xf32>
      %471 = arith.mulf %464, %470 : vector<32x128xf32>
      %472 = arith.addf %448, %471 : vector<32x128xf32>
      %c81 = arith.constant 81 : index
      %473 = memref.load %arg5[%c81] : memref<128xf32, #tpu.memory_space<smem>>
      %474 = vector.broadcast %473 : f32 to vector<32x128xf32>
      %475 = arith.mulf %464, %474 : vector<32x128xf32>
      %476 = arith.addf %452, %475 : vector<32x128xf32>
      %c113 = arith.constant 113 : index
      %477 = memref.load %arg5[%c113] : memref<128xf32, #tpu.memory_space<smem>>
      %478 = vector.broadcast %477 : f32 to vector<32x128xf32>
      %479 = arith.mulf %464, %478 : vector<32x128xf32>
      %480 = arith.addf %456, %479 : vector<32x128xf32>
      %481 = vector.extract_strided_slice %27 {offsets = [0, 18], sizes = [32, 1], strides = [1, 1]} : vector<32x32xf32> to vector<32x1xf32>
      %482 = vector.extract_strided_slice %44 {offsets = [0, 18], sizes = [32, 1], strides = [1, 1]} : vector<32x32xf32> to vector<32x1xf32>
      %483 = vector.broadcast %482 : vector<32x1xf32> to vector<32x128xf32>
      %484 = arith.mulf %8, %483 : vector<32x128xf32>
      %485 = vector.broadcast %481 : vector<32x1xf32> to vector<32x128xf32>
      %486 = arith.addf %485, %484 : vector<32x128xf32>
      %cst_28 = arith.constant 0.000000e+00 : f32
      %487 = vector.broadcast %cst_28 : f32 to vector<32x128xf32>
      %488 = arith.maximumf %486, %487 : vector<32x128xf32>
      %c18 = arith.constant 18 : index
      %489 = memref.load %arg5[%c18] : memref<128xf32, #tpu.memory_space<smem>>
      %490 = vector.broadcast %489 : f32 to vector<32x128xf32>
      %491 = arith.mulf %488, %490 : vector<32x128xf32>
      %492 = arith.addf %468, %491 : vector<32x128xf32>
      %c50 = arith.constant 50 : index
      %493 = memref.load %arg5[%c50] : memref<128xf32, #tpu.memory_space<smem>>
      %494 = vector.broadcast %493 : f32 to vector<32x128xf32>
      %495 = arith.mulf %488, %494 : vector<32x128xf32>
      %496 = arith.addf %472, %495 : vector<32x128xf32>
      %c82 = arith.constant 82 : index
      %497 = memref.load %arg5[%c82] : memref<128xf32, #tpu.memory_space<smem>>
      %498 = vector.broadcast %497 : f32 to vector<32x128xf32>
      %499 = arith.mulf %488, %498 : vector<32x128xf32>
      %500 = arith.addf %476, %499 : vector<32x128xf32>
      %c114 = arith.constant 114 : index
      %501 = memref.load %arg5[%c114] : memref<128xf32, #tpu.memory_space<smem>>
      %502 = vector.broadcast %501 : f32 to vector<32x128xf32>
      %503 = arith.mulf %488, %502 : vector<32x128xf32>
      %504 = arith.addf %480, %503 : vector<32x128xf32>
      %505 = vector.extract_strided_slice %27 {offsets = [0, 19], sizes = [32, 1], strides = [1, 1]} : vector<32x32xf32> to vector<32x1xf32>
      %506 = vector.extract_strided_slice %44 {offsets = [0, 19], sizes = [32, 1], strides = [1, 1]} : vector<32x32xf32> to vector<32x1xf32>
      %507 = vector.broadcast %506 : vector<32x1xf32> to vector<32x128xf32>
      %508 = arith.mulf %8, %507 : vector<32x128xf32>
      %509 = vector.broadcast %505 : vector<32x1xf32> to vector<32x128xf32>
      %510 = arith.addf %509, %508 : vector<32x128xf32>
      %cst_29 = arith.constant 0.000000e+00 : f32
      %511 = vector.broadcast %cst_29 : f32 to vector<32x128xf32>
      %512 = arith.maximumf %510, %511 : vector<32x128xf32>
      %c19 = arith.constant 19 : index
      %513 = memref.load %arg5[%c19] : memref<128xf32, #tpu.memory_space<smem>>
      %514 = vector.broadcast %513 : f32 to vector<32x128xf32>
      %515 = arith.mulf %512, %514 : vector<32x128xf32>
      %516 = arith.addf %492, %515 : vector<32x128xf32>
      %c51 = arith.constant 51 : index
      %517 = memref.load %arg5[%c51] : memref<128xf32, #tpu.memory_space<smem>>
      %518 = vector.broadcast %517 : f32 to vector<32x128xf32>
      %519 = arith.mulf %512, %518 : vector<32x128xf32>
      %520 = arith.addf %496, %519 : vector<32x128xf32>
      %c83 = arith.constant 83 : index
      %521 = memref.load %arg5[%c83] : memref<128xf32, #tpu.memory_space<smem>>
      %522 = vector.broadcast %521 : f32 to vector<32x128xf32>
      %523 = arith.mulf %512, %522 : vector<32x128xf32>
      %524 = arith.addf %500, %523 : vector<32x128xf32>
      %c115 = arith.constant 115 : index
      %525 = memref.load %arg5[%c115] : memref<128xf32, #tpu.memory_space<smem>>
      %526 = vector.broadcast %525 : f32 to vector<32x128xf32>
      %527 = arith.mulf %512, %526 : vector<32x128xf32>
      %528 = arith.addf %504, %527 : vector<32x128xf32>
      %529 = vector.extract_strided_slice %27 {offsets = [0, 20], sizes = [32, 1], strides = [1, 1]} : vector<32x32xf32> to vector<32x1xf32>
      %530 = vector.extract_strided_slice %44 {offsets = [0, 20], sizes = [32, 1], strides = [1, 1]} : vector<32x32xf32> to vector<32x1xf32>
      %531 = vector.broadcast %530 : vector<32x1xf32> to vector<32x128xf32>
      %532 = arith.mulf %8, %531 : vector<32x128xf32>
      %533 = vector.broadcast %529 : vector<32x1xf32> to vector<32x128xf32>
      %534 = arith.addf %533, %532 : vector<32x128xf32>
      %cst_30 = arith.constant 0.000000e+00 : f32
      %535 = vector.broadcast %cst_30 : f32 to vector<32x128xf32>
      %536 = arith.maximumf %534, %535 : vector<32x128xf32>
      %c20 = arith.constant 20 : index
      %537 = memref.load %arg5[%c20] : memref<128xf32, #tpu.memory_space<smem>>
      %538 = vector.broadcast %537 : f32 to vector<32x128xf32>
      %539 = arith.mulf %536, %538 : vector<32x128xf32>
      %540 = arith.addf %516, %539 : vector<32x128xf32>
      %c52 = arith.constant 52 : index
      %541 = memref.load %arg5[%c52] : memref<128xf32, #tpu.memory_space<smem>>
      %542 = vector.broadcast %541 : f32 to vector<32x128xf32>
      %543 = arith.mulf %536, %542 : vector<32x128xf32>
      %544 = arith.addf %520, %543 : vector<32x128xf32>
      %c84 = arith.constant 84 : index
      %545 = memref.load %arg5[%c84] : memref<128xf32, #tpu.memory_space<smem>>
      %546 = vector.broadcast %545 : f32 to vector<32x128xf32>
      %547 = arith.mulf %536, %546 : vector<32x128xf32>
      %548 = arith.addf %524, %547 : vector<32x128xf32>
      %c116 = arith.constant 116 : index
      %549 = memref.load %arg5[%c116] : memref<128xf32, #tpu.memory_space<smem>>
      %550 = vector.broadcast %549 : f32 to vector<32x128xf32>
      %551 = arith.mulf %536, %550 : vector<32x128xf32>
      %552 = arith.addf %528, %551 : vector<32x128xf32>
      %553 = vector.extract_strided_slice %27 {offsets = [0, 21], sizes = [32, 1], strides = [1, 1]} : vector<32x32xf32> to vector<32x1xf32>
      %554 = vector.extract_strided_slice %44 {offsets = [0, 21], sizes = [32, 1], strides = [1, 1]} : vector<32x32xf32> to vector<32x1xf32>
      %555 = vector.broadcast %554 : vector<32x1xf32> to vector<32x128xf32>
      %556 = arith.mulf %8, %555 : vector<32x128xf32>
      %557 = vector.broadcast %553 : vector<32x1xf32> to vector<32x128xf32>
      %558 = arith.addf %557, %556 : vector<32x128xf32>
      %cst_31 = arith.constant 0.000000e+00 : f32
      %559 = vector.broadcast %cst_31 : f32 to vector<32x128xf32>
      %560 = arith.maximumf %558, %559 : vector<32x128xf32>
      %c21 = arith.constant 21 : index
      %561 = memref.load %arg5[%c21] : memref<128xf32, #tpu.memory_space<smem>>
      %562 = vector.broadcast %561 : f32 to vector<32x128xf32>
      %563 = arith.mulf %560, %562 : vector<32x128xf32>
      %564 = arith.addf %540, %563 : vector<32x128xf32>
      %c53 = arith.constant 53 : index
      %565 = memref.load %arg5[%c53] : memref<128xf32, #tpu.memory_space<smem>>
      %566 = vector.broadcast %565 : f32 to vector<32x128xf32>
      %567 = arith.mulf %560, %566 : vector<32x128xf32>
      %568 = arith.addf %544, %567 : vector<32x128xf32>
      %c85 = arith.constant 85 : index
      %569 = memref.load %arg5[%c85] : memref<128xf32, #tpu.memory_space<smem>>
      %570 = vector.broadcast %569 : f32 to vector<32x128xf32>
      %571 = arith.mulf %560, %570 : vector<32x128xf32>
      %572 = arith.addf %548, %571 : vector<32x128xf32>
      %c117 = arith.constant 117 : index
      %573 = memref.load %arg5[%c117] : memref<128xf32, #tpu.memory_space<smem>>
      %574 = vector.broadcast %573 : f32 to vector<32x128xf32>
      %575 = arith.mulf %560, %574 : vector<32x128xf32>
      %576 = arith.addf %552, %575 : vector<32x128xf32>
      %577 = vector.extract_strided_slice %27 {offsets = [0, 22], sizes = [32, 1], strides = [1, 1]} : vector<32x32xf32> to vector<32x1xf32>
      %578 = vector.extract_strided_slice %44 {offsets = [0, 22], sizes = [32, 1], strides = [1, 1]} : vector<32x32xf32> to vector<32x1xf32>
      %579 = vector.broadcast %578 : vector<32x1xf32> to vector<32x128xf32>
      %580 = arith.mulf %8, %579 : vector<32x128xf32>
      %581 = vector.broadcast %577 : vector<32x1xf32> to vector<32x128xf32>
      %582 = arith.addf %581, %580 : vector<32x128xf32>
      %cst_32 = arith.constant 0.000000e+00 : f32
      %583 = vector.broadcast %cst_32 : f32 to vector<32x128xf32>
      %584 = arith.maximumf %582, %583 : vector<32x128xf32>
      %c22 = arith.constant 22 : index
      %585 = memref.load %arg5[%c22] : memref<128xf32, #tpu.memory_space<smem>>
      %586 = vector.broadcast %585 : f32 to vector<32x128xf32>
      %587 = arith.mulf %584, %586 : vector<32x128xf32>
      %588 = arith.addf %564, %587 : vector<32x128xf32>
      %c54 = arith.constant 54 : index
      %589 = memref.load %arg5[%c54] : memref<128xf32, #tpu.memory_space<smem>>
      %590 = vector.broadcast %589 : f32 to vector<32x128xf32>
      %591 = arith.mulf %584, %590 : vector<32x128xf32>
      %592 = arith.addf %568, %591 : vector<32x128xf32>
      %c86 = arith.constant 86 : index
      %593 = memref.load %arg5[%c86] : memref<128xf32, #tpu.memory_space<smem>>
      %594 = vector.broadcast %593 : f32 to vector<32x128xf32>
      %595 = arith.mulf %584, %594 : vector<32x128xf32>
      %596 = arith.addf %572, %595 : vector<32x128xf32>
      %c118 = arith.constant 118 : index
      %597 = memref.load %arg5[%c118] : memref<128xf32, #tpu.memory_space<smem>>
      %598 = vector.broadcast %597 : f32 to vector<32x128xf32>
      %599 = arith.mulf %584, %598 : vector<32x128xf32>
      %600 = arith.addf %576, %599 : vector<32x128xf32>
      %601 = vector.extract_strided_slice %27 {offsets = [0, 23], sizes = [32, 1], strides = [1, 1]} : vector<32x32xf32> to vector<32x1xf32>
      %602 = vector.extract_strided_slice %44 {offsets = [0, 23], sizes = [32, 1], strides = [1, 1]} : vector<32x32xf32> to vector<32x1xf32>
      %603 = vector.broadcast %602 : vector<32x1xf32> to vector<32x128xf32>
      %604 = arith.mulf %8, %603 : vector<32x128xf32>
      %605 = vector.broadcast %601 : vector<32x1xf32> to vector<32x128xf32>
      %606 = arith.addf %605, %604 : vector<32x128xf32>
      %cst_33 = arith.constant 0.000000e+00 : f32
      %607 = vector.broadcast %cst_33 : f32 to vector<32x128xf32>
      %608 = arith.maximumf %606, %607 : vector<32x128xf32>
      %c23 = arith.constant 23 : index
      %609 = memref.load %arg5[%c23] : memref<128xf32, #tpu.memory_space<smem>>
      %610 = vector.broadcast %609 : f32 to vector<32x128xf32>
      %611 = arith.mulf %608, %610 : vector<32x128xf32>
      %612 = arith.addf %588, %611 : vector<32x128xf32>
      %c55 = arith.constant 55 : index
      %613 = memref.load %arg5[%c55] : memref<128xf32, #tpu.memory_space<smem>>
      %614 = vector.broadcast %613 : f32 to vector<32x128xf32>
      %615 = arith.mulf %608, %614 : vector<32x128xf32>
      %616 = arith.addf %592, %615 : vector<32x128xf32>
      %c87 = arith.constant 87 : index
      %617 = memref.load %arg5[%c87] : memref<128xf32, #tpu.memory_space<smem>>
      %618 = vector.broadcast %617 : f32 to vector<32x128xf32>
      %619 = arith.mulf %608, %618 : vector<32x128xf32>
      %620 = arith.addf %596, %619 : vector<32x128xf32>
      %c119 = arith.constant 119 : index
      %621 = memref.load %arg5[%c119] : memref<128xf32, #tpu.memory_space<smem>>
      %622 = vector.broadcast %621 : f32 to vector<32x128xf32>
      %623 = arith.mulf %608, %622 : vector<32x128xf32>
      %624 = arith.addf %600, %623 : vector<32x128xf32>
      %625 = vector.extract_strided_slice %27 {offsets = [0, 24], sizes = [32, 1], strides = [1, 1]} : vector<32x32xf32> to vector<32x1xf32>
      %626 = vector.extract_strided_slice %44 {offsets = [0, 24], sizes = [32, 1], strides = [1, 1]} : vector<32x32xf32> to vector<32x1xf32>
      %627 = vector.broadcast %626 : vector<32x1xf32> to vector<32x128xf32>
      %628 = arith.mulf %8, %627 : vector<32x128xf32>
      %629 = vector.broadcast %625 : vector<32x1xf32> to vector<32x128xf32>
      %630 = arith.addf %629, %628 : vector<32x128xf32>
      %cst_34 = arith.constant 0.000000e+00 : f32
      %631 = vector.broadcast %cst_34 : f32 to vector<32x128xf32>
      %632 = arith.maximumf %630, %631 : vector<32x128xf32>
      %c24 = arith.constant 24 : index
      %633 = memref.load %arg5[%c24] : memref<128xf32, #tpu.memory_space<smem>>
      %634 = vector.broadcast %633 : f32 to vector<32x128xf32>
      %635 = arith.mulf %632, %634 : vector<32x128xf32>
      %636 = arith.addf %612, %635 : vector<32x128xf32>
      %c56 = arith.constant 56 : index
      %637 = memref.load %arg5[%c56] : memref<128xf32, #tpu.memory_space<smem>>
      %638 = vector.broadcast %637 : f32 to vector<32x128xf32>
      %639 = arith.mulf %632, %638 : vector<32x128xf32>
      %640 = arith.addf %616, %639 : vector<32x128xf32>
      %c88 = arith.constant 88 : index
      %641 = memref.load %arg5[%c88] : memref<128xf32, #tpu.memory_space<smem>>
      %642 = vector.broadcast %641 : f32 to vector<32x128xf32>
      %643 = arith.mulf %632, %642 : vector<32x128xf32>
      %644 = arith.addf %620, %643 : vector<32x128xf32>
      %c120 = arith.constant 120 : index
      %645 = memref.load %arg5[%c120] : memref<128xf32, #tpu.memory_space<smem>>
      %646 = vector.broadcast %645 : f32 to vector<32x128xf32>
      %647 = arith.mulf %632, %646 : vector<32x128xf32>
      %648 = arith.addf %624, %647 : vector<32x128xf32>
      %649 = vector.extract_strided_slice %27 {offsets = [0, 25], sizes = [32, 1], strides = [1, 1]} : vector<32x32xf32> to vector<32x1xf32>
      %650 = vector.extract_strided_slice %44 {offsets = [0, 25], sizes = [32, 1], strides = [1, 1]} : vector<32x32xf32> to vector<32x1xf32>
      %651 = vector.broadcast %650 : vector<32x1xf32> to vector<32x128xf32>
      %652 = arith.mulf %8, %651 : vector<32x128xf32>
      %653 = vector.broadcast %649 : vector<32x1xf32> to vector<32x128xf32>
      %654 = arith.addf %653, %652 : vector<32x128xf32>
      %cst_35 = arith.constant 0.000000e+00 : f32
      %655 = vector.broadcast %cst_35 : f32 to vector<32x128xf32>
      %656 = arith.maximumf %654, %655 : vector<32x128xf32>
      %c25 = arith.constant 25 : index
      %657 = memref.load %arg5[%c25] : memref<128xf32, #tpu.memory_space<smem>>
      %658 = vector.broadcast %657 : f32 to vector<32x128xf32>
      %659 = arith.mulf %656, %658 : vector<32x128xf32>
      %660 = arith.addf %636, %659 : vector<32x128xf32>
      %c57 = arith.constant 57 : index
      %661 = memref.load %arg5[%c57] : memref<128xf32, #tpu.memory_space<smem>>
      %662 = vector.broadcast %661 : f32 to vector<32x128xf32>
      %663 = arith.mulf %656, %662 : vector<32x128xf32>
      %664 = arith.addf %640, %663 : vector<32x128xf32>
      %c89 = arith.constant 89 : index
      %665 = memref.load %arg5[%c89] : memref<128xf32, #tpu.memory_space<smem>>
      %666 = vector.broadcast %665 : f32 to vector<32x128xf32>
      %667 = arith.mulf %656, %666 : vector<32x128xf32>
      %668 = arith.addf %644, %667 : vector<32x128xf32>
      %c121 = arith.constant 121 : index
      %669 = memref.load %arg5[%c121] : memref<128xf32, #tpu.memory_space<smem>>
      %670 = vector.broadcast %669 : f32 to vector<32x128xf32>
      %671 = arith.mulf %656, %670 : vector<32x128xf32>
      %672 = arith.addf %648, %671 : vector<32x128xf32>
      %673 = vector.extract_strided_slice %27 {offsets = [0, 26], sizes = [32, 1], strides = [1, 1]} : vector<32x32xf32> to vector<32x1xf32>
      %674 = vector.extract_strided_slice %44 {offsets = [0, 26], sizes = [32, 1], strides = [1, 1]} : vector<32x32xf32> to vector<32x1xf32>
      %675 = vector.broadcast %674 : vector<32x1xf32> to vector<32x128xf32>
      %676 = arith.mulf %8, %675 : vector<32x128xf32>
      %677 = vector.broadcast %673 : vector<32x1xf32> to vector<32x128xf32>
      %678 = arith.addf %677, %676 : vector<32x128xf32>
      %cst_36 = arith.constant 0.000000e+00 : f32
      %679 = vector.broadcast %cst_36 : f32 to vector<32x128xf32>
      %680 = arith.maximumf %678, %679 : vector<32x128xf32>
      %c26 = arith.constant 26 : index
      %681 = memref.load %arg5[%c26] : memref<128xf32, #tpu.memory_space<smem>>
      %682 = vector.broadcast %681 : f32 to vector<32x128xf32>
      %683 = arith.mulf %680, %682 : vector<32x128xf32>
      %684 = arith.addf %660, %683 : vector<32x128xf32>
      %c58 = arith.constant 58 : index
      %685 = memref.load %arg5[%c58] : memref<128xf32, #tpu.memory_space<smem>>
      %686 = vector.broadcast %685 : f32 to vector<32x128xf32>
      %687 = arith.mulf %680, %686 : vector<32x128xf32>
      %688 = arith.addf %664, %687 : vector<32x128xf32>
      %c90 = arith.constant 90 : index
      %689 = memref.load %arg5[%c90] : memref<128xf32, #tpu.memory_space<smem>>
      %690 = vector.broadcast %689 : f32 to vector<32x128xf32>
      %691 = arith.mulf %680, %690 : vector<32x128xf32>
      %692 = arith.addf %668, %691 : vector<32x128xf32>
      %c122 = arith.constant 122 : index
      %693 = memref.load %arg5[%c122] : memref<128xf32, #tpu.memory_space<smem>>
      %694 = vector.broadcast %693 : f32 to vector<32x128xf32>
      %695 = arith.mulf %680, %694 : vector<32x128xf32>
      %696 = arith.addf %672, %695 : vector<32x128xf32>
      %697 = vector.extract_strided_slice %27 {offsets = [0, 27], sizes = [32, 1], strides = [1, 1]} : vector<32x32xf32> to vector<32x1xf32>
      %698 = vector.extract_strided_slice %44 {offsets = [0, 27], sizes = [32, 1], strides = [1, 1]} : vector<32x32xf32> to vector<32x1xf32>
      %699 = vector.broadcast %698 : vector<32x1xf32> to vector<32x128xf32>
      %700 = arith.mulf %8, %699 : vector<32x128xf32>
      %701 = vector.broadcast %697 : vector<32x1xf32> to vector<32x128xf32>
      %702 = arith.addf %701, %700 : vector<32x128xf32>
      %cst_37 = arith.constant 0.000000e+00 : f32
      %703 = vector.broadcast %cst_37 : f32 to vector<32x128xf32>
      %704 = arith.maximumf %702, %703 : vector<32x128xf32>
      %c27 = arith.constant 27 : index
      %705 = memref.load %arg5[%c27] : memref<128xf32, #tpu.memory_space<smem>>
      %706 = vector.broadcast %705 : f32 to vector<32x128xf32>
      %707 = arith.mulf %704, %706 : vector<32x128xf32>
      %708 = arith.addf %684, %707 : vector<32x128xf32>
      %c59 = arith.constant 59 : index
      %709 = memref.load %arg5[%c59] : memref<128xf32, #tpu.memory_space<smem>>
      %710 = vector.broadcast %709 : f32 to vector<32x128xf32>
      %711 = arith.mulf %704, %710 : vector<32x128xf32>
      %712 = arith.addf %688, %711 : vector<32x128xf32>
      %c91 = arith.constant 91 : index
      %713 = memref.load %arg5[%c91] : memref<128xf32, #tpu.memory_space<smem>>
      %714 = vector.broadcast %713 : f32 to vector<32x128xf32>
      %715 = arith.mulf %704, %714 : vector<32x128xf32>
      %716 = arith.addf %692, %715 : vector<32x128xf32>
      %c123 = arith.constant 123 : index
      %717 = memref.load %arg5[%c123] : memref<128xf32, #tpu.memory_space<smem>>
      %718 = vector.broadcast %717 : f32 to vector<32x128xf32>
      %719 = arith.mulf %704, %718 : vector<32x128xf32>
      %720 = arith.addf %696, %719 : vector<32x128xf32>
      %721 = vector.extract_strided_slice %27 {offsets = [0, 28], sizes = [32, 1], strides = [1, 1]} : vector<32x32xf32> to vector<32x1xf32>
      %722 = vector.extract_strided_slice %44 {offsets = [0, 28], sizes = [32, 1], strides = [1, 1]} : vector<32x32xf32> to vector<32x1xf32>
      %723 = vector.broadcast %722 : vector<32x1xf32> to vector<32x128xf32>
      %724 = arith.mulf %8, %723 : vector<32x128xf32>
      %725 = vector.broadcast %721 : vector<32x1xf32> to vector<32x128xf32>
      %726 = arith.addf %725, %724 : vector<32x128xf32>
      %cst_38 = arith.constant 0.000000e+00 : f32
      %727 = vector.broadcast %cst_38 : f32 to vector<32x128xf32>
      %728 = arith.maximumf %726, %727 : vector<32x128xf32>
      %c28 = arith.constant 28 : index
      %729 = memref.load %arg5[%c28] : memref<128xf32, #tpu.memory_space<smem>>
      %730 = vector.broadcast %729 : f32 to vector<32x128xf32>
      %731 = arith.mulf %728, %730 : vector<32x128xf32>
      %732 = arith.addf %708, %731 : vector<32x128xf32>
      %c60 = arith.constant 60 : index
      %733 = memref.load %arg5[%c60] : memref<128xf32, #tpu.memory_space<smem>>
      %734 = vector.broadcast %733 : f32 to vector<32x128xf32>
      %735 = arith.mulf %728, %734 : vector<32x128xf32>
      %736 = arith.addf %712, %735 : vector<32x128xf32>
      %c92 = arith.constant 92 : index
      %737 = memref.load %arg5[%c92] : memref<128xf32, #tpu.memory_space<smem>>
      %738 = vector.broadcast %737 : f32 to vector<32x128xf32>
      %739 = arith.mulf %728, %738 : vector<32x128xf32>
      %740 = arith.addf %716, %739 : vector<32x128xf32>
      %c124 = arith.constant 124 : index
      %741 = memref.load %arg5[%c124] : memref<128xf32, #tpu.memory_space<smem>>
      %742 = vector.broadcast %741 : f32 to vector<32x128xf32>
      %743 = arith.mulf %728, %742 : vector<32x128xf32>
      %744 = arith.addf %720, %743 : vector<32x128xf32>
      %745 = vector.extract_strided_slice %27 {offsets = [0, 29], sizes = [32, 1], strides = [1, 1]} : vector<32x32xf32> to vector<32x1xf32>
      %746 = vector.extract_strided_slice %44 {offsets = [0, 29], sizes = [32, 1], strides = [1, 1]} : vector<32x32xf32> to vector<32x1xf32>
      %747 = vector.broadcast %746 : vector<32x1xf32> to vector<32x128xf32>
      %748 = arith.mulf %8, %747 : vector<32x128xf32>
      %749 = vector.broadcast %745 : vector<32x1xf32> to vector<32x128xf32>
      %750 = arith.addf %749, %748 : vector<32x128xf32>
      %cst_39 = arith.constant 0.000000e+00 : f32
      %751 = vector.broadcast %cst_39 : f32 to vector<32x128xf32>
      %752 = arith.maximumf %750, %751 : vector<32x128xf32>
      %c29 = arith.constant 29 : index
      %753 = memref.load %arg5[%c29] : memref<128xf32, #tpu.memory_space<smem>>
      %754 = vector.broadcast %753 : f32 to vector<32x128xf32>
      %755 = arith.mulf %752, %754 : vector<32x128xf32>
      %756 = arith.addf %732, %755 : vector<32x128xf32>
      %c61 = arith.constant 61 : index
      %757 = memref.load %arg5[%c61] : memref<128xf32, #tpu.memory_space<smem>>
      %758 = vector.broadcast %757 : f32 to vector<32x128xf32>
      %759 = arith.mulf %752, %758 : vector<32x128xf32>
      %760 = arith.addf %736, %759 : vector<32x128xf32>
      %c93 = arith.constant 93 : index
      %761 = memref.load %arg5[%c93] : memref<128xf32, #tpu.memory_space<smem>>
      %762 = vector.broadcast %761 : f32 to vector<32x128xf32>
      %763 = arith.mulf %752, %762 : vector<32x128xf32>
      %764 = arith.addf %740, %763 : vector<32x128xf32>
      %c125 = arith.constant 125 : index
      %765 = memref.load %arg5[%c125] : memref<128xf32, #tpu.memory_space<smem>>
      %766 = vector.broadcast %765 : f32 to vector<32x128xf32>
      %767 = arith.mulf %752, %766 : vector<32x128xf32>
      %768 = arith.addf %744, %767 : vector<32x128xf32>
      %769 = vector.extract_strided_slice %27 {offsets = [0, 30], sizes = [32, 1], strides = [1, 1]} : vector<32x32xf32> to vector<32x1xf32>
      %770 = vector.extract_strided_slice %44 {offsets = [0, 30], sizes = [32, 1], strides = [1, 1]} : vector<32x32xf32> to vector<32x1xf32>
      %771 = vector.broadcast %770 : vector<32x1xf32> to vector<32x128xf32>
      %772 = arith.mulf %8, %771 : vector<32x128xf32>
      %773 = vector.broadcast %769 : vector<32x1xf32> to vector<32x128xf32>
      %774 = arith.addf %773, %772 : vector<32x128xf32>
      %cst_40 = arith.constant 0.000000e+00 : f32
      %775 = vector.broadcast %cst_40 : f32 to vector<32x128xf32>
      %776 = arith.maximumf %774, %775 : vector<32x128xf32>
      %c30 = arith.constant 30 : index
      %777 = memref.load %arg5[%c30] : memref<128xf32, #tpu.memory_space<smem>>
      %778 = vector.broadcast %777 : f32 to vector<32x128xf32>
      %779 = arith.mulf %776, %778 : vector<32x128xf32>
      %780 = arith.addf %756, %779 : vector<32x128xf32>
      %c62 = arith.constant 62 : index
      %781 = memref.load %arg5[%c62] : memref<128xf32, #tpu.memory_space<smem>>
      %782 = vector.broadcast %781 : f32 to vector<32x128xf32>
      %783 = arith.mulf %776, %782 : vector<32x128xf32>
      %784 = arith.addf %760, %783 : vector<32x128xf32>
      %c94 = arith.constant 94 : index
      %785 = memref.load %arg5[%c94] : memref<128xf32, #tpu.memory_space<smem>>
      %786 = vector.broadcast %785 : f32 to vector<32x128xf32>
      %787 = arith.mulf %776, %786 : vector<32x128xf32>
      %788 = arith.addf %764, %787 : vector<32x128xf32>
      %c126 = arith.constant 126 : index
      %789 = memref.load %arg5[%c126] : memref<128xf32, #tpu.memory_space<smem>>
      %790 = vector.broadcast %789 : f32 to vector<32x128xf32>
      %791 = arith.mulf %776, %790 : vector<32x128xf32>
      %792 = arith.addf %768, %791 : vector<32x128xf32>
      %793 = vector.extract_strided_slice %27 {offsets = [0, 31], sizes = [32, 1], strides = [1, 1]} : vector<32x32xf32> to vector<32x1xf32>
      %794 = vector.extract_strided_slice %44 {offsets = [0, 31], sizes = [32, 1], strides = [1, 1]} : vector<32x32xf32> to vector<32x1xf32>
      %795 = vector.broadcast %794 : vector<32x1xf32> to vector<32x128xf32>
      %796 = arith.mulf %8, %795 : vector<32x128xf32>
      %797 = vector.broadcast %793 : vector<32x1xf32> to vector<32x128xf32>
      %798 = arith.addf %797, %796 : vector<32x128xf32>
      %cst_41 = arith.constant 0.000000e+00 : f32
      %799 = vector.broadcast %cst_41 : f32 to vector<32x128xf32>
      %800 = arith.maximumf %798, %799 : vector<32x128xf32>
      %c31 = arith.constant 31 : index
      %801 = memref.load %arg5[%c31] : memref<128xf32, #tpu.memory_space<smem>>
      %802 = vector.broadcast %801 : f32 to vector<32x128xf32>
      %803 = arith.mulf %800, %802 : vector<32x128xf32>
      %804 = arith.addf %780, %803 : vector<32x128xf32>
      %c63 = arith.constant 63 : index
      %805 = memref.load %arg5[%c63] : memref<128xf32, #tpu.memory_space<smem>>
      %806 = vector.broadcast %805 : f32 to vector<32x128xf32>
      %807 = arith.mulf %800, %806 : vector<32x128xf32>
      %808 = arith.addf %784, %807 : vector<32x128xf32>
      %c95 = arith.constant 95 : index
      %809 = memref.load %arg5[%c95] : memref<128xf32, #tpu.memory_space<smem>>
      %810 = vector.broadcast %809 : f32 to vector<32x128xf32>
      %811 = arith.mulf %800, %810 : vector<32x128xf32>
      %812 = arith.addf %788, %811 : vector<32x128xf32>
      %c127 = arith.constant 127 : index
      %813 = memref.load %arg5[%c127] : memref<128xf32, #tpu.memory_space<smem>>
      %814 = vector.broadcast %813 : f32 to vector<32x128xf32>
      %815 = arith.mulf %800, %814 : vector<32x128xf32>
      %816 = arith.addf %792, %815 : vector<32x128xf32>
      %c3_42 = arith.constant 3 : index
      %817 = memref.load %arg6[%c3_42] : memref<4xf32, #tpu.memory_space<smem>>
      %818 = vector.broadcast %817 : f32 to vector<32x128xf32>
      %819 = arith.addf %816, %818 : vector<32x128xf32>
      %cst_43 = arith.constant 0.000000e+00 : f32
      %820 = vector.broadcast %cst_43 : f32 to vector<32x128xf32>
      %821 = arith.maximumf %819, %820 : vector<32x128xf32>
      %822 = vector.extract_strided_slice %6 {offsets = [0, 7], sizes = [32, 1], strides = [1, 1]} : vector<32x8xf32> to vector<32x1xf32>
      %823 = vector.extract_strided_slice %8 {offsets = [0, 1], sizes = [32, 127], strides = [1, 1]} : vector<32x128xf32> to vector<32x127xf32>
      %824 = vector.extract_strided_slice %8 {offsets = [0, 0], sizes = [32, 127], strides = [1, 1]} : vector<32x128xf32> to vector<32x127xf32>
      %825 = arith.subf %823, %824 : vector<32x127xf32>
      %826 = vector.extract_strided_slice %8 {offsets = [0, 127], sizes = [32, 1], strides = [1, 1]} : vector<32x128xf32> to vector<32x1xf32>
      %827 = arith.subf %822, %826 : vector<32x1xf32>
      %828 = tpu.concatenate %825, %827 in 1 : vector<32x127xf32>, vector<32x1xf32> -> vector<32x128xf32>
      %cst_44 = arith.constant 0.000000e+00 : f32
      %829 = vector.broadcast %cst_44 : f32 to vector<32x128xf32>
      %830 = arith.subf %829, %828 : vector<32x128xf32>
      %831 = arith.mulf %830, %821 : vector<32x128xf32>
      %832 = math.exp %831 : vector<32x128xf32>
      %cst_45 = arith.constant 1.000000e+00 : f32
      %833 = vector.broadcast %cst_45 : f32 to vector<32x128xf32>
      %834 = arith.subf %833, %832 : vector<32x128xf32>
      %cst_46 = arith.constant -23.0258503 : f32
      %835 = vector.broadcast %cst_46 : f32 to vector<32x128xf32>
      %836 = arith.maximumf %831, %835 : vector<32x128xf32>
      %cst_47 = arith.constant 0.000000e+00 : f32
      %837 = vector.broadcast %cst_47 : f32 to vector<32x1xf32>
      %838 = vector.extract_strided_slice %836 {offsets = [0, 0], sizes = [32, 127], strides = [1, 1]} : vector<32x128xf32> to vector<32x127xf32>
      %839 = tpu.concatenate %837, %838 in 1 : vector<32x1xf32>, vector<32x127xf32> -> vector<32x128xf32>
      %840 = arith.addf %836, %839 : vector<32x128xf32>
      %cst_48 = arith.constant 0.000000e+00 : f32
      %841 = vector.broadcast %cst_48 : f32 to vector<32x2xf32>
      %842 = vector.extract_strided_slice %840 {offsets = [0, 0], sizes = [32, 126], strides = [1, 1]} : vector<32x128xf32> to vector<32x126xf32>
      %843 = tpu.concatenate %841, %842 in 1 : vector<32x2xf32>, vector<32x126xf32> -> vector<32x128xf32>
      %844 = arith.addf %840, %843 : vector<32x128xf32>
      %cst_49 = arith.constant 0.000000e+00 : f32
      %845 = vector.broadcast %cst_49 : f32 to vector<32x4xf32>
      %846 = vector.extract_strided_slice %844 {offsets = [0, 0], sizes = [32, 124], strides = [1, 1]} : vector<32x128xf32> to vector<32x124xf32>
      %847 = tpu.concatenate %845, %846 in 1 : vector<32x4xf32>, vector<32x124xf32> -> vector<32x128xf32>
      %848 = arith.addf %844, %847 : vector<32x128xf32>
      %cst_50 = arith.constant 0.000000e+00 : f32
      %849 = vector.broadcast %cst_50 : f32 to vector<32x8xf32>
      %850 = vector.extract_strided_slice %848 {offsets = [0, 0], sizes = [32, 120], strides = [1, 1]} : vector<32x128xf32> to vector<32x120xf32>
      %851 = tpu.concatenate %849, %850 in 1 : vector<32x8xf32>, vector<32x120xf32> -> vector<32x128xf32>
      %852 = arith.addf %848, %851 : vector<32x128xf32>
      %cst_51 = arith.constant 0.000000e+00 : f32
      %853 = vector.broadcast %cst_51 : f32 to vector<32x16xf32>
      %854 = vector.extract_strided_slice %852 {offsets = [0, 0], sizes = [32, 112], strides = [1, 1]} : vector<32x128xf32> to vector<32x112xf32>
      %855 = tpu.concatenate %853, %854 in 1 : vector<32x16xf32>, vector<32x112xf32> -> vector<32x128xf32>
      %856 = arith.addf %852, %855 : vector<32x128xf32>
      %cst_52 = arith.constant 0.000000e+00 : f32
      %857 = vector.broadcast %cst_52 : f32 to vector<32x32xf32>
      %858 = vector.extract_strided_slice %856 {offsets = [0, 0], sizes = [32, 96], strides = [1, 1]} : vector<32x128xf32> to vector<32x96xf32>
      %859 = tpu.concatenate %857, %858 in 1 : vector<32x32xf32>, vector<32x96xf32> -> vector<32x128xf32>
      %860 = arith.addf %856, %859 : vector<32x128xf32>
      %cst_53 = arith.constant 0.000000e+00 : f32
      %861 = vector.broadcast %cst_53 : f32 to vector<32x64xf32>
      %862 = vector.extract_strided_slice %860 {offsets = [0, 0], sizes = [32, 64], strides = [1, 1]} : vector<32x128xf32> to vector<32x64xf32>
      %863 = tpu.concatenate %861, %862 in 1 : vector<32x64xf32>, vector<32x64xf32> -> vector<32x128xf32>
      %864 = arith.addf %860, %863 : vector<32x128xf32>
      %865 = arith.subf %864, %836 : vector<32x128xf32>
      %866 = math.exp %865 : vector<32x128xf32>
      %867 = arith.mulf %834, %866 : vector<32x128xf32>
      %868 = arith.index_cast %4 : i32 to index
      %c0_54 = arith.constant 0 : index
      %869 = vector.load %arg7[%868, %c0_54] : memref<512x128xf32, #tpu.memory_space<vmem>>, vector<32x128xf32>
      tpu.vector_store %arg7[%868, %c0_54], %867 {strides = array<i32>} : memref<512x128xf32, #tpu.memory_space<vmem>>, vector<32x128xf32>,
      %cst_55 = arith.constant dense<0.000000e+00> : vector<32xf32>
      %870 = vector.multi_reduction <add>, %867, %cst_55 [1] : vector<32x128xf32> to vector<32xf32>
      %871 = vector.shape_cast %870 : vector<32xf32> to vector<32x1xf32>
      %872 = arith.mulf %867, %804 : vector<32x128xf32>
      %cst_56 = arith.constant dense<0.000000e+00> : vector<32xf32>
      %873 = vector.multi_reduction <add>, %872, %cst_56 [1] : vector<32x128xf32> to vector<32xf32>
      %874 = vector.shape_cast %873 : vector<32xf32> to vector<32x1xf32>
      %c0_57 = arith.constant 0 : index
      %875 = memref.load %arg6[%c0_57] : memref<4xf32, #tpu.memory_space<smem>>
      %876 = vector.broadcast %875 : f32 to vector<32x1xf32>
      %877 = arith.mulf %876, %871 : vector<32x1xf32>
      %878 = arith.addf %874, %877 : vector<32x1xf32>
      %879 = arith.mulf %867, %808 : vector<32x128xf32>
      %cst_58 = arith.constant dense<0.000000e+00> : vector<32xf32>
      %880 = vector.multi_reduction <add>, %879, %cst_58 [1] : vector<32x128xf32> to vector<32xf32>
      %881 = vector.shape_cast %880 : vector<32xf32> to vector<32x1xf32>
      %c1_59 = arith.constant 1 : index
      %882 = memref.load %arg6[%c1_59] : memref<4xf32, #tpu.memory_space<smem>>
      %883 = vector.broadcast %882 : f32 to vector<32x1xf32>
      %884 = arith.mulf %883, %871 : vector<32x1xf32>
      %885 = arith.addf %881, %884 : vector<32x1xf32>
      %886 = arith.mulf %867, %812 : vector<32x128xf32>
      %cst_60 = arith.constant dense<0.000000e+00> : vector<32xf32>
      %887 = vector.multi_reduction <add>, %886, %cst_60 [1] : vector<32x128xf32> to vector<32xf32>
      %888 = vector.shape_cast %887 : vector<32xf32> to vector<32x1xf32>
      %c2_61 = arith.constant 2 : index
      %889 = memref.load %arg6[%c2_61] : memref<4xf32, #tpu.memory_space<smem>>
      %890 = vector.broadcast %889 : f32 to vector<32x1xf32>
      %891 = arith.mulf %890, %871 : vector<32x1xf32>
      %892 = arith.addf %888, %891 : vector<32x1xf32>
      %893 = arith.mulf %867, %8 : vector<32x128xf32>
      %cst_62 = arith.constant dense<0.000000e+00> : vector<32xf32>
      %894 = vector.multi_reduction <add>, %893, %cst_62 [1] : vector<32x128xf32> to vector<32xf32>
      %895 = vector.shape_cast %894 : vector<32xf32> to vector<32x1xf32>
      %896 = tpu.concatenate %878, %885, %892, %895 in 1 : vector<32x1xf32>, vector<32x1xf32>, vector<32x1xf32>, vector<32x1xf32> -> vector<32x4xf32>
      %897 = arith.index_cast %4 : i32 to index
      %c0_63 = arith.constant 0 : index
      %898 = vector.load %arg8[%897, %c0_63] : memref<512x4xf32, #tpu.memory_space<vmem>>, vector<32x4xf32>
      tpu.vector_store %arg8[%897, %c0_63], %896 {strides = array<i32>} : memref<512x4xf32, #tpu.memory_space<vmem>>, vector<32x4xf32>,
    }
    %c16_i32_3 = arith.constant 16 : i32
    return
  }
  func.func @transform_0(%arg0: i32) -> (i32, i32) {
    %c0_i32 = arith.constant 0 : i32
    %c0_i32_0 = arith.constant 0 : i32
    return %arg0, %c0_i32 : i32, i32
  }
  func.func @transform_1(%arg0: i32) -> (i32, i32) {
    %c0_i32 = arith.constant 0 : i32
    %c0_i32_0 = arith.constant 0 : i32
    return %arg0, %c0_i32 : i32, i32
  }
  func.func @transform_2(%arg0: i32) -> (i32, i32) {
    %c0_i32 = arith.constant 0 : i32
    %c0_i32_0 = arith.constant 0 : i32
    %c0_i32_1 = arith.constant 0 : i32
    return %c0_i32, %c0_i32_0 : i32, i32
  }
  func.func @transform_3(%arg0: i32) -> (i32, i32) {
    %c0_i32 = arith.constant 0 : i32
    %c0_i32_0 = arith.constant 0 : i32
    %c0_i32_1 = arith.constant 0 : i32
    return %c0_i32, %c0_i32_0 : i32, i32
  }
  func.func @transform_4(%arg0: i32) -> i32 {
    %c0_i32 = arith.constant 0 : i32
    %c0_i32_0 = arith.constant 0 : i32
    return %c0_i32 : i32
  }
  func.func @transform_5(%arg0: i32) -> i32 {
    %c0_i32 = arith.constant 0 : i32
    %c0_i32_0 = arith.constant 0 : i32
    return %c0_i32 : i32
  }
  func.func @transform_6(%arg0: i32) -> (i32, i32) {
    %c0_i32 = arith.constant 0 : i32
    %c0_i32_0 = arith.constant 0 : i32
    return %arg0, %c0_i32 : i32, i32
  }
  func.func @transform_7(%arg0: i32) -> (i32, i32) {
    %c0_i32 = arith.constant 0 : i32
    %c0_i32_0 = arith.constant 0 : i32
    return %arg0, %c0_i32 : i32, i32
  }
}

</mosaic_0001>

<llo_original>
// kernel: squeeze.5
$region0: #{squeeze.5}
  %s0 = inlined_call_operand.vmem [shape: f32[1024], index: 0, kind: input, shape index: {}]
  %s1 = inlined_call_operand.hbm [shape: f32[2,512], index: 1, kind: output, shape index: {}]
  $region1: #{squeeze.5} parent=0
    #allocation0 [shape = 'u8[4096]{0}', space=vmem, size = 0x1000, scoped, tag = 'operand span for operand 1']
    #allocation1 [shape = 's32[1]{0}', space=sflag, size = 0x4, scoped, tag = 'scoped memory for squeeze.5']
    #allocation2 [shape = 'u8[16384]{0}', space=vmem, size = 0x4000, scoped, tag = 'scoped mem for output reshape']
    %2 = vsyncpa [#allocation1], 0
    %v3 = vld [vmem:[%s0] sm:$0xff]
    %4 = vst [vmem:[#allocation2] ss:$8 sm:$0xf] %v3
    %s5 = scalar_lea.vmem [#allocation2], 4294967265
    %6 = vst [vmem:[%s5] ss:$8 sm:$0xf0] %v3
    %s8 = sshllo.u32 0, 2
    %v10 = vld [vmem:[#allocation2] sm:%s8]
    %s11 = sshllo.u32 0, 2
    %12 = vst [vmem:[#allocation0] sm:%s11] %v10
    %s13 = scalar_lea.vmem [#allocation2], 8
    %v14 = vld [vmem:[%s13] sm:%s8]
    %s15 = sshllo.u32 0, 2
    %s16 = scalar_lea.vmem [#allocation0], 2
    %17 = vst [vmem:[%s16] sm:%s15] %v14
    %s18 = scalar_lea.vmem [#allocation2], 16
    %v19 = vld [vmem:[%s18] sm:%s8]
    %s20 = sshllo.u32 0, 2
    %s21 = smul.addr 2, 2
    %s22 = scalar_lea.vmem [#allocation0], %s21
    %23 = vst [vmem:[%s22] sm:%s20] %v19
    %s24 = scalar_lea.vmem [#allocation2], 24
    %v25 = vld [vmem:[%s24] sm:%s8]
    %s26 = sshllo.u32 0, 2
    %s27 = smul.addr 2, 3
    %s28 = scalar_lea.vmem [#allocation0], %s27
    %29 = vst [vmem:[%s28] sm:%s26] %v25
    %s31 = ssub.s32 128, 128
    %32 = vsyncadd [#allocation1], %s31
    %s34 = sshll.u32 [#allocation0], 4
    %s35 = int_to_ptr.vmem [resolvable:$true] %s34
    %37 = dma.vmem_to_hbm [thread:$0]  %s35, 128, %s1, [#allocation1]
    %38 = dma.done [#allocation1], 128
    %39 = vsyncpa [#allocation1], 1

// kernel: _lambda_.1
$region0: #{_lambda_.1}
  #allocation0 [shape = 'u32[]', space=smem, size = 0x4, offset = 0x4, fixed_abs, tag = 'smem constant byte address 0x4 - core index']
  #allocation1 [shape = 'u32[144,128]{1,0:T(1,128)}', space=vmem, size = 0x12000, scoped, tag = 'internal scratch']
  %s0 = inlined_call_operand.vmem [shape: f32[1024,8], index: 0, kind: input, shape index: {}]
  %s1 = inlined_call_operand.vmem [shape: f32[1024,128], index: 1, kind: input, shape index: {}]
  %s2 = inlined_call_operand.vmem [shape: f32[3,32], index: 2, kind: input, shape index: {}]
  %s3 = inlined_call_operand.vmem [shape: f32[1,32], index: 3, kind: input, shape index: {}]
  %s4 = inlined_call_operand.vmem [shape: f32[128], index: 4, kind: input, shape index: {}]
  %s5 = inlined_call_operand.vmem [shape: f32[4], index: 5, kind: input, shape index: {}]
  %s6 = inlined_call_operand.hbm [shape: f32[1024,128], index: 6, kind: output, shape index: {0}]
  %s7 = inlined_call_operand.vmem [shape: f32[1024,4], index: 7, kind: output, shape index: {1}]
  %8 = xla_tuple %s6, %s7
  %s9 = sld [smem:[#allocation0]]
  $region80: #{_lambda_.1} parent=0
    _
  %s11 = ssub.s32 1, %s9
  %s12 = scalar_select 0, %s11, %s9
  $region1: #{_lambda_.1} parent=0
    #allocation2 [shape = 'u8[512]{0}', space=smem, size = 0x200, scoped, tag = 'input window, operand 4, single buffered']
    #allocation3 [shape = 's32[2]{0}', space=sflag, size = 0x8, scoped, tag = 'scoped memory for _lambda_.1']
    #allocation4 [shape = 's32[2]{0}', space=sflag, size = 0x8, scoped, tag = 'scoped memory for _lambda_.1']
    #allocation5 [shape = 'u8[512]{0}', space=smem, size = 0x200, scoped, tag = 'input window, operand 5, single buffered']
    #allocation6 [shape = 's32[1]{0}', space=sflag, size = 0x4, scoped, tag = 'scoped memory for _lambda_.1']
    #allocation7 [shape = 'u8[524288]{0}', space=vmem, size = 0x80000, scoped, tag = 'output window, operand 0']
    %13 = vsyncpa [#allocation4], 0
    %14 = vsyncpa [#allocation6], 0
    %15 = vsyncpa [#allocation3], 0
    %s16 = scalar_lea.sflag [#allocation3], 1
    %17 = vsyncpa %s16, 0
    loop: start=0, step=1, limit=4
    $region2: #{_lambda_.1} parent=1 // loop_pre_header
      _
    $region3: #{_lambda_.1} parent=1 // loop_header
      %s19 = sphi 0, %s23
      %p20 = scmp.ge.s32.totalorder %s19, 4
      %s29 = sphi 0, %s31
      %s32 = sphi 0, %s29
      %s33 = sphi 0, %s32
      %s49 = sphi 0, %s33
      %s55 = sphi 0, %s57
      %s58 = sphi 0, %s55
      %s59 = sphi 0, %s58
      %s75 = sphi 0, %s59
      %s79 = sphi 0, %s79
      %s81 = sphi 0, %s79
      %s82 = sphi 0, %s81
      %s96 = sphi 0, %s82
      %s100 = sphi 0, %s100
      %s102 = sphi 0, %s100
      %s103 = sphi 0, %s102
      %s117 = sphi 0, %s103
      %s121 = sphi 0, %s121
      %s123 = sphi 0, %s121
      %s124 = sphi 0, %s123
      %s138 = sphi 0, %s124
      %s142 = sphi 0, %s142
      %s144 = sphi 0, %s142
      %s145 = sphi 0, %s144
      %s159 = sphi 0, %s145
      %s165 = sphi 0, %s167
      %s168 = sphi 0, %s165
      %s169 = sphi 0, %s168
      %s185 = sphi 0, %s169
      %s191 = sphi 0, %s193
      %s194 = sphi 0, %s191
      %s195 = sphi 0, %s194
      %s211 = sphi 0, %s195
    $region4: #{_lambda_.1} parent=1 // loop_header_branch
      %22 = sbr.rel (%p20) target = $region8
    $region5: #{_lambda_.1} parent=1 // loop_body
      %s24 = ssub.s32 %s19, 1
      %s25 = ssub.s32 %s19, 2
      %s26 = sadd.s32 %s19, 1
      %s27 = ssub.s32 %s19, %s26
      %p28 = scmp.eq.s32.totalorder %s27, 0
      %s30 = sadd.s32 %s29, 1
      %s31 = scalar_select %p28, %s29, %s30
      %p34 = pneg %p28
      %p35 = scmp.eq.s32.totalorder %s19, 1
      %p36 = por %p34, %p35
      %p37 = scmp.ne.s32.totalorder %s29, %s32
      %p38 = scmp.eq.s32.totalorder %s19, 0
      %p39 = por %p37, %p38
      %p40 = scmp.ne.s32.totalorder %s29, %s32
      %p41 = scmp.eq.s32.totalorder %s24, 1
      %p42 = por %p40, %p41
      %p43 = scmp.ne.s32.totalorder %s32, %s33
      %p44 = scmp.eq.s32.totalorder %s24, 0
      %p45 = por %p43, %p44
      %p46 = scmp.ne.s32.totalorder %s32, %s33
      %p47 = scmp.eq.s32.totalorder %s25, 1
      %p48 = por %p46, %p47
      %p50 = scmp.ne.s32.totalorder %s33, %s49
      %p51 = scmp.eq.s32.totalorder %s25, 0
      %p52 = por %p50, %p51
      %s53 = ssub.s32 %s19, %s26
      %p54 = scmp.eq.s32.totalorder %s53, 0
      %s56 = sadd.s32 %s55, 1
      %s57 = scalar_select %p54, %s55, %s56
      %p60 = pneg %p54
      %p61 = scmp.eq.s32.totalorder %s19, 1
      %p62 = por %p60, %p61
      %p63 = scmp.ne.s32.totalorder %s55, %s58
      %p64 = scmp.eq.s32.totalorder %s19, 0
      %p65 = por %p63, %p64
      %p66 = scmp.ne.s32.totalorder %s55, %s58
      %p67 = scmp.eq.s32.totalorder %s24, 1
      %p68 = por %p66, %p67
      %p69 = scmp.ne.s32.totalorder %s58, %s59
      %p70 = scmp.eq.s32.totalorder %s24, 0
      %p71 = por %p69, %p70
      %p72 = scmp.ne.s32.totalorder %s58, %s59
      %p73 = scmp.eq.s32.totalorder %s25, 1
      %p74 = por %p72, %p73
      %p76 = scmp.ne.s32.totalorder %s59, %s75
      %p77 = scmp.eq.s32.totalorder %s25, 0
      %p78 = por %p76, %p77
      %s80 = sadd.s32 %s79, 1
      %p83 = scmp.eq.s32.totalorder %s19, 1
      %p84 = scmp.ne.s32.totalorder %s79, %s81
      %p85 = scmp.eq.s32.totalorder %s19, 0
      %p86 = por %p84, %p85
      %p87 = scmp.ne.s32.totalorder %s79, %s81
      %p88 = scmp.eq.s32.totalorder %s24, 1
      %p89 = por %p87, %p88
      %p90 = scmp.ne.s32.totalorder %s81, %s82
      %p91 = scmp.eq.s32.totalorder %s24, 0
      %p92 = por %p90, %p91
      %p93 = scmp.ne.s32.totalorder %s81, %s82
      %p94 = scmp.eq.s32.totalorder %s25, 1
      %p95 = por %p93, %p94
      %p97 = scmp.ne.s32.totalorder %s82, %s96
      %p98 = scmp.eq.s32.totalorder %s25, 0
      %p99 = por %p97, %p98
      %s101 = sadd.s32 %s100, 1
      %p104 = scmp.eq.s32.totalorder %s19, 1
      %p105 = scmp.ne.s32.totalorder %s100, %s102
      %p106 = scmp.eq.s32.totalorder %s19, 0
      %p107 = por %p105, %p106
      %p108 = scmp.ne.s32.totalorder %s100, %s102
      %p109 = scmp.eq.s32.totalorder %s24, 1
      %p110 = por %p108, %p109
      %p111 = scmp.ne.s32.totalorder %s102, %s103
      %p112 = scmp.eq.s32.totalorder %s24, 0
      %p113 = por %p111, %p112
      %p114 = scmp.ne.s32.totalorder %s102, %s103
      %p115 = scmp.eq.s32.totalorder %s25, 1
      %p116 = por %p114, %p115
      %p118 = scmp.ne.s32.totalorder %s103, %s117
      %p119 = scmp.eq.s32.totalorder %s25, 0
      %p120 = por %p118, %p119
      %s122 = sadd.s32 %s121, 1
      %p125 = scmp.eq.s32.totalorder %s19, 1
      %p126 = scmp.ne.s32.totalorder %s121, %s123
      %p127 = scmp.eq.s32.totalorder %s19, 0
      %p128 = por %p126, %p127
      %p129 = scmp.ne.s32.totalorder %s121, %s123
      %p130 = scmp.eq.s32.totalorder %s24, 1
      %p131 = por %p129, %p130
      %p132 = scmp.ne.s32.totalorder %s123, %s124
      %p133 = scmp.eq.s32.totalorder %s24, 0
      %p134 = por %p132, %p133
      %p135 = scmp.ne.s32.totalorder %s123, %s124
      %p136 = scmp.eq.s32.totalorder %s25, 1
      %p137 = por %p135, %p136
      %p139 = scmp.ne.s32.totalorder %s124, %s138
      %p140 = scmp.eq.s32.totalorder %s25, 0
      %p141 = por %p139, %p140
      %s143 = sadd.s32 %s142, 1
      %p146 = scmp.eq.s32.totalorder %s19, 1
      %p147 = scmp.ne.s32.totalorder %s142, %s144
      %p148 = scmp.eq.s32.totalorder %s19, 0
      %p149 = por %p147, %p148
      %p150 = scmp.ne.s32.totalorder %s142, %s144
      %p151 = scmp.eq.s32.totalorder %s24, 1
      %p152 = por %p150, %p151
      %p153 = scmp.ne.s32.totalorder %s144, %s145
      %p154 = scmp.eq.s32.totalorder %s24, 0
      %p155 = por %p153, %p154
      %p156 = scmp.ne.s32.totalorder %s144, %s145
      %p157 = scmp.eq.s32.totalorder %s25, 1
      %p158 = por %p156, %p157
      %p160 = scmp.ne.s32.totalorder %s145, %s159
      %p161 = scmp.eq.s32.totalorder %s25, 0
      %p162 = por %p160, %p161
      %s163 = ssub.s32 %s19, %s26
      %p164 = scmp.eq.s32.totalorder %s163, 0
      %s166 = sadd.s32 %s165, 1
      %s167 = scalar_select %p164, %s165, %s166
      %p170 = pneg %p164
      %p171 = scmp.eq.s32.totalorder %s19, 1
      %p172 = por %p170, %p171
      %p173 = scmp.ne.s32.totalorder %s165, %s168
      %p174 = scmp.eq.s32.totalorder %s19, 0
      %p175 = por %p173, %p174
      %p176 = scmp.ne.s32.totalorder %s165, %s168
      %p177 = scmp.eq.s32.totalorder %s24, 1
      %p178 = por %p176, %p177
      %p179 = scmp.ne.s32.totalorder %s168, %s169
      %p180 = scmp.eq.s32.totalorder %s24, 0
      %p181 = por %p179, %p180
      %p182 = scmp.ne.s32.totalorder %s168, %s169
      %p183 = scmp.eq.s32.totalorder %s25, 1
      %p184 = por %p182, %p183
      %p186 = scmp.ne.s32.totalorder %s169, %s185
      %p187 = scmp.eq.s32.totalorder %s25, 0
      %p188 = por %p186, %p187
      %s189 = ssub.s32 %s19, %s26
      %p190 = scmp.eq.s32.totalorder %s189, 0
      %s192 = sadd.s32 %s191, 1
      %s193 = scalar_select %p190, %s191, %s192
      %p196 = pneg %p190
      %p197 = scmp.eq.s32.totalorder %s19, 1
      %p198 = por %p196, %p197
      %p199 = scmp.ne.s32.totalorder %s191, %s194
      %p200 = scmp.eq.s32.totalorder %s19, 0
      %p201 = por %p199, %p200
      %p202 = scmp.ne.s32.totalorder %s191, %s194
      %p203 = scmp.eq.s32.totalorder %s24, 1
      %p204 = por %p202, %p203
      %p205 = scmp.ne.s32.totalorder %s194, %s195
      %p206 = scmp.eq.s32.totalorder %s24, 0
      %p207 = por %p205, %p206
      %p208 = scmp.ne.s32.totalorder %s194, %s195
      %p209 = scmp.eq.s32.totalorder %s25, 1
      %p210 = por %p208, %p209
      %p212 = scmp.ne.s32.totalorder %s195, %s211
      %p213 = scmp.eq.s32.totalorder %s25, 0
      %p214 = por %p212, %p213
      %p215 = scmp.le.s32.totalorder 1, %s19
      %p216 = scmp.lt.s32.totalorder %s19, 3
      %p217 = pnand %p215, %p216
      %p218 = pneg %p217
      // Predicated region
      $region9: #{_lambda_.1} parent=5 // pred_check
        _
      $region10: #{_lambda_.1} parent=5 // pred_check_branch
        %220 = sbr.rel (%p217) target = $region12
      $region11: #{_lambda_.1} parent=5 // pred_region
        %s221 = ssub.s32 %s19, 1
        // Predicated region
        $region13: #{_lambda_.1} parent=11 // pred_check
          %p222 = pneg %p92
        $region14: #{_lambda_.1} parent=11 // pred_check_branch
          %224 = sbr.rel (%p222) target = $region16
        $region15: #{_lambda_.1} parent=11 // pred_region
          _
        $region16: #{_lambda_.1} parent=11 // pred_fallthru
          _
        // Predicated region
        $region17: #{_lambda_.1} parent=11 // pred_check
          %p225 = pneg %p113
        $region18: #{_lambda_.1} parent=11 // pred_check_branch
          %227 = sbr.rel (%p225) target = $region20
        $region19: #{_lambda_.1} parent=11 // pred_region
          _
        $region20: #{_lambda_.1} parent=11 // pred_fallthru
          _
        // Predicated region
        $region21: #{_lambda_.1} parent=11 // pred_check
          %p228 = pneg %p134
        $region22: #{_lambda_.1} parent=11 // pred_check_branch
          %230 = sbr.rel (%p228) target = $region24
        $region23: #{_lambda_.1} parent=11 // pred_region
          %s232 = ssub.s32 16, 16
          %233 = vsyncadd [#allocation4], %s232
          %s235 = sshll.u32 %s4, 4
          %s236 = int_to_ptr.vmem [resolvable:$true] %s235
          %238 = dma.vmem_to_smem %s236, 16, [#allocation2], [#allocation4]
        $region24: #{_lambda_.1} parent=11 // pred_fallthru
          _
        // Predicated region
        $region25: #{_lambda_.1} parent=11 // pred_check
          %p239 = pneg %p155
        $region26: #{_lambda_.1} parent=11 // pred_check_branch
          %241 = sbr.rel (%p239) target = $region28
        $region27: #{_lambda_.1} parent=11 // pred_region
          %s243 = ssub.s32 16, 16
          %244 = vsyncadd [#allocation6], %s243
          %s246 = sshll.u32 %s5, 4
          %s247 = int_to_ptr.vmem [resolvable:$true] %s246
          %249 = dma.vmem_to_smem %s247, 16, [#allocation5], [#allocation6]
        $region28: #{_lambda_.1} parent=11 // pred_fallthru
          _
      $region12: #{_lambda_.1} parent=5 // pred_fallthru
        _
      %p250 = scmp.lt.s32.totalorder %s19, 2
      // Predicated region
      $region29: #{_lambda_.1} parent=5 // pred_check
        %p251 = pneg %p250
      $region30: #{_lambda_.1} parent=5 // pred_check_branch
        %253 = sbr.rel (%p251) target = $region32
      $region31: #{_lambda_.1} parent=5 // pred_region
        // Predicated region
        $region33: #{_lambda_.1} parent=31 // pred_check
          %p254 = pneg %p39
        $region34: #{_lambda_.1} parent=31 // pred_check_branch
          %256 = sbr.rel (%p254) target = $region36
        $region35: #{_lambda_.1} parent=31 // pred_region
          %s257 = smul.u32 64, %s19
          %p258 = scmp.lt.s32.totalorder %s257, 127
          %s259 = scalar_select %p258, %s257, 127
          %s260 = smul.addr %s259, 8
          %s261 = scalar_lea.vmem %s0, %s260
          %s262 = smul.u32 64, %s19
        $region36: #{_lambda_.1} parent=31 // pred_fallthru
          _
        // Predicated region
        $region37: #{_lambda_.1} parent=31 // pred_check
          %p263 = pneg %p65
        $region38: #{_lambda_.1} parent=31 // pred_check_branch
          %265 = sbr.rel (%p263) target = $region40
        $region39: #{_lambda_.1} parent=31 // pred_region
          %s266 = smul.u32 64, %s19
          %p267 = scmp.lt.s32.totalorder %s266, 127
          %s268 = scalar_select %p267, %s266, 127
          %s269 = smul.addr %s268, 8
          %s270 = scalar_lea.vmem %s1, %s269
          %s271 = smul.u32 64, %s19
        $region40: #{_lambda_.1} parent=31 // pred_fallthru
          _
      $region32: #{_lambda_.1} parent=5 // pred_fallthru
        _
      %p272 = scmp.le.s32.totalorder 1, %s19
      %p273 = scmp.lt.s32.totalorder %s19, 3
      %p274 = pnand %p272, %p273
      %p275 = pneg %p274
      // Predicated region
      $region41: #{_lambda_.1} parent=5 // pred_check
        _
      $region42: #{_lambda_.1} parent=5 // pred_check_branch
        %277 = sbr.rel (%p274) target = $region44
      $region43: #{_lambda_.1} parent=5 // pred_region
        %s278 = ssub.s32 %s19, 1
        // Predicated region
        $region45: #{_lambda_.1} parent=43 // pred_check
          %p279 = pneg %p134
        $region46: #{_lambda_.1} parent=43 // pred_check_branch
          %281 = sbr.rel (%p279) target = $region48
        $region47: #{_lambda_.1} parent=43 // pred_region
          %282 = dma.done [#allocation4], 16
        $region48: #{_lambda_.1} parent=43 // pred_fallthru
          _
        // Predicated region
        $region49: #{_lambda_.1} parent=43 // pred_check
          %p283 = pneg %p155
        $region50: #{_lambda_.1} parent=43 // pred_check_branch
          %285 = sbr.rel (%p283) target = $region52
        $region51: #{_lambda_.1} parent=43 // pred_region
          %286 = dma.done [#allocation6], 16
        $region52: #{_lambda_.1} parent=43 // pred_fallthru
          _
        %287 = sfence
        %s288 = smul.u32 64, %s24
        %p289 = scmp.lt.s32.totalorder %s288, 127
        %s290 = scalar_select %p289, %s288, 127
        %s291 = smul.addr %s290, 8
        %s292 = scalar_lea.vmem %s0, %s291
        %p293 = pneg %p45
        %p294 = pneg %p42
        %s295 = smul.u32 64, %s24
        %p296 = scmp.lt.s32.totalorder %s295, 127
        %s297 = scalar_select %p296, %s295, 127
        %s298 = smul.addr %s297, 8
        %s299 = scalar_lea.vmem %s1, %s298
        %p300 = pneg %p71
        %p301 = pneg %p68
        %p302 = pneg %p92
        %p303 = pneg %p89
        %p304 = pneg %p113
        %p305 = pneg %p110
        %p306 = pneg %p134
        %p307 = pneg %p131
        %p308 = pneg %p155
        %p309 = pneg %p152
        %p310 = pneg %p181
        %p311 = pneg %p178
        %s312 = sand.u32 %s168, 1
        %s313 = scalar_lea.sflag [#allocation3], %s312
        %s314 = sand.u32 %s168, 1
        %s315 = smul.addr %s314, 512
        %s316 = scalar_lea.vmem [#allocation7], %s315
        %p317 = pneg %p207
        %p318 = pneg %p204
        %s319 = smul.u32 64, %s24
        %p320 = scmp.lt.s32.totalorder %s319, 127
        %s321 = scalar_select %p320, %s319, 127
        %s322 = smul.addr %s321, 8
        %s323 = scalar_lea.vmem %s7, %s322
        %s324 = smul.u32 64, %s24
        %p325 = scmp.lt.s32.totalorder %s324, 127
        %s326 = scalar_select %p325, %s324, 127
        %s327 = smul.addr %s326, 8
        %s328 = scalar_lea.vmem %s0, %s327
        %s329 = smul.u32 64, %s24
        %s330 = smul.u32 64, %s24
        %p331 = scmp.lt.s32.totalorder %s330, 127
        %s332 = scalar_select %p331, %s330, 127
        %s333 = smul.addr %s332, 8
        %s334 = scalar_lea.vmem %s1, %s333
        %s335 = smul.u32 64, %s24
        %s336 = smul.u32 64, %s24
        %s337 = smul.u32 64, %s24
        %p338 = scmp.lt.s32.totalorder %s337, 127
        %s339 = scalar_select %p338, %s337, 127
        %s340 = smul.addr %s339, 8
        %s341 = scalar_lea.vmem %s7, %s340
        %s342 = smul.u32 64, %s24
        %v343 = vld [vmem:[%s2] sm:$0x7]
        %v344 = vld [vmem:[%s3] sm:$0x1]
        loop: start=0, step=1, limit=16
        $region53: #{_lambda_.1} parent=43 // loop_pre_header
          _
        $region54: #{_lambda_.1} parent=43 // loop_header
          %s346 = sphi 0, %s350
          %p347 = scmp.ge.s32.totalorder %s346, 16
        $region55: #{_lambda_.1} parent=43 // loop_header_branch
          %349 = sbr.rel (%p347) target = $region59
        $region56: #{_lambda_.1} parent=43 // loop_body
          %s351 = smul.u32 %s346, 32
          %s352 = scalar_lea.vmem %s328, %s351
          %v353 = vld [vmem:[%s352] sm:$0xff]
          %v354 = vld [vmem:[%s352 + $0x8] sm:$0xff]
          %v355 = vld [vmem:[%s352 + $0x10] sm:$0xff]
          %v356 = vld [vmem:[%s352 + $0x18] sm:$0xff]
          %s357 = scalar_lea.vmem %s334, %s351
          %v358 = vld [vmem:[%s357] sm:$0xff]
          %v359 = vld [vmem:[%s357 + $0x8] sm:$0xff]
          %v360 = vld [vmem:[%s357 + $0x10] sm:$0xff]
          %v361 = vld [vmem:[%s357 + $0x18] sm:$0xff]
          %363 = vset.pattern.permute.xlu0 0
          %364 = vperm.xlu0 %363, %v353
          %v365 = vpop.permute.xlu0 %364
          %368 = vset.pattern.permute.xlu0 0
          %369 = vperm.xlu0 %368, %v354
          %v370 = vpop.permute.xlu0 %369
          %373 = vset.pattern.permute.xlu0 0
          %374 = vperm.xlu0 %373, %v355
          %v375 = vpop.permute.xlu0 %374
          %378 = vset.pattern.permute.xlu0 0
          %379 = vperm.xlu0 %378, %v356
          %v380 = vpop.permute.xlu0 %379
          %v382 = vlaneseq
          %v383 = vshrl.u32 %v382, 7
          %v384 = vsub.s32 0, %v383
          %v385 = vrot.slane %v343, %v384
          %v386 = vmul.f32 %v365, %v385
          %v387 = vmul.f32 %v370, %v385
          %v388 = vmul.f32 %v375, %v385
          %v389 = vmul.f32 %v380, %v385
          %390 = vset.pattern.permute.xlu0 1
          %391 = vperm.xlu0 %390, %v353
          %v392 = vpop.permute.xlu0 %391
          %394 = vset.pattern.permute.xlu0 1
          %395 = vperm.xlu0 %394, %v354
          %v396 = vpop.permute.xlu0 %395
          %398 = vset.pattern.permute.xlu0 1
          %399 = vperm.xlu0 %398, %v355
          %v400 = vpop.permute.xlu0 %399
          %402 = vset.pattern.permute.xlu0 1
          %403 = vperm.xlu0 %402, %v356
          %v404 = vpop.permute.xlu0 %403
          %v406 = vlaneseq
          %v407 = vshrl.u32 %v406, 7
          %v408 = vsub.s32 1, %v407
          %v409 = vrot.slane %v343, %v408
          %v410 = vmul.f32 %v392, %v409
          %v411 = vmul.f32 %v396, %v409
          %v412 = vmul.f32 %v400, %v409
          %v413 = vmul.f32 %v404, %v409
          %v414 = vadd.f32 %v386, %v410
          %v415 = vadd.f32 %v387, %v411
          %v416 = vadd.f32 %v388, %v412
          %v417 = vadd.f32 %v389, %v413
          %418 = vset.pattern.permute.xlu0 2
          %419 = vperm.xlu0 %418, %v353
          %v420 = vpop.permute.xlu0 %419
          %422 = vset.pattern.permute.xlu0 2
          %423 = vperm.xlu0 %422, %v354
          %v424 = vpop.permute.xlu0 %423
          %426 = vset.pattern.permute.xlu0 2
          %427 = vperm.xlu0 %426, %v355
          %v428 = vpop.permute.xlu0 %427
          %430 = vset.pattern.permute.xlu0 2
          %431 = vperm.xlu0 %430, %v356
          %v432 = vpop.permute.xlu0 %431
          %v434 = vlaneseq
          %v435 = vshrl.u32 %v434, 7
          %v436 = vsub.s32 2, %v435
          %v437 = vrot.slane %v343, %v436
          %v438 = vmul.f32 %v420, %v437
          %v439 = vmul.f32 %v424, %v437
          %v440 = vmul.f32 %v428, %v437
          %v441 = vmul.f32 %v432, %v437
          %v442 = vadd.f32 %v414, %v438
          %v443 = vadd.f32 %v415, %v439
          %v444 = vadd.f32 %v416, %v440
          %v445 = vadd.f32 %v417, %v441
          %v447 = vlaneseq
          %v448 = vshrl.u32 %v447, 7
          %v449 = vsub.s32 0, %v448
          %v450 = vrot.slane %v344, %v449
          %v452 = vadd.f32 %v442, %v450
          %v453 = vadd.f32 %v443, %v450
          %v454 = vadd.f32 %v444, %v450
          %v455 = vadd.f32 %v445, %v450
          %456 = vset.pattern.permute.xlu0 3
          %457 = vperm.xlu0 %456, %v353
          %v458 = vpop.permute.xlu0 %457
          %460 = vset.pattern.permute.xlu0 3
          %461 = vperm.xlu0 %460, %v354
          %v462 = vpop.permute.xlu0 %461
          %464 = vset.pattern.permute.xlu0 3
          %465 = vperm.xlu0 %464, %v355
          %v466 = vpop.permute.xlu0 %465
          %468 = vset.pattern.permute.xlu0 3
          %469 = vperm.xlu0 %468, %v356
          %v470 = vpop.permute.xlu0 %469
          %v472 = vmul.f32 %v458, %v385
          %v473 = vmul.f32 %v462, %v385
          %v474 = vmul.f32 %v466, %v385
          %v475 = vmul.f32 %v470, %v385
          %476 = vset.pattern.permute.xlu0 4
          %477 = vperm.xlu0 %476, %v353
          %v478 = vpop.permute.xlu0 %477
          %480 = vset.pattern.permute.xlu0 4
          %481 = vperm.xlu0 %480, %v354
          %v482 = vpop.permute.xlu0 %481
          %484 = vset.pattern.permute.xlu0 4
          %485 = vperm.xlu0 %484, %v355
          %v486 = vpop.permute.xlu0 %485
          %488 = vset.pattern.permute.xlu0 4
          %489 = vperm.xlu0 %488, %v356
          %v490 = vpop.permute.xlu0 %489
          %v492 = vmul.f32 %v478, %v409
          %v493 = vmul.f32 %v482, %v409
          %v494 = vmul.f32 %v486, %v409
          %v495 = vmul.f32 %v490, %v409
          %v496 = vadd.f32 %v472, %v492
          %v497 = vadd.f32 %v473, %v493
          %v498 = vadd.f32 %v474, %v494
          %v499 = vadd.f32 %v475, %v495
          %500 = vset.pattern.permute.xlu0 5
          %501 = vperm.xlu0 %500, %v353
          %v502 = vpop.permute.xlu0 %501
          %504 = vset.pattern.permute.xlu0 5
          %505 = vperm.xlu0 %504, %v354
          %v506 = vpop.permute.xlu0 %505
          %508 = vset.pattern.permute.xlu0 5
          %509 = vperm.xlu0 %508, %v355
          %v510 = vpop.permute.xlu0 %509
          %512 = vset.pattern.permute.xlu0 5
          %513 = vperm.xlu0 %512, %v356
          %v514 = vpop.permute.xlu0 %513
          %v516 = vmul.f32 %v502, %v437
          %v517 = vmul.f32 %v506, %v437
          %v518 = vmul.f32 %v510, %v437
          %v519 = vmul.f32 %v514, %v437
          %v520 = vadd.f32 %v496, %v516
          %v521 = vadd.f32 %v497, %v517
          %v522 = vadd.f32 %v498, %v518
          %v523 = vadd.f32 %v499, %v519
          %525 = vset.pattern.permute.xlu0 0
          %526 = vperm.xlu0 %525, %v520
          %v527 = vpop.permute.xlu0 %526
          %530 = vset.pattern.permute.xlu0 0
          %531 = vperm.xlu0 %530, %v521
          %v532 = vpop.permute.xlu0 %531
          %535 = vset.pattern.permute.xlu0 0
          %536 = vperm.xlu0 %535, %v522
          %v537 = vpop.permute.xlu0 %536
          %540 = vset.pattern.permute.xlu0 0
          %541 = vperm.xlu0 %540, %v523
          %v542 = vpop.permute.xlu0 %541
          %v544 = vmul.f32 %v358, %v527
          %v545 = vmul.f32 %v359, %v532
          %v546 = vmul.f32 %v360, %v537
          %v547 = vmul.f32 %v361, %v542
          %549 = vset.pattern.permute.xlu0 0
          %550 = vperm.xlu0 %549, %v452
          %v551 = vpop.permute.xlu0 %550
          %554 = vset.pattern.permute.xlu0 0
          %555 = vperm.xlu0 %554, %v453
          %v556 = vpop.permute.xlu0 %555
          %559 = vset.pattern.permute.xlu0 0
          %560 = vperm.xlu0 %559, %v454
          %v561 = vpop.permute.xlu0 %560
          %564 = vset.pattern.permute.xlu0 0
          %565 = vperm.xlu0 %564, %v455
          %v566 = vpop.permute.xlu0 %565
          %v568 = vadd.f32 %v551, %v544
          %v569 = vadd.f32 %v556, %v545
          %v570 = vadd.f32 %v561, %v546
          %v571 = vadd.f32 %v566, %v547
          %v572 = vmax.f32 %v568, 0.0
          %v573 = vmax.f32 %v569, 0.0
          %v574 = vmax.f32 %v570, 0.0
          %v575 = vmax.f32 %v571, 0.0
          %s576 = sld [smem:[#allocation2]]
          %v577 = vstv %s576
          %v578 = vmul.f32 %v572, %v577
          %v579 = vmul.f32 %v573, %v577
          %v580 = vmul.f32 %v574, %v577
          %v581 = vmul.f32 %v575, %v577
          %v582 = vadd.f32 %v578, 0.0
          %v583 = vadd.f32 %v579, 0.0
          %v584 = vadd.f32 %v580, 0.0
          %v585 = vadd.f32 %v581, 0.0
          %s586 = sld [smem:[#allocation2 + $0x20]]
          %v587 = vstv %s586
          %v588 = vmul.f32 %v572, %v587
          %v589 = vmul.f32 %v573, %v587
          %v590 = vmul.f32 %v574, %v587
          %v591 = vmul.f32 %v575, %v587
          %v592 = vadd.f32 %v588, 0.0
          %v593 = vadd.f32 %v589, 0.0
          %v594 = vadd.f32 %v590, 0.0
          %v595 = vadd.f32 %v591, 0.0
          %s596 = sld [smem:[#allocation2 + $0x40]]
          %v597 = vstv %s596
          %v598 = vmul.f32 %v572, %v597
          %v599 = vmul.f32 %v573, %v597
          %v600 = vmul.f32 %v574, %v597
          %v601 = vmul.f32 %v575, %v597
          %v602 = vadd.f32 %v598, 0.0
          %v603 = vadd.f32 %v599, 0.0
          %v604 = vadd.f32 %v600, 0.0
          %v605 = vadd.f32 %v601, 0.0
          %s606 = sld [smem:[#allocation2 + $0x60]]
          %v607 = vstv %s606
          %v608 = vmul.f32 %v572, %v607
          %v609 = vmul.f32 %v573, %v607
          %v610 = vmul.f32 %v574, %v607
          %v611 = vmul.f32 %v575, %v607
          %v612 = vadd.f32 %v608, 0.0
          %v613 = vadd.f32 %v609, 0.0
          %v614 = vadd.f32 %v610, 0.0
          %v615 = vadd.f32 %v611, 0.0
          %616 = vset.pattern.permute.xlu0 1
          %617 = vperm.xlu0 %616, %v520
          %v618 = vpop.permute.xlu0 %617
          %620 = vset.pattern.permute.xlu0 1
          %621 = vperm.xlu0 %620, %v521
          %v622 = vpop.permute.xlu0 %621
          %624 = vset.pattern.permute.xlu0 1
          %625 = vperm.xlu0 %624, %v522
          %v626 = vpop.permute.xlu0 %625
          %628 = vset.pattern.permute.xlu0 1
          %629 = vperm.xlu0 %628, %v523
          %v630 = vpop.permute.xlu0 %629
          %v632 = vmul.f32 %v358, %v618
          %v633 = vmul.f32 %v359, %v622
          %v634 = vmul.f32 %v360, %v626
          %v635 = vmul.f32 %v361, %v630
          %636 = vset.pattern.permute.xlu0 1
          %637 = vperm.xlu0 %636, %v452
          %v638 = vpop.permute.xlu0 %637
          %640 = vset.pattern.permute.xlu0 1
          %641 = vperm.xlu0 %640, %v453
          %v642 = vpop.permute.xlu0 %641
          %644 = vset.pattern.permute.xlu0 1
          %645 = vperm.xlu0 %644, %v454
          %v646 = vpop.permute.xlu0 %645
          %648 = vset.pattern.permute.xlu0 1
          %649 = vperm.xlu0 %648, %v455
          %v650 = vpop.permute.xlu0 %649
          %v652 = vadd.f32 %v638, %v632
          %v653 = vadd.f32 %v642, %v633
          %v654 = vadd.f32 %v646, %v634
          %v655 = vadd.f32 %v650, %v635
          %v656 = vmax.f32 %v652, 0.0
          %v657 = vmax.f32 %v653, 0.0
          %v658 = vmax.f32 %v654, 0.0
          %v659 = vmax.f32 %v655, 0.0
          %s660 = sld [smem:[#allocation2 + $0x1]]
          %v661 = vstv %s660
          %v662 = vmul.f32 %v656, %v661
          %v663 = vmul.f32 %v657, %v661
          %v664 = vmul.f32 %v658, %v661
          %v665 = vmul.f32 %v659, %v661
          %v666 = vadd.f32 %v582, %v662
          %v667 = vadd.f32 %v583, %v663
          %v668 = vadd.f32 %v584, %v664
          %v669 = vadd.f32 %v585, %v665
          %s670 = sld [smem:[#allocation2 + $0x21]]
          %v671 = vstv %s670
          %v672 = vmul.f32 %v656, %v671
          %v673 = vmul.f32 %v657, %v671
          %v674 = vmul.f32 %v658, %v671
          %v675 = vmul.f32 %v659, %v671
          %v676 = vadd.f32 %v592, %v672
          %v677 = vadd.f32 %v593, %v673
          %v678 = vadd.f32 %v594, %v674
          %v679 = vadd.f32 %v595, %v675
          %s680 = sld [smem:[#allocation2 + $0x41]]
          %v681 = vstv %s680
          %v682 = vmul.f32 %v656, %v681
          %v683 = vmul.f32 %v657, %v681
          %v684 = vmul.f32 %v658, %v681
          %v685 = vmul.f32 %v659, %v681
          %v686 = vadd.f32 %v602, %v682
          %v687 = vadd.f32 %v603, %v683
          %v688 = vadd.f32 %v604, %v684
          %v689 = vadd.f32 %v605, %v685
          %s690 = sld [smem:[#allocation2 + $0x61]]
          %v691 = vstv %s690
          %v692 = vmul.f32 %v656, %v691
          %v693 = vmul.f32 %v657, %v691
          %v694 = vmul.f32 %v658, %v691
          %v695 = vmul.f32 %v659, %v691
          %v696 = vadd.f32 %v612, %v692
          %v697 = vadd.f32 %v613, %v693
          %v698 = vadd.f32 %v614, %v694
          %v699 = vadd.f32 %v615, %v695
          %700 = vset.pattern.permute.xlu0 2
          %701 = vperm.xlu0 %700, %v520
          %v702 = vpop.permute.xlu0 %701
          %704 = vset.pattern.permute.xlu0 2
          %705 = vperm.xlu0 %704, %v521
          %v706 = vpop.permute.xlu0 %705
          %708 = vset.pattern.permute.xlu0 2
          %709 = vperm.xlu0 %708, %v522
          %v710 = vpop.permute.xlu0 %709
          %712 = vset.pattern.permute.xlu0 2
          %713 = vperm.xlu0 %712, %v523
          %v714 = vpop.permute.xlu0 %713
          %v716 = vmul.f32 %v358, %v702
          %v717 = vmul.f32 %v359, %v706
          %v718 = vmul.f32 %v360, %v710
          %v719 = vmul.f32 %v361, %v714
          %720 = vset.pattern.permute.xlu0 2
          %721 = vperm.xlu0 %720, %v452
          %v722 = vpop.permute.xlu0 %721
          %724 = vset.pattern.permute.xlu0 2
          %725 = vperm.xlu0 %724, %v453
          %v726 = vpop.permute.xlu0 %725
          %728 = vset.pattern.permute.xlu0 2
          %729 = vperm.xlu0 %728, %v454
          %v730 = vpop.permute.xlu0 %729
          %732 = vset.pattern.permute.xlu0 2
          %733 = vperm.xlu0 %732, %v455
          %v734 = vpop.permute.xlu0 %733
          %v736 = vadd.f32 %v722, %v716
          %v737 = vadd.f32 %v726, %v717
          %v738 = vadd.f32 %v730, %v718
          %v739 = vadd.f32 %v734, %v719
          %v740 = vmax.f32 %v736, 0.0
          %v741 = vmax.f32 %v737, 0.0
          %v742 = vmax.f32 %v738, 0.0
          %v743 = vmax.f32 %v739, 0.0
          %s744 = sld [smem:[#allocation2 + $0x2]]
          %v745 = vstv %s744
          %v746 = vmul.f32 %v740, %v745
          %v747 = vmul.f32 %v741, %v745
          %v748 = vmul.f32 %v742, %v745
          %v749 = vmul.f32 %v743, %v745
          %v750 = vadd.f32 %v666, %v746
          %v751 = vadd.f32 %v667, %v747
          %v752 = vadd.f32 %v668, %v748
          %v753 = vadd.f32 %v669, %v749
          %s754 = sld [smem:[#allocation2 + $0x22]]
          %v755 = vstv %s754
          %v756 = vmul.f32 %v740, %v755
          %v757 = vmul.f32 %v741, %v755
          %v758 = vmul.f32 %v742, %v755
          %v759 = vmul.f32 %v743, %v755
          %v760 = vadd.f32 %v676, %v756
          %v761 = vadd.f32 %v677, %v757
          %v762 = vadd.f32 %v678, %v758
          %v763 = vadd.f32 %v679, %v759
          %s764 = sld [smem:[#allocation2 + $0x42]]
          %v765 = vstv %s764
          %v766 = vmul.f32 %v740, %v765
          %v767 = vmul.f32 %v741, %v765
          %v768 = vmul.f32 %v742, %v765
          %v769 = vmul.f32 %v743, %v765
          %v770 = vadd.f32 %v686, %v766
          %v771 = vadd.f32 %v687, %v767
          %v772 = vadd.f32 %v688, %v768
          %v773 = vadd.f32 %v689, %v769
          %s774 = sld [smem:[#allocation2 + $0x62]]
          %v775 = vstv %s774
          %v776 = vmul.f32 %v740, %v775
          %v777 = vmul.f32 %v741, %v775
          %v778 = vmul.f32 %v742, %v775
          %v779 = vmul.f32 %v743, %v775
          %v780 = vadd.f32 %v696, %v776
          %v781 = vadd.f32 %v697, %v777
          %v782 = vadd.f32 %v698, %v778
          %v783 = vadd.f32 %v699, %v779
          %784 = vset.pattern.permute.xlu0 3
          %785 = vperm.xlu0 %784, %v520
          %v786 = vpop.permute.xlu0 %785
          %788 = vset.pattern.permute.xlu0 3
          %789 = vperm.xlu0 %788, %v521
          %v790 = vpop.permute.xlu0 %789
          %792 = vset.pattern.permute.xlu0 3
          %793 = vperm.xlu0 %792, %v522
          %v794 = vpop.permute.xlu0 %793
          %796 = vset.pattern.permute.xlu0 3
          %797 = vperm.xlu0 %796, %v523
          %v798 = vpop.permute.xlu0 %797
          %v800 = vmul.f32 %v358, %v786
          %v801 = vmul.f32 %v359, %v790
          %v802 = vmul.f32 %v360, %v794
          %v803 = vmul.f32 %v361, %v798
          %804 = vset.pattern.permute.xlu0 3
          %805 = vperm.xlu0 %804, %v452
          %v806 = vpop.permute.xlu0 %805
          %808 = vset.pattern.permute.xlu0 3
          %809 = vperm.xlu0 %808, %v453
          %v810 = vpop.permute.xlu0 %809
          %812 = vset.pattern.permute.xlu0 3
          %813 = vperm.xlu0 %812, %v454
          %v814 = vpop.permute.xlu0 %813
          %816 = vset.pattern.permute.xlu0 3
          %817 = vperm.xlu0 %816, %v455
          %v818 = vpop.permute.xlu0 %817
          %v820 = vadd.f32 %v806, %v800
          %v821 = vadd.f32 %v810, %v801
          %v822 = vadd.f32 %v814, %v802
          %v823 = vadd.f32 %v818, %v803
          %v824 = vmax.f32 %v820, 0.0
          %v825 = vmax.f32 %v821, 0.0
          %v826 = vmax.f32 %v822, 0.0
          %v827 = vmax.f32 %v823, 0.0
          %s828 = sld [smem:[#allocation2 + $0x3]]
          %v829 = vstv %s828
          %v830 = vmul.f32 %v824, %v829
          %v831 = vmul.f32 %v825, %v829
          %v832 = vmul.f32 %v826, %v829
          %v833 = vmul.f32 %v827, %v829
          %v834 = vadd.f32 %v750, %v830
          %v835 = vadd.f32 %v751, %v831
          %v836 = vadd.f32 %v752, %v832
          %v837 = vadd.f32 %v753, %v833
          %s838 = sld [smem:[#allocation2 + $0x23]]
          %v839 = vstv %s838
          %v840 = vmul.f32 %v824, %v839
          %v841 = vmul.f32 %v825, %v839
          %v842 = vmul.f32 %v826, %v839
          %v843 = vmul.f32 %v827, %v839
          %v844 = vadd.f32 %v760, %v840
          %v845 = vadd.f32 %v761, %v841
          %v846 = vadd.f32 %v762, %v842
          %v847 = vadd.f32 %v763, %v843
          %s848 = sld [smem:[#allocation2 + $0x43]]
          %v849 = vstv %s848
          %v850 = vmul.f32 %v824, %v849
          %v851 = vmul.f32 %v825, %v849
          %v852 = vmul.f32 %v826, %v849
          %v853 = vmul.f32 %v827, %v849
          %v854 = vadd.f32 %v770, %v850
          %v855 = vadd.f32 %v771, %v851
          %v856 = vadd.f32 %v772, %v852
          %v857 = vadd.f32 %v773, %v853
          %s858 = sld [smem:[#allocation2 + $0x63]]
          %v859 = vstv %s858
          %v860 = vmul.f32 %v824, %v859
          %v861 = vmul.f32 %v825, %v859
          %v862 = vmul.f32 %v826, %v859
          %v863 = vmul.f32 %v827, %v859
          %v864 = vadd.f32 %v780, %v860
          %v865 = vadd.f32 %v781, %v861
          %v866 = vadd.f32 %v782, %v862
          %v867 = vadd.f32 %v783, %v863
          %868 = vset.pattern.permute.xlu0 4
          %869 = vperm.xlu0 %868, %v520
          %v870 = vpop.permute.xlu0 %869
          %872 = vset.pattern.permute.xlu0 4
          %873 = vperm.xlu0 %872, %v521
          %v874 = vpop.permute.xlu0 %873
          %876 = vset.pattern.permute.xlu0 4
          %877 = vperm.xlu0 %876, %v522
          %v878 = vpop.permute.xlu0 %877
          %880 = vset.pattern.permute.xlu0 4
          %881 = vperm.xlu0 %880, %v523
          %v882 = vpop.permute.xlu0 %881
          %v884 = vmul.f32 %v358, %v870
          %v885 = vmul.f32 %v359, %v874
          %v886 = vmul.f32 %v360, %v878
          %v887 = vmul.f32 %v361, %v882
          %888 = vset.pattern.permute.xlu0 4
          %889 = vperm.xlu0 %888, %v452
          %v890 = vpop.permute.xlu0 %889
          %892 = vset.pattern.permute.xlu0 4
          %893 = vperm.xlu0 %892, %v453
          %v894 = vpop.permute.xlu0 %893
          %896 = vset.pattern.permute.xlu0 4
          %897 = vperm.xlu0 %896, %v454
          %v898 = vpop.permute.xlu0 %897
          %900 = vset.pattern.permute.xlu0 4
          %901 = vperm.xlu0 %900, %v455
          %v902 = vpop.permute.xlu0 %901
          %v904 = vadd.f32 %v890, %v884
          %v905 = vadd.f32 %v894, %v885
          %v906 = vadd.f32 %v898, %v886
          %v907 = vadd.f32 %v902, %v887
          %v908 = vmax.f32 %v904, 0.0
          %v909 = vmax.f32 %v905, 0.0
          %v910 = vmax.f32 %v906, 0.0
          %v911 = vmax.f32 %v907, 0.0
          %s912 = sld [smem:[#allocation2 + $0x4]]
          %v913 = vstv %s912
          %v914 = vmul.f32 %v908, %v913
          %v915 = vmul.f32 %v909, %v913
          %v916 = vmul.f32 %v910, %v913
          %v917 = vmul.f32 %v911, %v913
          %v918 = vadd.f32 %v834, %v914
          %v919 = vadd.f32 %v835, %v915
          %v920 = vadd.f32 %v836, %v916
          %v921 = vadd.f32 %v837, %v917
          %s922 = sld [smem:[#allocation2 + $0x24]]
          %v923 = vstv %s922
          %v924 = vmul.f32 %v908, %v923
          %v925 = vmul.f32 %v909, %v923
          %v926 = vmul.f32 %v910, %v923
          %v927 = vmul.f32 %v911, %v923
          %v928 = vadd.f32 %v844, %v924
          %v929 = vadd.f32 %v845, %v925
          %v930 = vadd.f32 %v846, %v926
          %v931 = vadd.f32 %v847, %v927
          %s932 = sld [smem:[#allocation2 + $0x44]]
          %v933 = vstv %s932
          %v934 = vmul.f32 %v908, %v933
          %v935 = vmul.f32 %v909, %v933
          %v936 = vmul.f32 %v910, %v933
          %v937 = vmul.f32 %v911, %v933
          %v938 = vadd.f32 %v854, %v934
          %v939 = vadd.f32 %v855, %v935
          %v940 = vadd.f32 %v856, %v936
          %v941 = vadd.f32 %v857, %v937
          %s942 = sld [smem:[#allocation2 + $0x64]]
          %v943 = vstv %s942
          %v944 = vmul.f32 %v908, %v943
          %v945 = vmul.f32 %v909, %v943
          %v946 = vmul.f32 %v910, %v943
          %v947 = vmul.f32 %v911, %v943
          %v948 = vadd.f32 %v864, %v944
          %v949 = vadd.f32 %v865, %v945
          %v950 = vadd.f32 %v866, %v946
          %v951 = vadd.f32 %v867, %v947
          %952 = vset.pattern.permute.xlu0 5
          %953 = vperm.xlu0 %952, %v520
          %v954 = vpop.permute.xlu0 %953
          %956 = vset.pattern.permute.xlu0 5
          %957 = vperm.xlu0 %956, %v521
          %v958 = vpop.permute.xlu0 %957
          %960 = vset.pattern.permute.xlu0 5
          %961 = vperm.xlu0 %960, %v522
          %v962 = vpop.permute.xlu0 %961
          %964 = vset.pattern.permute.xlu0 5
          %965 = vperm.xlu0 %964, %v523
          %v966 = vpop.permute.xlu0 %965
          %v968 = vmul.f32 %v358, %v954
          %v969 = vmul.f32 %v359, %v958
          %v970 = vmul.f32 %v360, %v962
          %v971 = vmul.f32 %v361, %v966
          %972 = vset.pattern.permute.xlu0 5
          %973 = vperm.xlu0 %972, %v452
          %v974 = vpop.permute.xlu0 %973
          %976 = vset.pattern.permute.xlu0 5
          %977 = vperm.xlu0 %976, %v453
          %v978 = vpop.permute.xlu0 %977
          %980 = vset.pattern.permute.xlu0 5
          %981 = vperm.xlu0 %980, %v454
          %v982 = vpop.permute.xlu0 %981
          %984 = vset.pattern.permute.xlu0 5
          %985 = vperm.xlu0 %984, %v455
          %v986 = vpop.permute.xlu0 %985
          %v988 = vadd.f32 %v974, %v968
          %v989 = vadd.f32 %v978, %v969
          %v990 = vadd.f32 %v982, %v970
          %v991 = vadd.f32 %v986, %v971
          %v992 = vmax.f32 %v988, 0.0
          %v993 = vmax.f32 %v989, 0.0
          %v994 = vmax.f32 %v990, 0.0
          %v995 = vmax.f32 %v991, 0.0
          %s996 = sld [smem:[#allocation2 + $0x5]]
          %v997 = vstv %s996
          %v998 = vmul.f32 %v992, %v997
          %v999 = vmul.f32 %v993, %v997
          %v1000 = vmul.f32 %v994, %v997
          %v1001 = vmul.f32 %v995, %v997
          %v1002 = vadd.f32 %v918, %v998
          %v1003 = vadd.f32 %v919, %v999
          %v1004 = vadd.f32 %v920, %v1000
          %v1005 = vadd.f32 %v921, %v1001
          %s1006 = sld [smem:[#allocation2 + $0x25]]
          %v1007 = vstv %s1006
          %v1008 = vmul.f32 %v992, %v1007
          %v1009 = vmul.f32 %v993, %v1007
          %v1010 = vmul.f32 %v994, %v1007
          %v1011 = vmul.f32 %v995, %v1007
          %v1012 = vadd.f32 %v928, %v1008
          %v1013 = vadd.f32 %v929, %v1009
          %v1014 = vadd.f32 %v930, %v1010
          %v1015 = vadd.f32 %v931, %v1011
          %s1016 = sld [smem:[#allocation2 + $0x45]]
          %v1017 = vstv %s1016
          %v1018 = vmul.f32 %v992, %v1017
          %v1019 = vmul.f32 %v993, %v1017
          %v1020 = vmul.f32 %v994, %v1017
          %v1021 = vmul.f32 %v995, %v1017
          %v1022 = vadd.f32 %v938, %v1018
          %v1023 = vadd.f32 %v939, %v1019
          %v1024 = vadd.f32 %v940, %v1020
          %v1025 = vadd.f32 %v941, %v1021
          %s1026 = sld [smem:[#allocation2 + $0x65]]
          %v1027 = vstv %s1026
          %v1028 = vmul.f32 %v992, %v1027
          %v1029 = vmul.f32 %v993, %v1027
          %v1030 = vmul.f32 %v994, %v1027
          %v1031 = vmul.f32 %v995, %v1027
          %v1032 = vadd.f32 %v948, %v1028
          %v1033 = vadd.f32 %v949, %v1029
          %v1034 = vadd.f32 %v950, %v1030
          %v1035 = vadd.f32 %v951, %v1031
          %1036 = vset.pattern.permute.xlu0 6
          %1037 = vperm.xlu0 %1036, %v520
          %v1038 = vpop.permute.xlu0 %1037
          %1040 = vset.pattern.permute.xlu0 6
          %1041 = vperm.xlu0 %1040, %v521
          %v1042 = vpop.permute.xlu0 %1041
          %1044 = vset.pattern.permute.xlu0 6
          %1045 = vperm.xlu0 %1044, %v522
          %v1046 = vpop.permute.xlu0 %1045
          %1048 = vset.pattern.permute.xlu0 6
          %1049 = vperm.xlu0 %1048, %v523
          %v1050 = vpop.permute.xlu0 %1049
          %v1052 = vmul.f32 %v358, %v1038
          %v1053 = vmul.f32 %v359, %v1042
          %v1054 = vmul.f32 %v360, %v1046
          %v1055 = vmul.f32 %v361, %v1050
          %1056 = vset.pattern.permute.xlu0 6
          %1057 = vperm.xlu0 %1056, %v452
          %v1058 = vpop.permute.xlu0 %1057
          %1060 = vset.pattern.permute.xlu0 6
          %1061 = vperm.xlu0 %1060, %v453
          %v1062 = vpop.permute.xlu0 %1061
          %1064 = vset.pattern.permute.xlu0 6
          %1065 = vperm.xlu0 %1064, %v454
          %v1066 = vpop.permute.xlu0 %1065
          %1068 = vset.pattern.permute.xlu0 6
          %1069 = vperm.xlu0 %1068, %v455
          %v1070 = vpop.permute.xlu0 %1069
          %v1072 = vadd.f32 %v1058, %v1052
          %v1073 = vadd.f32 %v1062, %v1053
          %v1074 = vadd.f32 %v1066, %v1054
          %v1075 = vadd.f32 %v1070, %v1055
          %v1076 = vmax.f32 %v1072, 0.0
          %v1077 = vmax.f32 %v1073, 0.0
          %v1078 = vmax.f32 %v1074, 0.0
          %v1079 = vmax.f32 %v1075, 0.0
          %s1080 = sld [smem:[#allocation2 + $0x6]]
          %v1081 = vstv %s1080
          %v1082 = vmul.f32 %v1076, %v1081
          %v1083 = vmul.f32 %v1077, %v1081
          %v1084 = vmul.f32 %v1078, %v1081
          %v1085 = vmul.f32 %v1079, %v1081
          %v1086 = vadd.f32 %v1002, %v1082
          %v1087 = vadd.f32 %v1003, %v1083
          %v1088 = vadd.f32 %v1004, %v1084
          %v1089 = vadd.f32 %v1005, %v1085
          %s1090 = sld [smem:[#allocation2 + $0x26]]
          %v1091 = vstv %s1090
          %v1092 = vmul.f32 %v1076, %v1091
          %v1093 = vmul.f32 %v1077, %v1091
          %v1094 = vmul.f32 %v1078, %v1091
          %v1095 = vmul.f32 %v1079, %v1091
          %v1096 = vadd.f32 %v1012, %v1092
          %v1097 = vadd.f32 %v1013, %v1093
          %v1098 = vadd.f32 %v1014, %v1094
          %v1099 = vadd.f32 %v1015, %v1095
          %s1100 = sld [smem:[#allocation2 + $0x46]]
          %v1101 = vstv %s1100
          %v1102 = vmul.f32 %v1076, %v1101
          %v1103 = vmul.f32 %v1077, %v1101
          %v1104 = vmul.f32 %v1078, %v1101
          %v1105 = vmul.f32 %v1079, %v1101
          %v1106 = vadd.f32 %v1022, %v1102
          %v1107 = vadd.f32 %v1023, %v1103
          %v1108 = vadd.f32 %v1024, %v1104
          %v1109 = vadd.f32 %v1025, %v1105
          %s1110 = sld [smem:[#allocation2 + $0x66]]
          %v1111 = vstv %s1110
          %v1112 = vmul.f32 %v1076, %v1111
          %v1113 = vmul.f32 %v1077, %v1111
          %v1114 = vmul.f32 %v1078, %v1111
          %v1115 = vmul.f32 %v1079, %v1111
          %v1116 = vadd.f32 %v1032, %v1112
          %v1117 = vadd.f32 %v1033, %v1113
          %v1118 = vadd.f32 %v1034, %v1114
          %v1119 = vadd.f32 %v1035, %v1115
          %1120 = vset.pattern.permute.xlu0 7
          %1121 = vperm.xlu0 %1120, %v520
          %v1122 = vpop.permute.xlu0 %1121
          %1124 = vset.pattern.permute.xlu0 7
          %1125 = vperm.xlu0 %1124, %v521
          %v1126 = vpop.permute.xlu0 %1125
          %1128 = vset.pattern.permute.xlu0 7
          %1129 = vperm.xlu0 %1128, %v522
          %v1130 = vpop.permute.xlu0 %1129
          %1132 = vset.pattern.permute.xlu0 7
          %1133 = vperm.xlu0 %1132, %v523
          %v1134 = vpop.permute.xlu0 %1133
          %v1136 = vmul.f32 %v358, %v1122
          %v1137 = vmul.f32 %v359, %v1126
          %v1138 = vmul.f32 %v360, %v1130
          %v1139 = vmul.f32 %v361, %v1134
          %1140 = vset.pattern.permute.xlu0 7
          %1141 = vperm.xlu0 %1140, %v452
          %v1142 = vpop.permute.xlu0 %1141
          %1144 = vset.pattern.permute.xlu0 7
          %1145 = vperm.xlu0 %1144, %v453
          %v1146 = vpop.permute.xlu0 %1145
          %1148 = vset.pattern.permute.xlu0 7
          %1149 = vperm.xlu0 %1148, %v454
          %v1150 = vpop.permute.xlu0 %1149
          %1152 = vset.pattern.permute.xlu0 7
          %1153 = vperm.xlu0 %1152, %v455
          %v1154 = vpop.permute.xlu0 %1153
          %v1156 = vadd.f32 %v1142, %v1136
          %v1157 = vadd.f32 %v1146, %v1137
          %v1158 = vadd.f32 %v1150, %v1138
          %v1159 = vadd.f32 %v1154, %v1139
          %v1160 = vmax.f32 %v1156, 0.0
          %v1161 = vmax.f32 %v1157, 0.0
          %v1162 = vmax.f32 %v1158, 0.0
          %v1163 = vmax.f32 %v1159, 0.0
          %s1164 = sld [smem:[#allocation2 + $0x7]]
          %v1165 = vstv %s1164
          %v1166 = vmul.f32 %v1160, %v1165
          %v1167 = vmul.f32 %v1161, %v1165
          %v1168 = vmul.f32 %v1162, %v1165
          %v1169 = vmul.f32 %v1163, %v1165
          %v1170 = vadd.f32 %v1086, %v1166
          %v1171 = vadd.f32 %v1087, %v1167
          %v1172 = vadd.f32 %v1088, %v1168
          %v1173 = vadd.f32 %v1089, %v1169
          %s1174 = sld [smem:[#allocation2 + $0x27]]
          %v1175 = vstv %s1174
          %v1176 = vmul.f32 %v1160, %v1175
          %v1177 = vmul.f32 %v1161, %v1175
          %v1178 = vmul.f32 %v1162, %v1175
          %v1179 = vmul.f32 %v1163, %v1175
          %v1180 = vadd.f32 %v1096, %v1176
          %v1181 = vadd.f32 %v1097, %v1177
          %v1182 = vadd.f32 %v1098, %v1178
          %v1183 = vadd.f32 %v1099, %v1179
          %s1184 = sld [smem:[#allocation2 + $0x47]]
          %v1185 = vstv %s1184
          %v1186 = vmul.f32 %v1160, %v1185
          %v1187 = vmul.f32 %v1161, %v1185
          %v1188 = vmul.f32 %v1162, %v1185
          %v1189 = vmul.f32 %v1163, %v1185
          %v1190 = vadd.f32 %v1106, %v1186
          %v1191 = vadd.f32 %v1107, %v1187
          %v1192 = vadd.f32 %v1108, %v1188
          %v1193 = vadd.f32 %v1109, %v1189
          %s1194 = sld [smem:[#allocation2 + $0x67]]
          %v1195 = vstv %s1194
          %v1196 = vmul.f32 %v1160, %v1195
          %v1197 = vmul.f32 %v1161, %v1195
          %v1198 = vmul.f32 %v1162, %v1195
          %v1199 = vmul.f32 %v1163, %v1195
          %v1200 = vadd.f32 %v1116, %v1196
          %v1201 = vadd.f32 %v1117, %v1197
          %v1202 = vadd.f32 %v1118, %v1198
          %v1203 = vadd.f32 %v1119, %v1199
          %1204 = vset.pattern.permute.xlu0 8
          %1205 = vperm.xlu0 %1204, %v520
          %v1206 = vpop.permute.xlu0 %1205
          %1208 = vset.pattern.permute.xlu0 8
          %1209 = vperm.xlu0 %1208, %v521
          %v1210 = vpop.permute.xlu0 %1209
          %1212 = vset.pattern.permute.xlu0 8
          %1213 = vperm.xlu0 %1212, %v522
          %v1214 = vpop.permute.xlu0 %1213
          %1216 = vset.pattern.permute.xlu0 8
          %1217 = vperm.xlu0 %1216, %v523
          %v1218 = vpop.permute.xlu0 %1217
          %v1220 = vmul.f32 %v358, %v1206
          %v1221 = vmul.f32 %v359, %v1210
          %v1222 = vmul.f32 %v360, %v1214
          %v1223 = vmul.f32 %v361, %v1218
          %1224 = vset.pattern.permute.xlu0 8
          %1225 = vperm.xlu0 %1224, %v452
          %v1226 = vpop.permute.xlu0 %1225
          %1228 = vset.pattern.permute.xlu0 8
          %1229 = vperm.xlu0 %1228, %v453
          %v1230 = vpop.permute.xlu0 %1229
          %1232 = vset.pattern.permute.xlu0 8
          %1233 = vperm.xlu0 %1232, %v454
          %v1234 = vpop.permute.xlu0 %1233
          %1236 = vset.pattern.permute.xlu0 8
          %1237 = vperm.xlu0 %1236, %v455
          %v1238 = vpop.permute.xlu0 %1237
          %v1240 = vadd.f32 %v1226, %v1220
          %v1241 = vadd.f32 %v1230, %v1221
          %v1242 = vadd.f32 %v1234, %v1222
          %v1243 = vadd.f32 %v1238, %v1223
          %v1244 = vmax.f32 %v1240, 0.0
          %v1245 = vmax.f32 %v1241, 0.0
          %v1246 = vmax.f32 %v1242, 0.0
          %v1247 = vmax.f32 %v1243, 0.0
          %s1248 = sld [smem:[#allocation2 + $0x8]]
          %v1249 = vstv %s1248
          %v1250 = vmul.f32 %v1244, %v1249
          %v1251 = vmul.f32 %v1245, %v1249
          %v1252 = vmul.f32 %v1246, %v1249
          %v1253 = vmul.f32 %v1247, %v1249
          %v1254 = vadd.f32 %v1170, %v1250
          %v1255 = vadd.f32 %v1171, %v1251
          %v1256 = vadd.f32 %v1172, %v1252
          %v1257 = vadd.f32 %v1173, %v1253
          %s1258 = sld [smem:[#allocation2 + $0x28]]
          %v1259 = vstv %s1258
          %v1260 = vmul.f32 %v1244, %v1259
          %v1261 = vmul.f32 %v1245, %v1259
          %v1262 = vmul.f32 %v1246, %v1259
          %v1263 = vmul.f32 %v1247, %v1259
          %v1264 = vadd.f32 %v1180, %v1260
          %v1265 = vadd.f32 %v1181, %v1261
          %v1266 = vadd.f32 %v1182, %v1262
          %v1267 = vadd.f32 %v1183, %v1263
          %s1268 = sld [smem:[#allocation2 + $0x48]]
          %v1269 = vstv %s1268
          %v1270 = vmul.f32 %v1244, %v1269
          %v1271 = vmul.f32 %v1245, %v1269
          %v1272 = vmul.f32 %v1246, %v1269
          %v1273 = vmul.f32 %v1247, %v1269
          %v1274 = vadd.f32 %v1190, %v1270
          %v1275 = vadd.f32 %v1191, %v1271
          %v1276 = vadd.f32 %v1192, %v1272
          %v1277 = vadd.f32 %v1193, %v1273
          %s1278 = sld [smem:[#allocation2 + $0x68]]
          %v1279 = vstv %s1278
          %v1280 = vmul.f32 %v1244, %v1279
          %v1281 = vmul.f32 %v1245, %v1279
          %v1282 = vmul.f32 %v1246, %v1279
          %v1283 = vmul.f32 %v1247, %v1279
          %v1284 = vadd.f32 %v1200, %v1280
          %v1285 = vadd.f32 %v1201, %v1281
          %v1286 = vadd.f32 %v1202, %v1282
          %v1287 = vadd.f32 %v1203, %v1283
          %1288 = vset.pattern.permute.xlu0 9
          %1289 = vperm.xlu0 %1288, %v520
          %v1290 = vpop.permute.xlu0 %1289
          %1292 = vset.pattern.permute.xlu0 9
          %1293 = vperm.xlu0 %1292, %v521
          %v1294 = vpop.permute.xlu0 %1293
          %1296 = vset.pattern.permute.xlu0 9
          %1297 = vperm.xlu0 %1296, %v522
          %v1298 = vpop.permute.xlu0 %1297
          %1300 = vset.pattern.permute.xlu0 9
          %1301 = vperm.xlu0 %1300, %v523
          %v1302 = vpop.permute.xlu0 %1301
          %v1304 = vmul.f32 %v358, %v1290
          %v1305 = vmul.f32 %v359, %v1294
          %v1306 = vmul.f32 %v360, %v1298
          %v1307 = vmul.f32 %v361, %v1302
          %1308 = vset.pattern.permute.xlu0 9
          %1309 = vperm.xlu0 %1308, %v452
          %v1310 = vpop.permute.xlu0 %1309
          %1312 = vset.pattern.permute.xlu0 9
          %1313 = vperm.xlu0 %1312, %v453
          %v1314 = vpop.permute.xlu0 %1313
          %1316 = vset.pattern.permute.xlu0 9
          %1317 = vperm.xlu0 %1316, %v454
          %v1318 = vpop.permute.xlu0 %1317
          %1320 = vset.pattern.permute.xlu0 9
          %1321 = vperm.xlu0 %1320, %v455
          %v1322 = vpop.permute.xlu0 %1321
          %v1324 = vadd.f32 %v1310, %v1304
          %v1325 = vadd.f32 %v1314, %v1305
          %v1326 = vadd.f32 %v1318, %v1306
          %v1327 = vadd.f32 %v1322, %v1307
          %v1328 = vmax.f32 %v1324, 0.0
          %v1329 = vmax.f32 %v1325, 0.0
          %v1330 = vmax.f32 %v1326, 0.0
          %v1331 = vmax.f32 %v1327, 0.0
          %s1332 = sld [smem:[#allocation2 + $0x9]]
          %v1333 = vstv %s1332
          %v1334 = vmul.f32 %v1328, %v1333
          %v1335 = vmul.f32 %v1329, %v1333
          %v1336 = vmul.f32 %v1330, %v1333
          %v1337 = vmul.f32 %v1331, %v1333
          %v1338 = vadd.f32 %v1254, %v1334
          %v1339 = vadd.f32 %v1255, %v1335
          %v1340 = vadd.f32 %v1256, %v1336
          %v1341 = vadd.f32 %v1257, %v1337
          %s1342 = sld [smem:[#allocation2 + $0x29]]
          %v1343 = vstv %s1342
          %v1344 = vmul.f32 %v1328, %v1343
          %v1345 = vmul.f32 %v1329, %v1343
          %v1346 = vmul.f32 %v1330, %v1343
          %v1347 = vmul.f32 %v1331, %v1343
          %v1348 = vadd.f32 %v1264, %v1344
          %v1349 = vadd.f32 %v1265, %v1345
          %v1350 = vadd.f32 %v1266, %v1346
          %v1351 = vadd.f32 %v1267, %v1347
          %s1352 = sld [smem:[#allocation2 + $0x49]]
          %v1353 = vstv %s1352
          %v1354 = vmul.f32 %v1328, %v1353
          %v1355 = vmul.f32 %v1329, %v1353
          %v1356 = vmul.f32 %v1330, %v1353
          %v1357 = vmul.f32 %v1331, %v1353
          %v1358 = vadd.f32 %v1274, %v1354
          %v1359 = vadd.f32 %v1275, %v1355
          %v1360 = vadd.f32 %v1276, %v1356
          %v1361 = vadd.f32 %v1277, %v1357
          %s1362 = sld [smem:[#allocation2 + $0x69]]
          %v1363 = vstv %s1362
          %v1364 = vmul.f32 %v1328, %v1363
          %v1365 = vmul.f32 %v1329, %v1363
          %v1366 = vmul.f32 %v1330, %v1363
          %v1367 = vmul.f32 %v1331, %v1363
          %v1368 = vadd.f32 %v1284, %v1364
          %v1369 = vadd.f32 %v1285, %v1365
          %v1370 = vadd.f32 %v1286, %v1366
          %v1371 = vadd.f32 %v1287, %v1367
          %1372 = vset.pattern.permute.xlu0 10
          %1373 = vperm.xlu0 %1372, %v520
          %v1374 = vpop.permute.xlu0 %1373
          %1376 = vset.pattern.permute.xlu0 10
          %1377 = vperm.xlu0 %1376, %v521
          %v1378 = vpop.permute.xlu0 %1377
          %1380 = vset.pattern.permute.xlu0 10
          %1381 = vperm.xlu0 %1380, %v522
          %v1382 = vpop.permute.xlu0 %1381
          %1384 = vset.pattern.permute.xlu0 10
          %1385 = vperm.xlu0 %1384, %v523
          %v1386 = vpop.permute.xlu0 %1385
          %v1388 = vmul.f32 %v358, %v1374
          %v1389 = vmul.f32 %v359, %v1378
          %v1390 = vmul.f32 %v360, %v1382
          %v1391 = vmul.f32 %v361, %v1386
          %1392 = vset.pattern.permute.xlu0 10
          %1393 = vperm.xlu0 %1392, %v452
          %v1394 = vpop.permute.xlu0 %1393
          %1396 = vset.pattern.permute.xlu0 10
          %1397 = vperm.xlu0 %1396, %v453
          %v1398 = vpop.permute.xlu0 %1397
          %1400 = vset.pattern.permute.xlu0 10
          %1401 = vperm.xlu0 %1400, %v454
          %v1402 = vpop.permute.xlu0 %1401
          %1404 = vset.pattern.permute.xlu0 10
          %1405 = vperm.xlu0 %1404, %v455
          %v1406 = vpop.permute.xlu0 %1405
          %v1408 = vadd.f32 %v1394, %v1388
          %v1409 = vadd.f32 %v1398, %v1389
          %v1410 = vadd.f32 %v1402, %v1390
          %v1411 = vadd.f32 %v1406, %v1391
          %v1412 = vmax.f32 %v1408, 0.0
          %v1413 = vmax.f32 %v1409, 0.0
          %v1414 = vmax.f32 %v1410, 0.0
          %v1415 = vmax.f32 %v1411, 0.0
          %s1416 = sld [smem:[#allocation2 + $0xa]]
          %v1417 = vstv %s1416
          %v1418 = vmul.f32 %v1412, %v1417
          %v1419 = vmul.f32 %v1413, %v1417
          %v1420 = vmul.f32 %v1414, %v1417
          %v1421 = vmul.f32 %v1415, %v1417
          %v1422 = vadd.f32 %v1338, %v1418
          %v1423 = vadd.f32 %v1339, %v1419
          %v1424 = vadd.f32 %v1340, %v1420
          %v1425 = vadd.f32 %v1341, %v1421
          %s1426 = sld [smem:[#allocation2 + $0x2a]]
          %v1427 = vstv %s1426
          %v1428 = vmul.f32 %v1412, %v1427
          %v1429 = vmul.f32 %v1413, %v1427
          %v1430 = vmul.f32 %v1414, %v1427
          %v1431 = vmul.f32 %v1415, %v1427
          %v1432 = vadd.f32 %v1348, %v1428
          %v1433 = vadd.f32 %v1349, %v1429
          %v1434 = vadd.f32 %v1350, %v1430
          %v1435 = vadd.f32 %v1351, %v1431
          %s1436 = sld [smem:[#allocation2 + $0x4a]]
          %v1437 = vstv %s1436
          %v1438 = vmul.f32 %v1412, %v1437
          %v1439 = vmul.f32 %v1413, %v1437
          %v1440 = vmul.f32 %v1414, %v1437
          %v1441 = vmul.f32 %v1415, %v1437
          %v1442 = vadd.f32 %v1358, %v1438
          %v1443 = vadd.f32 %v1359, %v1439
          %v1444 = vadd.f32 %v1360, %v1440
          %v1445 = vadd.f32 %v1361, %v1441
          %s1446 = sld [smem:[#allocation2 + $0x6a]]
          %v1447 = vstv %s1446
          %v1448 = vmul.f32 %v1412, %v1447
          %v1449 = vmul.f32 %v1413, %v1447
          %v1450 = vmul.f32 %v1414, %v1447
          %v1451 = vmul.f32 %v1415, %v1447
          %v1452 = vadd.f32 %v1368, %v1448
          %v1453 = vadd.f32 %v1369, %v1449
          %v1454 = vadd.f32 %v1370, %v1450
          %v1455 = vadd.f32 %v1371, %v1451
          %1456 = vset.pattern.permute.xlu0 11
          %1457 = vperm.xlu0 %1456, %v520
          %v1458 = vpop.permute.xlu0 %1457
          %1460 = vset.pattern.permute.xlu0 11
          %1461 = vperm.xlu0 %1460, %v521
          %v1462 = vpop.permute.xlu0 %1461
          %1464 = vset.pattern.permute.xlu0 11
          %1465 = vperm.xlu0 %1464, %v522
          %v1466 = vpop.permute.xlu0 %1465
          %1468 = vset.pattern.permute.xlu0 11
          %1469 = vperm.xlu0 %1468, %v523
          %v1470 = vpop.permute.xlu0 %1469
          %v1472 = vmul.f32 %v358, %v1458
          %v1473 = vmul.f32 %v359, %v1462
          %v1474 = vmul.f32 %v360, %v1466
          %v1475 = vmul.f32 %v361, %v1470
          %1476 = vset.pattern.permute.xlu0 11
          %1477 = vperm.xlu0 %1476, %v452
          %v1478 = vpop.permute.xlu0 %1477
          %1480 = vset.pattern.permute.xlu0 11
          %1481 = vperm.xlu0 %1480, %v453
          %v1482 = vpop.permute.xlu0 %1481
          %1484 = vset.pattern.permute.xlu0 11
          %1485 = vperm.xlu0 %1484, %v454
          %v1486 = vpop.permute.xlu0 %1485
          %1488 = vset.pattern.permute.xlu0 11
          %1489 = vperm.xlu0 %1488, %v455
          %v1490 = vpop.permute.xlu0 %1489
          %v1492 = vadd.f32 %v1478, %v1472
          %v1493 = vadd.f32 %v1482, %v1473
          %v1494 = vadd.f32 %v1486, %v1474
          %v1495 = vadd.f32 %v1490, %v1475
          %v1496 = vmax.f32 %v1492, 0.0
          %v1497 = vmax.f32 %v1493, 0.0
          %v1498 = vmax.f32 %v1494, 0.0
          %v1499 = vmax.f32 %v1495, 0.0
          %s1500 = sld [smem:[#allocation2 + $0xb]]
          %v1501 = vstv %s1500
          %v1502 = vmul.f32 %v1496, %v1501
          %v1503 = vmul.f32 %v1497, %v1501
          %v1504 = vmul.f32 %v1498, %v1501
          %v1505 = vmul.f32 %v1499, %v1501
          %v1506 = vadd.f32 %v1422, %v1502
          %v1507 = vadd.f32 %v1423, %v1503
          %v1508 = vadd.f32 %v1424, %v1504
          %v1509 = vadd.f32 %v1425, %v1505
          %s1510 = sld [smem:[#allocation2 + $0x2b]]
          %v1511 = vstv %s1510
          %v1512 = vmul.f32 %v1496, %v1511
          %v1513 = vmul.f32 %v1497, %v1511
          %v1514 = vmul.f32 %v1498, %v1511
          %v1515 = vmul.f32 %v1499, %v1511
          %v1516 = vadd.f32 %v1432, %v1512
          %v1517 = vadd.f32 %v1433, %v1513
          %v1518 = vadd.f32 %v1434, %v1514
          %v1519 = vadd.f32 %v1435, %v1515
          %s1520 = sld [smem:[#allocation2 + $0x4b]]
          %v1521 = vstv %s1520
          %v1522 = vmul.f32 %v1496, %v1521
          %v1523 = vmul.f32 %v1497, %v1521
          %v1524 = vmul.f32 %v1498, %v1521
          %v1525 = vmul.f32 %v1499, %v1521
          %v1526 = vadd.f32 %v1442, %v1522
          %v1527 = vadd.f32 %v1443, %v1523
          %v1528 = vadd.f32 %v1444, %v1524
          %v1529 = vadd.f32 %v1445, %v1525
          %s1530 = sld [smem:[#allocation2 + $0x6b]]
          %v1531 = vstv %s1530
          %v1532 = vmul.f32 %v1496, %v1531
          %v1533 = vmul.f32 %v1497, %v1531
          %v1534 = vmul.f32 %v1498, %v1531
          %v1535 = vmul.f32 %v1499, %v1531
          %v1536 = vadd.f32 %v1452, %v1532
          %v1537 = vadd.f32 %v1453, %v1533
          %v1538 = vadd.f32 %v1454, %v1534
          %v1539 = vadd.f32 %v1455, %v1535
          %1540 = vset.pattern.permute.xlu0 12
          %1541 = vperm.xlu0 %1540, %v520
          %v1542 = vpop.permute.xlu0 %1541
          %1544 = vset.pattern.permute.xlu0 12
          %1545 = vperm.xlu0 %1544, %v521
          %v1546 = vpop.permute.xlu0 %1545
          %1548 = vset.pattern.permute.xlu0 12
          %1549 = vperm.xlu0 %1548, %v522
          %v1550 = vpop.permute.xlu0 %1549
          %1552 = vset.pattern.permute.xlu0 12
          %1553 = vperm.xlu0 %1552, %v523
          %v1554 = vpop.permute.xlu0 %1553
          %v1556 = vmul.f32 %v358, %v1542
          %v1557 = vmul.f32 %v359, %v1546
          %v1558 = vmul.f32 %v360, %v1550
          %v1559 = vmul.f32 %v361, %v1554
          %1560 = vset.pattern.permute.xlu0 12
          %1561 = vperm.xlu0 %1560, %v452
          %v1562 = vpop.permute.xlu0 %1561
          %1564 = vset.pattern.permute.xlu0 12
          %1565 = vperm.xlu0 %1564, %v453
          %v1566 = vpop.permute.xlu0 %1565
          %1568 = vset.pattern.permute.xlu0 12
          %1569 = vperm.xlu0 %1568, %v454
          %v1570 = vpop.permute.xlu0 %1569
          %1572 = vset.pattern.permute.xlu0 12
          %1573 = vperm.xlu0 %1572, %v455
          %v1574 = vpop.permute.xlu0 %1573
          %v1576 = vadd.f32 %v1562, %v1556
          %v1577 = vadd.f32 %v1566, %v1557
          %v1578 = vadd.f32 %v1570, %v1558
          %v1579 = vadd.f32 %v1574, %v1559
          %v1580 = vmax.f32 %v1576, 0.0
          %v1581 = vmax.f32 %v1577, 0.0
          %v1582 = vmax.f32 %v1578, 0.0
          %v1583 = vmax.f32 %v1579, 0.0
          %s1584 = sld [smem:[#allocation2 + $0xc]]
          %v1585 = vstv %s1584
          %v1586 = vmul.f32 %v1580, %v1585
          %v1587 = vmul.f32 %v1581, %v1585
          %v1588 = vmul.f32 %v1582, %v1585
          %v1589 = vmul.f32 %v1583, %v1585
          %v1590 = vadd.f32 %v1506, %v1586
          %v1591 = vadd.f32 %v1507, %v1587
          %v1592 = vadd.f32 %v1508, %v1588
          %v1593 = vadd.f32 %v1509, %v1589
          %s1594 = sld [smem:[#allocation2 + $0x2c]]
          %v1595 = vstv %s1594
          %v1596 = vmul.f32 %v1580, %v1595
          %v1597 = vmul.f32 %v1581, %v1595
          %v1598 = vmul.f32 %v1582, %v1595
          %v1599 = vmul.f32 %v1583, %v1595
          %v1600 = vadd.f32 %v1516, %v1596
          %v1601 = vadd.f32 %v1517, %v1597
          %v1602 = vadd.f32 %v1518, %v1598
          %v1603 = vadd.f32 %v1519, %v1599
          %s1604 = sld [smem:[#allocation2 + $0x4c]]
          %v1605 = vstv %s1604
          %v1606 = vmul.f32 %v1580, %v1605
          %v1607 = vmul.f32 %v1581, %v1605
          %v1608 = vmul.f32 %v1582, %v1605
          %v1609 = vmul.f32 %v1583, %v1605
          %v1610 = vadd.f32 %v1526, %v1606
          %v1611 = vadd.f32 %v1527, %v1607
          %v1612 = vadd.f32 %v1528, %v1608
          %v1613 = vadd.f32 %v1529, %v1609
          %s1614 = sld [smem:[#allocation2 + $0x6c]]
          %v1615 = vstv %s1614
          %v1616 = vmul.f32 %v1580, %v1615
          %v1617 = vmul.f32 %v1581, %v1615
          %v1618 = vmul.f32 %v1582, %v1615
          %v1619 = vmul.f32 %v1583, %v1615
          %v1620 = vadd.f32 %v1536, %v1616
          %v1621 = vadd.f32 %v1537, %v1617
          %v1622 = vadd.f32 %v1538, %v1618
          %v1623 = vadd.f32 %v1539, %v1619
          %1624 = vset.pattern.permute.xlu0 13
          %1625 = vperm.xlu0 %1624, %v520
          %v1626 = vpop.permute.xlu0 %1625
          %1628 = vset.pattern.permute.xlu0 13
          %1629 = vperm.xlu0 %1628, %v521
          %v1630 = vpop.permute.xlu0 %1629
          %1632 = vset.pattern.permute.xlu0 13
          %1633 = vperm.xlu0 %1632, %v522
          %v1634 = vpop.permute.xlu0 %1633
          %1636 = vset.pattern.permute.xlu0 13
          %1637 = vperm.xlu0 %1636, %v523
          %v1638 = vpop.permute.xlu0 %1637
          %v1640 = vmul.f32 %v358, %v1626
          %v1641 = vmul.f32 %v359, %v1630
          %v1642 = vmul.f32 %v360, %v1634
          %v1643 = vmul.f32 %v361, %v1638
          %1644 = vset.pattern.permute.xlu0 13
          %1645 = vperm.xlu0 %1644, %v452
          %v1646 = vpop.permute.xlu0 %1645
          %1648 = vset.pattern.permute.xlu0 13
          %1649 = vperm.xlu0 %1648, %v453
          %v1650 = vpop.permute.xlu0 %1649
          %1652 = vset.pattern.permute.xlu0 13
          %1653 = vperm.xlu0 %1652, %v454
          %v1654 = vpop.permute.xlu0 %1653
          %1656 = vset.pattern.permute.xlu0 13
          %1657 = vperm.xlu0 %1656, %v455
          %v1658 = vpop.permute.xlu0 %1657
          %v1660 = vadd.f32 %v1646, %v1640
          %v1661 = vadd.f32 %v1650, %v1641
          %v1662 = vadd.f32 %v1654, %v1642
          %v1663 = vadd.f32 %v1658, %v1643
          %v1664 = vmax.f32 %v1660, 0.0
          %v1665 = vmax.f32 %v1661, 0.0
          %v1666 = vmax.f32 %v1662, 0.0
          %v1667 = vmax.f32 %v1663, 0.0
          %s1668 = sld [smem:[#allocation2 + $0xd]]
          %v1669 = vstv %s1668
          %v1670 = vmul.f32 %v1664, %v1669
          %v1671 = vmul.f32 %v1665, %v1669
          %v1672 = vmul.f32 %v1666, %v1669
          %v1673 = vmul.f32 %v1667, %v1669
          %v1674 = vadd.f32 %v1590, %v1670
          %v1675 = vadd.f32 %v1591, %v1671
          %v1676 = vadd.f32 %v1592, %v1672
          %v1677 = vadd.f32 %v1593, %v1673
          %s1678 = sld [smem:[#allocation2 + $0x2d]]
          %v1679 = vstv %s1678
          %v1680 = vmul.f32 %v1664, %v1679
          %v1681 = vmul.f32 %v1665, %v1679
          %v1682 = vmul.f32 %v1666, %v1679
          %v1683 = vmul.f32 %v1667, %v1679
          %v1684 = vadd.f32 %v1600, %v1680
          %v1685 = vadd.f32 %v1601, %v1681
          %v1686 = vadd.f32 %v1602, %v1682
          %v1687 = vadd.f32 %v1603, %v1683
          %s1688 = sld [smem:[#allocation2 + $0x4d]]
          %v1689 = vstv %s1688
          %v1690 = vmul.f32 %v1664, %v1689
          %v1691 = vmul.f32 %v1665, %v1689
          %v1692 = vmul.f32 %v1666, %v1689
          %v1693 = vmul.f32 %v1667, %v1689
          %v1694 = vadd.f32 %v1610, %v1690
          %v1695 = vadd.f32 %v1611, %v1691
          %v1696 = vadd.f32 %v1612, %v1692
          %v1697 = vadd.f32 %v1613, %v1693
          %s1698 = sld [smem:[#allocation2 + $0x6d]]
          %v1699 = vstv %s1698
          %v1700 = vmul.f32 %v1664, %v1699
          %v1701 = vmul.f32 %v1665, %v1699
          %v1702 = vmul.f32 %v1666, %v1699
          %v1703 = vmul.f32 %v1667, %v1699
          %v1704 = vadd.f32 %v1620, %v1700
          %v1705 = vadd.f32 %v1621, %v1701
          %v1706 = vadd.f32 %v1622, %v1702
          %v1707 = vadd.f32 %v1623, %v1703
          %1708 = vset.pattern.permute.xlu0 14
          %1709 = vperm.xlu0 %1708, %v520
          %v1710 = vpop.permute.xlu0 %1709
          %1712 = vset.pattern.permute.xlu0 14
          %1713 = vperm.xlu0 %1712, %v521
          %v1714 = vpop.permute.xlu0 %1713
          %1716 = vset.pattern.permute.xlu0 14
          %1717 = vperm.xlu0 %1716, %v522
          %v1718 = vpop.permute.xlu0 %1717
          %1720 = vset.pattern.permute.xlu0 14
          %1721 = vperm.xlu0 %1720, %v523
          %v1722 = vpop.permute.xlu0 %1721
          %v1724 = vmul.f32 %v358, %v1710
          %v1725 = vmul.f32 %v359, %v1714
          %v1726 = vmul.f32 %v360, %v1718
          %v1727 = vmul.f32 %v361, %v1722
          %1728 = vset.pattern.permute.xlu0 14
          %1729 = vperm.xlu0 %1728, %v452
          %v1730 = vpop.permute.xlu0 %1729
          %1732 = vset.pattern.permute.xlu0 14
          %1733 = vperm.xlu0 %1732, %v453
          %v1734 = vpop.permute.xlu0 %1733
          %1736 = vset.pattern.permute.xlu0 14
          %1737 = vperm.xlu0 %1736, %v454
          %v1738 = vpop.permute.xlu0 %1737
          %1740 = vset.pattern.permute.xlu0 14
          %1741 = vperm.xlu0 %1740, %v455
          %v1742 = vpop.permute.xlu0 %1741
          %v1744 = vadd.f32 %v1730, %v1724
          %v1745 = vadd.f32 %v1734, %v1725
          %v1746 = vadd.f32 %v1738, %v1726
          %v1747 = vadd.f32 %v1742, %v1727
          %v1748 = vmax.f32 %v1744, 0.0
          %v1749 = vmax.f32 %v1745, 0.0
          %v1750 = vmax.f32 %v1746, 0.0
          %v1751 = vmax.f32 %v1747, 0.0
          %s1752 = sld [smem:[#allocation2 + $0xe]]
          %v1753 = vstv %s1752
          %v1754 = vmul.f32 %v1748, %v1753
          %v1755 = vmul.f32 %v1749, %v1753
          %v1756 = vmul.f32 %v1750, %v1753
          %v1757 = vmul.f32 %v1751, %v1753
          %v1758 = vadd.f32 %v1674, %v1754
          %v1759 = vadd.f32 %v1675, %v1755
          %v1760 = vadd.f32 %v1676, %v1756
          %v1761 = vadd.f32 %v1677, %v1757
          %s1762 = sld [smem:[#allocation2 + $0x2e]]
          %v1763 = vstv %s1762
          %v1764 = vmul.f32 %v1748, %v1763
          %v1765 = vmul.f32 %v1749, %v1763
          %v1766 = vmul.f32 %v1750, %v1763
          %v1767 = vmul.f32 %v1751, %v1763
          %v1768 = vadd.f32 %v1684, %v1764
          %v1769 = vadd.f32 %v1685, %v1765
          %v1770 = vadd.f32 %v1686, %v1766
          %v1771 = vadd.f32 %v1687, %v1767
          %s1772 = sld [smem:[#allocation2 + $0x4e]]
          %v1773 = vstv %s1772
          %v1774 = vmul.f32 %v1748, %v1773
          %v1775 = vmul.f32 %v1749, %v1773
          %v1776 = vmul.f32 %v1750, %v1773
          %v1777 = vmul.f32 %v1751, %v1773
          %v1778 = vadd.f32 %v1694, %v1774
          %v1779 = vadd.f32 %v1695, %v1775
          %v1780 = vadd.f32 %v1696, %v1776
          %v1781 = vadd.f32 %v1697, %v1777
          %s1782 = sld [smem:[#allocation2 + $0x6e]]
          %v1783 = vstv %s1782
          %v1784 = vmul.f32 %v1748, %v1783
          %v1785 = vmul.f32 %v1749, %v1783
          %v1786 = vmul.f32 %v1750, %v1783
          %v1787 = vmul.f32 %v1751, %v1783
          %v1788 = vadd.f32 %v1704, %v1784
          %v1789 = vadd.f32 %v1705, %v1785
          %v1790 = vadd.f32 %v1706, %v1786
          %v1791 = vadd.f32 %v1707, %v1787
          %1792 = vset.pattern.permute.xlu0 15
          %1793 = vperm.xlu0 %1792, %v520
          %v1794 = vpop.permute.xlu0 %1793
          %1796 = vset.pattern.permute.xlu0 15
          %1797 = vperm.xlu0 %1796, %v521
          %v1798 = vpop.permute.xlu0 %1797
          %1800 = vset.pattern.permute.xlu0 15
          %1801 = vperm.xlu0 %1800, %v522
          %v1802 = vpop.permute.xlu0 %1801
          %1804 = vset.pattern.permute.xlu0 15
          %1805 = vperm.xlu0 %1804, %v523
          %v1806 = vpop.permute.xlu0 %1805
          %v1808 = vmul.f32 %v358, %v1794
          %v1809 = vmul.f32 %v359, %v1798
          %v1810 = vmul.f32 %v360, %v1802
          %v1811 = vmul.f32 %v361, %v1806
          %1812 = vset.pattern.permute.xlu0 15
          %1813 = vperm.xlu0 %1812, %v452
          %v1814 = vpop.permute.xlu0 %1813
          %1816 = vset.pattern.permute.xlu0 15
          %1817 = vperm.xlu0 %1816, %v453
          %v1818 = vpop.permute.xlu0 %1817
          %1820 = vset.pattern.permute.xlu0 15
          %1821 = vperm.xlu0 %1820, %v454
          %v1822 = vpop.permute.xlu0 %1821
          %1824 = vset.pattern.permute.xlu0 15
          %1825 = vperm.xlu0 %1824, %v455
          %v1826 = vpop.permute.xlu0 %1825
          %v1828 = vadd.f32 %v1814, %v1808
          %v1829 = vadd.f32 %v1818, %v1809
          %v1830 = vadd.f32 %v1822, %v1810
          %v1831 = vadd.f32 %v1826, %v1811
          %v1832 = vmax.f32 %v1828, 0.0
          %v1833 = vmax.f32 %v1829, 0.0
          %v1834 = vmax.f32 %v1830, 0.0
          %v1835 = vmax.f32 %v1831, 0.0
          %s1836 = sld [smem:[#allocation2 + $0xf]]
          %v1837 = vstv %s1836
          %v1838 = vmul.f32 %v1832, %v1837
          %v1839 = vmul.f32 %v1833, %v1837
          %v1840 = vmul.f32 %v1834, %v1837
          %v1841 = vmul.f32 %v1835, %v1837
          %v1842 = vadd.f32 %v1758, %v1838
          %v1843 = vadd.f32 %v1759, %v1839
          %v1844 = vadd.f32 %v1760, %v1840
          %v1845 = vadd.f32 %v1761, %v1841
          %s1846 = sld [smem:[#allocation2 + $0x2f]]
          %v1847 = vstv %s1846
          %v1848 = vmul.f32 %v1832, %v1847
          %v1849 = vmul.f32 %v1833, %v1847
          %v1850 = vmul.f32 %v1834, %v1847
          %v1851 = vmul.f32 %v1835, %v1847
          %v1852 = vadd.f32 %v1768, %v1848
          %v1853 = vadd.f32 %v1769, %v1849
          %v1854 = vadd.f32 %v1770, %v1850
          %v1855 = vadd.f32 %v1771, %v1851
          %s1856 = sld [smem:[#allocation2 + $0x4f]]
          %v1857 = vstv %s1856
          %v1858 = vmul.f32 %v1832, %v1857
          %v1859 = vmul.f32 %v1833, %v1857
          %v1860 = vmul.f32 %v1834, %v1857
          %v1861 = vmul.f32 %v1835, %v1857
          %v1862 = vadd.f32 %v1778, %v1858
          %v1863 = vadd.f32 %v1779, %v1859
          %v1864 = vadd.f32 %v1780, %v1860
          %v1865 = vadd.f32 %v1781, %v1861
          %s1866 = sld [smem:[#allocation2 + $0x6f]]
          %v1867 = vstv %s1866
          %v1868 = vmul.f32 %v1832, %v1867
          %v1869 = vmul.f32 %v1833, %v1867
          %v1870 = vmul.f32 %v1834, %v1867
          %v1871 = vmul.f32 %v1835, %v1867
          %v1872 = vadd.f32 %v1788, %v1868
          %v1873 = vadd.f32 %v1789, %v1869
          %v1874 = vadd.f32 %v1790, %v1870
          %v1875 = vadd.f32 %v1791, %v1871
          %1876 = vset.pattern.permute.xlu0 16
          %1877 = vperm.xlu0 %1876, %v520
          %v1878 = vpop.permute.xlu0 %1877
          %1880 = vset.pattern.permute.xlu0 16
          %1881 = vperm.xlu0 %1880, %v521
          %v1882 = vpop.permute.xlu0 %1881
          %1884 = vset.pattern.permute.xlu0 16
          %1885 = vperm.xlu0 %1884, %v522
          %v1886 = vpop.permute.xlu0 %1885
          %1888 = vset.pattern.permute.xlu0 16
          %1889 = vperm.xlu0 %1888, %v523
          %v1890 = vpop.permute.xlu0 %1889
          %v1892 = vmul.f32 %v358, %v1878
          %v1893 = vmul.f32 %v359, %v1882
          %v1894 = vmul.f32 %v360, %v1886
          %v1895 = vmul.f32 %v361, %v1890
          %1896 = vset.pattern.permute.xlu0 16
          %1897 = vperm.xlu0 %1896, %v452
          %v1898 = vpop.permute.xlu0 %1897
          %1900 = vset.pattern.permute.xlu0 16
          %1901 = vperm.xlu0 %1900, %v453
          %v1902 = vpop.permute.xlu0 %1901
          %1904 = vset.pattern.permute.xlu0 16
          %1905 = vperm.xlu0 %1904, %v454
          %v1906 = vpop.permute.xlu0 %1905
          %1908 = vset.pattern.permute.xlu0 16
          %1909 = vperm.xlu0 %1908, %v455
          %v1910 = vpop.permute.xlu0 %1909
          %v1912 = vadd.f32 %v1898, %v1892
          %v1913 = vadd.f32 %v1902, %v1893
          %v1914 = vadd.f32 %v1906, %v1894
          %v1915 = vadd.f32 %v1910, %v1895
          %v1916 = vmax.f32 %v1912, 0.0
          %v1917 = vmax.f32 %v1913, 0.0
          %v1918 = vmax.f32 %v1914, 0.0
          %v1919 = vmax.f32 %v1915, 0.0
          %s1920 = sld [smem:[#allocation2 + $0x10]]
          %v1921 = vstv %s1920
          %v1922 = vmul.f32 %v1916, %v1921
          %v1923 = vmul.f32 %v1917, %v1921
          %v1924 = vmul.f32 %v1918, %v1921
          %v1925 = vmul.f32 %v1919, %v1921
          %v1926 = vadd.f32 %v1842, %v1922
          %v1927 = vadd.f32 %v1843, %v1923
          %v1928 = vadd.f32 %v1844, %v1924
          %v1929 = vadd.f32 %v1845, %v1925
          %s1930 = sld [smem:[#allocation2 + $0x30]]
          %v1931 = vstv %s1930
          %v1932 = vmul.f32 %v1916, %v1931
          %v1933 = vmul.f32 %v1917, %v1931
          %v1934 = vmul.f32 %v1918, %v1931
          %v1935 = vmul.f32 %v1919, %v1931
          %v1936 = vadd.f32 %v1852, %v1932
          %v1937 = vadd.f32 %v1853, %v1933
          %v1938 = vadd.f32 %v1854, %v1934
          %v1939 = vadd.f32 %v1855, %v1935
          %s1940 = sld [smem:[#allocation2 + $0x50]]
          %v1941 = vstv %s1940
          %v1942 = vmul.f32 %v1916, %v1941
          %v1943 = vmul.f32 %v1917, %v1941
          %v1944 = vmul.f32 %v1918, %v1941
          %v1945 = vmul.f32 %v1919, %v1941
          %v1946 = vadd.f32 %v1862, %v1942
          %v1947 = vadd.f32 %v1863, %v1943
          %v1948 = vadd.f32 %v1864, %v1944
          %v1949 = vadd.f32 %v1865, %v1945
          %s1950 = sld [smem:[#allocation2 + $0x70]]
          %v1951 = vstv %s1950
          %v1952 = vmul.f32 %v1916, %v1951
          %v1953 = vmul.f32 %v1917, %v1951
          %v1954 = vmul.f32 %v1918, %v1951
          %v1955 = vmul.f32 %v1919, %v1951
          %v1956 = vadd.f32 %v1872, %v1952
          %v1957 = vadd.f32 %v1873, %v1953
          %v1958 = vadd.f32 %v1874, %v1954
          %v1959 = vadd.f32 %v1875, %v1955
          %1960 = vset.pattern.permute.xlu0 17
          %1961 = vperm.xlu0 %1960, %v520
          %v1962 = vpop.permute.xlu0 %1961
          %1964 = vset.pattern.permute.xlu0 17
          %1965 = vperm.xlu0 %1964, %v521
          %v1966 = vpop.permute.xlu0 %1965
          %1968 = vset.pattern.permute.xlu0 17
          %1969 = vperm.xlu0 %1968, %v522
          %v1970 = vpop.permute.xlu0 %1969
          %1972 = vset.pattern.permute.xlu0 17
          %1973 = vperm.xlu0 %1972, %v523
          %v1974 = vpop.permute.xlu0 %1973
          %v1976 = vmul.f32 %v358, %v1962
          %v1977 = vmul.f32 %v359, %v1966
          %v1978 = vmul.f32 %v360, %v1970
          %v1979 = vmul.f32 %v361, %v1974
          %1980 = vset.pattern.permute.xlu0 17
          %1981 = vperm.xlu0 %1980, %v452
          %v1982 = vpop.permute.xlu0 %1981
          %1984 = vset.pattern.permute.xlu0 17
          %1985 = vperm.xlu0 %1984, %v453
          %v1986 = vpop.permute.xlu0 %1985
          %1988 = vset.pattern.permute.xlu0 17
          %1989 = vperm.xlu0 %1988, %v454
          %v1990 = vpop.permute.xlu0 %1989
          %1992 = vset.pattern.permute.xlu0 17
          %1993 = vperm.xlu0 %1992, %v455
          %v1994 = vpop.permute.xlu0 %1993
          %v1996 = vadd.f32 %v1982, %v1976
          %v1997 = vadd.f32 %v1986, %v1977
          %v1998 = vadd.f32 %v1990, %v1978
          %v1999 = vadd.f32 %v1994, %v1979
          %v2000 = vmax.f32 %v1996, 0.0
          %v2001 = vmax.f32 %v1997, 0.0
          %v2002 = vmax.f32 %v1998, 0.0
          %v2003 = vmax.f32 %v1999, 0.0
          %s2004 = sld [smem:[#allocation2 + $0x11]]
          %v2005 = vstv %s2004
          %v2006 = vmul.f32 %v2000, %v2005
          %v2007 = vmul.f32 %v2001, %v2005
          %v2008 = vmul.f32 %v2002, %v2005
          %v2009 = vmul.f32 %v2003, %v2005
          %v2010 = vadd.f32 %v1926, %v2006
          %v2011 = vadd.f32 %v1927, %v2007
          %v2012 = vadd.f32 %v1928, %v2008
          %v2013 = vadd.f32 %v1929, %v2009
          %s2014 = sld [smem:[#allocation2 + $0x31]]
          %v2015 = vstv %s2014
          %v2016 = vmul.f32 %v2000, %v2015
          %v2017 = vmul.f32 %v2001, %v2015
          %v2018 = vmul.f32 %v2002, %v2015
          %v2019 = vmul.f32 %v2003, %v2015
          %v2020 = vadd.f32 %v1936, %v2016
          %v2021 = vadd.f32 %v1937, %v2017
          %v2022 = vadd.f32 %v1938, %v2018
          %v2023 = vadd.f32 %v1939, %v2019
          %s2024 = sld [smem:[#allocation2 + $0x51]]
          %v2025 = vstv %s2024
          %v2026 = vmul.f32 %v2000, %v2025
          %v2027 = vmul.f32 %v2001, %v2025
          %v2028 = vmul.f32 %v2002, %v2025
          %v2029 = vmul.f32 %v2003, %v2025
          %v2030 = vadd.f32 %v1946, %v2026
          %v2031 = vadd.f32 %v1947, %v2027
          %v2032 = vadd.f32 %v1948, %v2028
          %v2033 = vadd.f32 %v1949, %v2029
          %s2034 = sld [smem:[#allocation2 + $0x71]]
          %v2035 = vstv %s2034
          %v2036 = vmul.f32 %v2000, %v2035
          %v2037 = vmul.f32 %v2001, %v2035
          %v2038 = vmul.f32 %v2002, %v2035
          %v2039 = vmul.f32 %v2003, %v2035
          %v2040 = vadd.f32 %v1956, %v2036
          %v2041 = vadd.f32 %v1957, %v2037
          %v2042 = vadd.f32 %v1958, %v2038
          %v2043 = vadd.f32 %v1959, %v2039
          %2044 = vset.pattern.permute.xlu0 18
          %2045 = vperm.xlu0 %2044, %v520
          %v2046 = vpop.permute.xlu0 %2045
          %2048 = vset.pattern.permute.xlu0 18
          %2049 = vperm.xlu0 %2048, %v521
          %v2050 = vpop.permute.xlu0 %2049
          %2052 = vset.pattern.permute.xlu0 18
          %2053 = vperm.xlu0 %2052, %v522
          %v2054 = vpop.permute.xlu0 %2053
          %2056 = vset.pattern.permute.xlu0 18
          %2057 = vperm.xlu0 %2056, %v523
          %v2058 = vpop.permute.xlu0 %2057
          %v2060 = vmul.f32 %v358, %v2046
          %v2061 = vmul.f32 %v359, %v2050
          %v2062 = vmul.f32 %v360, %v2054
          %v2063 = vmul.f32 %v361, %v2058
          %2064 = vset.pattern.permute.xlu0 18
          %2065 = vperm.xlu0 %2064, %v452
          %v2066 = vpop.permute.xlu0 %2065
          %2068 = vset.pattern.permute.xlu0 18
          %2069 = vperm.xlu0 %2068, %v453
          %v2070 = vpop.permute.xlu0 %2069
          %2072 = vset.pattern.permute.xlu0 18
          %2073 = vperm.xlu0 %2072, %v454
          %v2074 = vpop.permute.xlu0 %2073
          %2076 = vset.pattern.permute.xlu0 18
          %2077 = vperm.xlu0 %2076, %v455
          %v2078 = vpop.permute.xlu0 %2077
          %v2080 = vadd.f32 %v2066, %v2060
          %v2081 = vadd.f32 %v2070, %v2061
          %v2082 = vadd.f32 %v2074, %v2062
          %v2083 = vadd.f32 %v2078, %v2063
          %v2084 = vmax.f32 %v2080, 0.0
          %v2085 = vmax.f32 %v2081, 0.0
          %v2086 = vmax.f32 %v2082, 0.0
          %v2087 = vmax.f32 %v2083, 0.0
          %s2088 = sld [smem:[#allocation2 + $0x12]]
          %v2089 = vstv %s2088
          %v2090 = vmul.f32 %v2084, %v2089
          %v2091 = vmul.f32 %v2085, %v2089
          %v2092 = vmul.f32 %v2086, %v2089
          %v2093 = vmul.f32 %v2087, %v2089
          %v2094 = vadd.f32 %v2010, %v2090
          %v2095 = vadd.f32 %v2011, %v2091
          %v2096 = vadd.f32 %v2012, %v2092
          %v2097 = vadd.f32 %v2013, %v2093
          %s2098 = sld [smem:[#allocation2 + $0x32]]
          %v2099 = vstv %s2098
          %v2100 = vmul.f32 %v2084, %v2099
          %v2101 = vmul.f32 %v2085, %v2099
          %v2102 = vmul.f32 %v2086, %v2099
          %v2103 = vmul.f32 %v2087, %v2099
          %v2104 = vadd.f32 %v2020, %v2100
          %v2105 = vadd.f32 %v2021, %v2101
          %v2106 = vadd.f32 %v2022, %v2102
          %v2107 = vadd.f32 %v2023, %v2103
          %s2108 = sld [smem:[#allocation2 + $0x52]]
          %v2109 = vstv %s2108
          %v2110 = vmul.f32 %v2084, %v2109
          %v2111 = vmul.f32 %v2085, %v2109
          %v2112 = vmul.f32 %v2086, %v2109
          %v2113 = vmul.f32 %v2087, %v2109
          %v2114 = vadd.f32 %v2030, %v2110
          %v2115 = vadd.f32 %v2031, %v2111
          %v2116 = vadd.f32 %v2032, %v2112
          %v2117 = vadd.f32 %v2033, %v2113
          %s2118 = sld [smem:[#allocation2 + $0x72]]
          %v2119 = vstv %s2118
          %v2120 = vmul.f32 %v2084, %v2119
          %v2121 = vmul.f32 %v2085, %v2119
          %v2122 = vmul.f32 %v2086, %v2119
          %v2123 = vmul.f32 %v2087, %v2119
          %v2124 = vadd.f32 %v2040, %v2120
          %v2125 = vadd.f32 %v2041, %v2121
          %v2126 = vadd.f32 %v2042, %v2122
          %v2127 = vadd.f32 %v2043, %v2123
          %2128 = vset.pattern.permute.xlu0 19
          %2129 = vperm.xlu0 %2128, %v520
          %v2130 = vpop.permute.xlu0 %2129
          %2132 = vset.pattern.permute.xlu0 19
          %2133 = vperm.xlu0 %2132, %v521
          %v2134 = vpop.permute.xlu0 %2133
          %2136 = vset.pattern.permute.xlu0 19
          %2137 = vperm.xlu0 %2136, %v522
          %v2138 = vpop.permute.xlu0 %2137
          %2140 = vset.pattern.permute.xlu0 19
          %2141 = vperm.xlu0 %2140, %v523
          %v2142 = vpop.permute.xlu0 %2141
          %v2144 = vmul.f32 %v358, %v2130
          %v2145 = vmul.f32 %v359, %v2134
          %v2146 = vmul.f32 %v360, %v2138
          %v2147 = vmul.f32 %v361, %v2142
          %2148 = vset.pattern.permute.xlu0 19
          %2149 = vperm.xlu0 %2148, %v452
          %v2150 = vpop.permute.xlu0 %2149
          %2152 = vset.pattern.permute.xlu0 19
          %2153 = vperm.xlu0 %2152, %v453
          %v2154 = vpop.permute.xlu0 %2153
          %2156 = vset.pattern.permute.xlu0 19
          %2157 = vperm.xlu0 %2156, %v454
          %v2158 = vpop.permute.xlu0 %2157
          %2160 = vset.pattern.permute.xlu0 19
          %2161 = vperm.xlu0 %2160, %v455
          %v2162 = vpop.permute.xlu0 %2161
          %v2164 = vadd.f32 %v2150, %v2144
          %v2165 = vadd.f32 %v2154, %v2145
          %v2166 = vadd.f32 %v2158, %v2146
          %v2167 = vadd.f32 %v2162, %v2147
          %v2168 = vmax.f32 %v2164, 0.0
          %v2169 = vmax.f32 %v2165, 0.0
          %v2170 = vmax.f32 %v2166, 0.0
          %v2171 = vmax.f32 %v2167, 0.0
          %s2172 = sld [smem:[#allocation2 + $0x13]]
          %v2173 = vstv %s2172
          %v2174 = vmul.f32 %v2168, %v2173
          %v2175 = vmul.f32 %v2169, %v2173
          %v2176 = vmul.f32 %v2170, %v2173
          %v2177 = vmul.f32 %v2171, %v2173
          %v2178 = vadd.f32 %v2094, %v2174
          %v2179 = vadd.f32 %v2095, %v2175
          %v2180 = vadd.f32 %v2096, %v2176
          %v2181 = vadd.f32 %v2097, %v2177
          %s2182 = sld [smem:[#allocation2 + $0x33]]
          %v2183 = vstv %s2182
          %v2184 = vmul.f32 %v2168, %v2183
          %v2185 = vmul.f32 %v2169, %v2183
          %v2186 = vmul.f32 %v2170, %v2183
          %v2187 = vmul.f32 %v2171, %v2183
          %v2188 = vadd.f32 %v2104, %v2184
          %v2189 = vadd.f32 %v2105, %v2185
          %v2190 = vadd.f32 %v2106, %v2186
          %v2191 = vadd.f32 %v2107, %v2187
          %s2192 = sld [smem:[#allocation2 + $0x53]]
          %v2193 = vstv %s2192
          %v2194 = vmul.f32 %v2168, %v2193
          %v2195 = vmul.f32 %v2169, %v2193
          %v2196 = vmul.f32 %v2170, %v2193
          %v2197 = vmul.f32 %v2171, %v2193
          %v2198 = vadd.f32 %v2114, %v2194
          %v2199 = vadd.f32 %v2115, %v2195
          %v2200 = vadd.f32 %v2116, %v2196
          %v2201 = vadd.f32 %v2117, %v2197
          %s2202 = sld [smem:[#allocation2 + $0x73]]
          %v2203 = vstv %s2202
          %v2204 = vmul.f32 %v2168, %v2203
          %v2205 = vmul.f32 %v2169, %v2203
          %v2206 = vmul.f32 %v2170, %v2203
          %v2207 = vmul.f32 %v2171, %v2203
          %v2208 = vadd.f32 %v2124, %v2204
          %v2209 = vadd.f32 %v2125, %v2205
          %v2210 = vadd.f32 %v2126, %v2206
          %v2211 = vadd.f32 %v2127, %v2207
          %2212 = vset.pattern.permute.xlu0 20
          %2213 = vperm.xlu0 %2212, %v520
          %v2214 = vpop.permute.xlu0 %2213
          %2216 = vset.pattern.permute.xlu0 20
          %2217 = vperm.xlu0 %2216, %v521
          %v2218 = vpop.permute.xlu0 %2217
          %2220 = vset.pattern.permute.xlu0 20
          %2221 = vperm.xlu0 %2220, %v522
          %v2222 = vpop.permute.xlu0 %2221
          %2224 = vset.pattern.permute.xlu0 20
          %2225 = vperm.xlu0 %2224, %v523
          %v2226 = vpop.permute.xlu0 %2225
          %v2228 = vmul.f32 %v358, %v2214
          %v2229 = vmul.f32 %v359, %v2218
          %v2230 = vmul.f32 %v360, %v2222
          %v2231 = vmul.f32 %v361, %v2226
          %2232 = vset.pattern.permute.xlu0 20
          %2233 = vperm.xlu0 %2232, %v452
          %v2234 = vpop.permute.xlu0 %2233
          %2236 = vset.pattern.permute.xlu0 20
          %2237 = vperm.xlu0 %2236, %v453
          %v2238 = vpop.permute.xlu0 %2237
          %2240 = vset.pattern.permute.xlu0 20
          %2241 = vperm.xlu0 %2240, %v454
          %v2242 = vpop.permute.xlu0 %2241
          %2244 = vset.pattern.permute.xlu0 20
          %2245 = vperm.xlu0 %2244, %v455
          %v2246 = vpop.permute.xlu0 %2245
          %v2248 = vadd.f32 %v2234, %v2228
          %v2249 = vadd.f32 %v2238, %v2229
          %v2250 = vadd.f32 %v2242, %v2230
          %v2251 = vadd.f32 %v2246, %v2231
          %v2252 = vmax.f32 %v2248, 0.0
          %v2253 = vmax.f32 %v2249, 0.0
          %v2254 = vmax.f32 %v2250, 0.0
          %v2255 = vmax.f32 %v2251, 0.0
          %s2256 = sld [smem:[#allocation2 + $0x14]]
          %v2257 = vstv %s2256
          %v2258 = vmul.f32 %v2252, %v2257
          %v2259 = vmul.f32 %v2253, %v2257
          %v2260 = vmul.f32 %v2254, %v2257
          %v2261 = vmul.f32 %v2255, %v2257
          %v2262 = vadd.f32 %v2178, %v2258
          %v2263 = vadd.f32 %v2179, %v2259
          %v2264 = vadd.f32 %v2180, %v2260
          %v2265 = vadd.f32 %v2181, %v2261
          %s2266 = sld [smem:[#allocation2 + $0x34]]
          %v2267 = vstv %s2266
          %v2268 = vmul.f32 %v2252, %v2267
          %v2269 = vmul.f32 %v2253, %v2267
          %v2270 = vmul.f32 %v2254, %v2267
          %v2271 = vmul.f32 %v2255, %v2267
          %v2272 = vadd.f32 %v2188, %v2268
          %v2273 = vadd.f32 %v2189, %v2269
          %v2274 = vadd.f32 %v2190, %v2270
          %v2275 = vadd.f32 %v2191, %v2271
          %s2276 = sld [smem:[#allocation2 + $0x54]]
          %v2277 = vstv %s2276
          %v2278 = vmul.f32 %v2252, %v2277
          %v2279 = vmul.f32 %v2253, %v2277
          %v2280 = vmul.f32 %v2254, %v2277
          %v2281 = vmul.f32 %v2255, %v2277
          %v2282 = vadd.f32 %v2198, %v2278
          %v2283 = vadd.f32 %v2199, %v2279
          %v2284 = vadd.f32 %v2200, %v2280
          %v2285 = vadd.f32 %v2201, %v2281
          %s2286 = sld [smem:[#allocation2 + $0x74]]
          %v2287 = vstv %s2286
          %v2288 = vmul.f32 %v2252, %v2287
          %v2289 = vmul.f32 %v2253, %v2287
          %v2290 = vmul.f32 %v2254, %v2287
          %v2291 = vmul.f32 %v2255, %v2287
          %v2292 = vadd.f32 %v2208, %v2288
          %v2293 = vadd.f32 %v2209, %v2289
          %v2294 = vadd.f32 %v2210, %v2290
          %v2295 = vadd.f32 %v2211, %v2291
          %2296 = vset.pattern.permute.xlu0 21
          %2297 = vperm.xlu0 %2296, %v520
          %v2298 = vpop.permute.xlu0 %2297
          %2300 = vset.pattern.permute.xlu0 21
          %2301 = vperm.xlu0 %2300, %v521
          %v2302 = vpop.permute.xlu0 %2301
          %2304 = vset.pattern.permute.xlu0 21
          %2305 = vperm.xlu0 %2304, %v522
          %v2306 = vpop.permute.xlu0 %2305
          %2308 = vset.pattern.permute.xlu0 21
          %2309 = vperm.xlu0 %2308, %v523
          %v2310 = vpop.permute.xlu0 %2309
          %v2312 = vmul.f32 %v358, %v2298
          %v2313 = vmul.f32 %v359, %v2302
          %v2314 = vmul.f32 %v360, %v2306
          %v2315 = vmul.f32 %v361, %v2310
          %2316 = vset.pattern.permute.xlu0 21
          %2317 = vperm.xlu0 %2316, %v452
          %v2318 = vpop.permute.xlu0 %2317
          %2320 = vset.pattern.permute.xlu0 21
          %2321 = vperm.xlu0 %2320, %v453
          %v2322 = vpop.permute.xlu0 %2321
          %2324 = vset.pattern.permute.xlu0 21
          %2325 = vperm.xlu0 %2324, %v454
          %v2326 = vpop.permute.xlu0 %2325
          %2328 = vset.pattern.permute.xlu0 21
          %2329 = vperm.xlu0 %2328, %v455
          %v2330 = vpop.permute.xlu0 %2329
          %v2332 = vadd.f32 %v2318, %v2312
          %v2333 = vadd.f32 %v2322, %v2313
          %v2334 = vadd.f32 %v2326, %v2314
          %v2335 = vadd.f32 %v2330, %v2315
          %v2336 = vmax.f32 %v2332, 0.0
          %v2337 = vmax.f32 %v2333, 0.0
          %v2338 = vmax.f32 %v2334, 0.0
          %v2339 = vmax.f32 %v2335, 0.0
          %s2340 = sld [smem:[#allocation2 + $0x15]]
          %v2341 = vstv %s2340
          %v2342 = vmul.f32 %v2336, %v2341
          %v2343 = vmul.f32 %v2337, %v2341
          %v2344 = vmul.f32 %v2338, %v2341
          %v2345 = vmul.f32 %v2339, %v2341
          %v2346 = vadd.f32 %v2262, %v2342
          %v2347 = vadd.f32 %v2263, %v2343
          %v2348 = vadd.f32 %v2264, %v2344
          %v2349 = vadd.f32 %v2265, %v2345
          %s2350 = sld [smem:[#allocation2 + $0x35]]
          %v2351 = vstv %s2350
          %v2352 = vmul.f32 %v2336, %v2351
          %v2353 = vmul.f32 %v2337, %v2351
          %v2354 = vmul.f32 %v2338, %v2351
          %v2355 = vmul.f32 %v2339, %v2351
          %v2356 = vadd.f32 %v2272, %v2352
          %v2357 = vadd.f32 %v2273, %v2353
          %v2358 = vadd.f32 %v2274, %v2354
          %v2359 = vadd.f32 %v2275, %v2355
          %s2360 = sld [smem:[#allocation2 + $0x55]]
          %v2361 = vstv %s2360
          %v2362 = vmul.f32 %v2336, %v2361
          %v2363 = vmul.f32 %v2337, %v2361
          %v2364 = vmul.f32 %v2338, %v2361
          %v2365 = vmul.f32 %v2339, %v2361
          %v2366 = vadd.f32 %v2282, %v2362
          %v2367 = vadd.f32 %v2283, %v2363
          %v2368 = vadd.f32 %v2284, %v2364
          %v2369 = vadd.f32 %v2285, %v2365
          %s2370 = sld [smem:[#allocation2 + $0x75]]
          %v2371 = vstv %s2370
          %v2372 = vmul.f32 %v2336, %v2371
          %v2373 = vmul.f32 %v2337, %v2371
          %v2374 = vmul.f32 %v2338, %v2371
          %v2375 = vmul.f32 %v2339, %v2371
          %v2376 = vadd.f32 %v2292, %v2372
          %v2377 = vadd.f32 %v2293, %v2373
          %v2378 = vadd.f32 %v2294, %v2374
          %v2379 = vadd.f32 %v2295, %v2375
          %2380 = vset.pattern.permute.xlu0 22
          %2381 = vperm.xlu0 %2380, %v520
          %v2382 = vpop.permute.xlu0 %2381
          %2384 = vset.pattern.permute.xlu0 22
          %2385 = vperm.xlu0 %2384, %v521
          %v2386 = vpop.permute.xlu0 %2385
          %2388 = vset.pattern.permute.xlu0 22
          %2389 = vperm.xlu0 %2388, %v522
          %v2390 = vpop.permute.xlu0 %2389
          %2392 = vset.pattern.permute.xlu0 22
          %2393 = vperm.xlu0 %2392, %v523
          %v2394 = vpop.permute.xlu0 %2393
          %v2396 = vmul.f32 %v358, %v2382
          %v2397 = vmul.f32 %v359, %v2386
          %v2398 = vmul.f32 %v360, %v2390
          %v2399 = vmul.f32 %v361, %v2394
          %2400 = vset.pattern.permute.xlu0 22
          %2401 = vperm.xlu0 %2400, %v452
          %v2402 = vpop.permute.xlu0 %2401
          %2404 = vset.pattern.permute.xlu0 22
          %2405 = vperm.xlu0 %2404, %v453
          %v2406 = vpop.permute.xlu0 %2405
          %2408 = vset.pattern.permute.xlu0 22
          %2409 = vperm.xlu0 %2408, %v454
          %v2410 = vpop.permute.xlu0 %2409
          %2412 = vset.pattern.permute.xlu0 22
          %2413 = vperm.xlu0 %2412, %v455
          %v2414 = vpop.permute.xlu0 %2413
          %v2416 = vadd.f32 %v2402, %v2396
          %v2417 = vadd.f32 %v2406, %v2397
          %v2418 = vadd.f32 %v2410, %v2398
          %v2419 = vadd.f32 %v2414, %v2399
          %v2420 = vmax.f32 %v2416, 0.0
          %v2421 = vmax.f32 %v2417, 0.0
          %v2422 = vmax.f32 %v2418, 0.0
          %v2423 = vmax.f32 %v2419, 0.0
          %s2424 = sld [smem:[#allocation2 + $0x16]]
          %v2425 = vstv %s2424
          %v2426 = vmul.f32 %v2420, %v2425
          %v2427 = vmul.f32 %v2421, %v2425
          %v2428 = vmul.f32 %v2422, %v2425
          %v2429 = vmul.f32 %v2423, %v2425
          %v2430 = vadd.f32 %v2346, %v2426
          %v2431 = vadd.f32 %v2347, %v2427
          %v2432 = vadd.f32 %v2348, %v2428
          %v2433 = vadd.f32 %v2349, %v2429
          %s2434 = sld [smem:[#allocation2 + $0x36]]
          %v2435 = vstv %s2434
          %v2436 = vmul.f32 %v2420, %v2435
          %v2437 = vmul.f32 %v2421, %v2435
          %v2438 = vmul.f32 %v2422, %v2435
          %v2439 = vmul.f32 %v2423, %v2435
          %v2440 = vadd.f32 %v2356, %v2436
          %v2441 = vadd.f32 %v2357, %v2437
          %v2442 = vadd.f32 %v2358, %v2438
          %v2443 = vadd.f32 %v2359, %v2439
          %s2444 = sld [smem:[#allocation2 + $0x56]]
          %v2445 = vstv %s2444
          %v2446 = vmul.f32 %v2420, %v2445
          %v2447 = vmul.f32 %v2421, %v2445
          %v2448 = vmul.f32 %v2422, %v2445
          %v2449 = vmul.f32 %v2423, %v2445
          %v2450 = vadd.f32 %v2366, %v2446
          %v2451 = vadd.f32 %v2367, %v2447
          %v2452 = vadd.f32 %v2368, %v2448
          %v2453 = vadd.f32 %v2369, %v2449
          %s2454 = sld [smem:[#allocation2 + $0x76]]
          %v2455 = vstv %s2454
          %v2456 = vmul.f32 %v2420, %v2455
          %v2457 = vmul.f32 %v2421, %v2455
          %v2458 = vmul.f32 %v2422, %v2455
          %v2459 = vmul.f32 %v2423, %v2455
          %v2460 = vadd.f32 %v2376, %v2456
          %v2461 = vadd.f32 %v2377, %v2457
          %v2462 = vadd.f32 %v2378, %v2458
          %v2463 = vadd.f32 %v2379, %v2459
          %2464 = vset.pattern.permute.xlu0 23
          %2465 = vperm.xlu0 %2464, %v520
          %v2466 = vpop.permute.xlu0 %2465
          %2468 = vset.pattern.permute.xlu0 23
          %2469 = vperm.xlu0 %2468, %v521
          %v2470 = vpop.permute.xlu0 %2469
          %2472 = vset.pattern.permute.xlu0 23
          %2473 = vperm.xlu0 %2472, %v522
          %v2474 = vpop.permute.xlu0 %2473
          %2476 = vset.pattern.permute.xlu0 23
          %2477 = vperm.xlu0 %2476, %v523
          %v2478 = vpop.permute.xlu0 %2477
          %v2480 = vmul.f32 %v358, %v2466
          %v2481 = vmul.f32 %v359, %v2470
          %v2482 = vmul.f32 %v360, %v2474
          %v2483 = vmul.f32 %v361, %v2478
          %2484 = vset.pattern.permute.xlu0 23
          %2485 = vperm.xlu0 %2484, %v452
          %v2486 = vpop.permute.xlu0 %2485
          %2488 = vset.pattern.permute.xlu0 23
          %2489 = vperm.xlu0 %2488, %v453
          %v2490 = vpop.permute.xlu0 %2489
          %2492 = vset.pattern.permute.xlu0 23
          %2493 = vperm.xlu0 %2492, %v454
          %v2494 = vpop.permute.xlu0 %2493
          %2496 = vset.pattern.permute.xlu0 23
          %2497 = vperm.xlu0 %2496, %v455
          %v2498 = vpop.permute.xlu0 %2497
          %v2500 = vadd.f32 %v2486, %v2480
          %v2501 = vadd.f32 %v2490, %v2481
          %v2502 = vadd.f32 %v2494, %v2482
          %v2503 = vadd.f32 %v2498, %v2483
          %v2504 = vmax.f32 %v2500, 0.0
          %v2505 = vmax.f32 %v2501, 0.0
          %v2506 = vmax.f32 %v2502, 0.0
          %v2507 = vmax.f32 %v2503, 0.0
          %s2508 = sld [smem:[#allocation2 + $0x17]]
          %v2509 = vstv %s2508
          %v2510 = vmul.f32 %v2504, %v2509
          %v2511 = vmul.f32 %v2505, %v2509
          %v2512 = vmul.f32 %v2506, %v2509
          %v2513 = vmul.f32 %v2507, %v2509
          %v2514 = vadd.f32 %v2430, %v2510
          %v2515 = vadd.f32 %v2431, %v2511
          %v2516 = vadd.f32 %v2432, %v2512
          %v2517 = vadd.f32 %v2433, %v2513
          %s2518 = sld [smem:[#allocation2 + $0x37]]
          %v2519 = vstv %s2518
          %v2520 = vmul.f32 %v2504, %v2519
          %v2521 = vmul.f32 %v2505, %v2519
          %v2522 = vmul.f32 %v2506, %v2519
          %v2523 = vmul.f32 %v2507, %v2519
          %v2524 = vadd.f32 %v2440, %v2520
          %v2525 = vadd.f32 %v2441, %v2521
          %v2526 = vadd.f32 %v2442, %v2522
          %v2527 = vadd.f32 %v2443, %v2523
          %s2528 = sld [smem:[#allocation2 + $0x57]]
          %v2529 = vstv %s2528
          %v2530 = vmul.f32 %v2504, %v2529
          %v2531 = vmul.f32 %v2505, %v2529
          %v2532 = vmul.f32 %v2506, %v2529
          %v2533 = vmul.f32 %v2507, %v2529
          %v2534 = vadd.f32 %v2450, %v2530
          %v2535 = vadd.f32 %v2451, %v2531
          %v2536 = vadd.f32 %v2452, %v2532
          %v2537 = vadd.f32 %v2453, %v2533
          %s2538 = sld [smem:[#allocation2 + $0x77]]
          %v2539 = vstv %s2538
          %v2540 = vmul.f32 %v2504, %v2539
          %v2541 = vmul.f32 %v2505, %v2539
          %v2542 = vmul.f32 %v2506, %v2539
          %v2543 = vmul.f32 %v2507, %v2539
          %v2544 = vadd.f32 %v2460, %v2540
          %v2545 = vadd.f32 %v2461, %v2541
          %v2546 = vadd.f32 %v2462, %v2542
          %v2547 = vadd.f32 %v2463, %v2543
          %2548 = vset.pattern.permute.xlu0 24
          %2549 = vperm.xlu0 %2548, %v520
          %v2550 = vpop.permute.xlu0 %2549
          %2552 = vset.pattern.permute.xlu0 24
          %2553 = vperm.xlu0 %2552, %v521
          %v2554 = vpop.permute.xlu0 %2553
          %2556 = vset.pattern.permute.xlu0 24
          %2557 = vperm.xlu0 %2556, %v522
          %v2558 = vpop.permute.xlu0 %2557
          %2560 = vset.pattern.permute.xlu0 24
          %2561 = vperm.xlu0 %2560, %v523
          %v2562 = vpop.permute.xlu0 %2561
          %v2564 = vmul.f32 %v358, %v2550
          %v2565 = vmul.f32 %v359, %v2554
          %v2566 = vmul.f32 %v360, %v2558
          %v2567 = vmul.f32 %v361, %v2562
          %2568 = vset.pattern.permute.xlu0 24
          %2569 = vperm.xlu0 %2568, %v452
          %v2570 = vpop.permute.xlu0 %2569
          %2572 = vset.pattern.permute.xlu0 24
          %2573 = vperm.xlu0 %2572, %v453
          %v2574 = vpop.permute.xlu0 %2573
          %2576 = vset.pattern.permute.xlu0 24
          %2577 = vperm.xlu0 %2576, %v454
          %v2578 = vpop.permute.xlu0 %2577
          %2580 = vset.pattern.permute.xlu0 24
          %2581 = vperm.xlu0 %2580, %v455
          %v2582 = vpop.permute.xlu0 %2581
          %v2584 = vadd.f32 %v2570, %v2564
          %v2585 = vadd.f32 %v2574, %v2565
          %v2586 = vadd.f32 %v2578, %v2566
          %v2587 = vadd.f32 %v2582, %v2567
          %v2588 = vmax.f32 %v2584, 0.0
          %v2589 = vmax.f32 %v2585, 0.0
          %v2590 = vmax.f32 %v2586, 0.0
          %v2591 = vmax.f32 %v2587, 0.0
          %s2592 = sld [smem:[#allocation2 + $0x18]]
          %v2593 = vstv %s2592
          %v2594 = vmul.f32 %v2588, %v2593
          %v2595 = vmul.f32 %v2589, %v2593
          %v2596 = vmul.f32 %v2590, %v2593
          %v2597 = vmul.f32 %v2591, %v2593
          %v2598 = vadd.f32 %v2514, %v2594
          %v2599 = vadd.f32 %v2515, %v2595
          %v2600 = vadd.f32 %v2516, %v2596
          %v2601 = vadd.f32 %v2517, %v2597
          %s2602 = sld [smem:[#allocation2 + $0x38]]
          %v2603 = vstv %s2602
          %v2604 = vmul.f32 %v2588, %v2603
          %v2605 = vmul.f32 %v2589, %v2603
          %v2606 = vmul.f32 %v2590, %v2603
          %v2607 = vmul.f32 %v2591, %v2603
          %v2608 = vadd.f32 %v2524, %v2604
          %v2609 = vadd.f32 %v2525, %v2605
          %v2610 = vadd.f32 %v2526, %v2606
          %v2611 = vadd.f32 %v2527, %v2607
          %s2612 = sld [smem:[#allocation2 + $0x58]]
          %v2613 = vstv %s2612
          %v2614 = vmul.f32 %v2588, %v2613
          %v2615 = vmul.f32 %v2589, %v2613
          %v2616 = vmul.f32 %v2590, %v2613
          %v2617 = vmul.f32 %v2591, %v2613
          %v2618 = vadd.f32 %v2534, %v2614
          %v2619 = vadd.f32 %v2535, %v2615
          %v2620 = vadd.f32 %v2536, %v2616
          %v2621 = vadd.f32 %v2537, %v2617
          %s2622 = sld [smem:[#allocation2 + $0x78]]
          %v2623 = vstv %s2622
          %v2624 = vmul.f32 %v2588, %v2623
          %v2625 = vmul.f32 %v2589, %v2623
          %v2626 = vmul.f32 %v2590, %v2623
          %v2627 = vmul.f32 %v2591, %v2623
          %v2628 = vadd.f32 %v2544, %v2624
          %v2629 = vadd.f32 %v2545, %v2625
          %v2630 = vadd.f32 %v2546, %v2626
          %v2631 = vadd.f32 %v2547, %v2627
          %2632 = vset.pattern.permute.xlu0 25
          %2633 = vperm.xlu0 %2632, %v520
          %v2634 = vpop.permute.xlu0 %2633
          %2636 = vset.pattern.permute.xlu0 25
          %2637 = vperm.xlu0 %2636, %v521
          %v2638 = vpop.permute.xlu0 %2637
          %2640 = vset.pattern.permute.xlu0 25
          %2641 = vperm.xlu0 %2640, %v522
          %v2642 = vpop.permute.xlu0 %2641
          %2644 = vset.pattern.permute.xlu0 25
          %2645 = vperm.xlu0 %2644, %v523
          %v2646 = vpop.permute.xlu0 %2645
          %v2648 = vmul.f32 %v358, %v2634
          %v2649 = vmul.f32 %v359, %v2638
          %v2650 = vmul.f32 %v360, %v2642
          %v2651 = vmul.f32 %v361, %v2646
          %2652 = vset.pattern.permute.xlu0 25
          %2653 = vperm.xlu0 %2652, %v452
          %v2654 = vpop.permute.xlu0 %2653
          %2656 = vset.pattern.permute.xlu0 25
          %2657 = vperm.xlu0 %2656, %v453
          %v2658 = vpop.permute.xlu0 %2657
          %2660 = vset.pattern.permute.xlu0 25
          %2661 = vperm.xlu0 %2660, %v454
          %v2662 = vpop.permute.xlu0 %2661
          %2664 = vset.pattern.permute.xlu0 25
          %2665 = vperm.xlu0 %2664, %v455
          %v2666 = vpop.permute.xlu0 %2665
          %v2668 = vadd.f32 %v2654, %v2648
          %v2669 = vadd.f32 %v2658, %v2649
          %v2670 = vadd.f32 %v2662, %v2650
          %v2671 = vadd.f32 %v2666, %v2651
          %v2672 = vmax.f32 %v2668, 0.0
          %v2673 = vmax.f32 %v2669, 0.0
          %v2674 = vmax.f32 %v2670, 0.0
          %v2675 = vmax.f32 %v2671, 0.0
          %s2676 = sld [smem:[#allocation2 + $0x19]]
          %v2677 = vstv %s2676
          %v2678 = vmul.f32 %v2672, %v2677
          %v2679 = vmul.f32 %v2673, %v2677
          %v2680 = vmul.f32 %v2674, %v2677
          %v2681 = vmul.f32 %v2675, %v2677
          %v2682 = vadd.f32 %v2598, %v2678
          %v2683 = vadd.f32 %v2599, %v2679
          %v2684 = vadd.f32 %v2600, %v2680
          %v2685 = vadd.f32 %v2601, %v2681
          %s2686 = sld [smem:[#allocation2 + $0x39]]
          %v2687 = vstv %s2686
          %v2688 = vmul.f32 %v2672, %v2687
          %v2689 = vmul.f32 %v2673, %v2687
          %v2690 = vmul.f32 %v2674, %v2687
          %v2691 = vmul.f32 %v2675, %v2687
          %v2692 = vadd.f32 %v2608, %v2688
          %v2693 = vadd.f32 %v2609, %v2689
          %v2694 = vadd.f32 %v2610, %v2690
          %v2695 = vadd.f32 %v2611, %v2691
          %s2696 = sld [smem:[#allocation2 + $0x59]]
          %v2697 = vstv %s2696
          %v2698 = vmul.f32 %v2672, %v2697
          %v2699 = vmul.f32 %v2673, %v2697
          %v2700 = vmul.f32 %v2674, %v2697
          %v2701 = vmul.f32 %v2675, %v2697
          %v2702 = vadd.f32 %v2618, %v2698
          %v2703 = vadd.f32 %v2619, %v2699
          %v2704 = vadd.f32 %v2620, %v2700
          %v2705 = vadd.f32 %v2621, %v2701
          %s2706 = sld [smem:[#allocation2 + $0x79]]
          %v2707 = vstv %s2706
          %v2708 = vmul.f32 %v2672, %v2707
          %v2709 = vmul.f32 %v2673, %v2707
          %v2710 = vmul.f32 %v2674, %v2707
          %v2711 = vmul.f32 %v2675, %v2707
          %v2712 = vadd.f32 %v2628, %v2708
          %v2713 = vadd.f32 %v2629, %v2709
          %v2714 = vadd.f32 %v2630, %v2710
          %v2715 = vadd.f32 %v2631, %v2711
          %2716 = vset.pattern.permute.xlu0 26
          %2717 = vperm.xlu0 %2716, %v520
          %v2718 = vpop.permute.xlu0 %2717
          %2720 = vset.pattern.permute.xlu0 26
          %2721 = vperm.xlu0 %2720, %v521
          %v2722 = vpop.permute.xlu0 %2721
          %2724 = vset.pattern.permute.xlu0 26
          %2725 = vperm.xlu0 %2724, %v522
          %v2726 = vpop.permute.xlu0 %2725
          %2728 = vset.pattern.permute.xlu0 26
          %2729 = vperm.xlu0 %2728, %v523
          %v2730 = vpop.permute.xlu0 %2729
          %v2732 = vmul.f32 %v358, %v2718
          %v2733 = vmul.f32 %v359, %v2722
          %v2734 = vmul.f32 %v360, %v2726
          %v2735 = vmul.f32 %v361, %v2730
          %2736 = vset.pattern.permute.xlu0 26
          %2737 = vperm.xlu0 %2736, %v452
          %v2738 = vpop.permute.xlu0 %2737
          %2740 = vset.pattern.permute.xlu0 26
          %2741 = vperm.xlu0 %2740, %v453
          %v2742 = vpop.permute.xlu0 %2741
          %2744 = vset.pattern.permute.xlu0 26
          %2745 = vperm.xlu0 %2744, %v454
          %v2746 = vpop.permute.xlu0 %2745
          %2748 = vset.pattern.permute.xlu0 26
          %2749 = vperm.xlu0 %2748, %v455
          %v2750 = vpop.permute.xlu0 %2749
          %v2752 = vadd.f32 %v2738, %v2732
          %v2753 = vadd.f32 %v2742, %v2733
          %v2754 = vadd.f32 %v2746, %v2734
          %v2755 = vadd.f32 %v2750, %v2735
          %v2756 = vmax.f32 %v2752, 0.0
          %v2757 = vmax.f32 %v2753, 0.0
          %v2758 = vmax.f32 %v2754, 0.0
          %v2759 = vmax.f32 %v2755, 0.0
          %s2760 = sld [smem:[#allocation2 + $0x1a]]
          %v2761 = vstv %s2760
          %v2762 = vmul.f32 %v2756, %v2761
          %v2763 = vmul.f32 %v2757, %v2761
          %v2764 = vmul.f32 %v2758, %v2761
          %v2765 = vmul.f32 %v2759, %v2761
          %v2766 = vadd.f32 %v2682, %v2762
          %v2767 = vadd.f32 %v2683, %v2763
          %v2768 = vadd.f32 %v2684, %v2764
          %v2769 = vadd.f32 %v2685, %v2765
          %s2770 = sld [smem:[#allocation2 + $0x3a]]
          %v2771 = vstv %s2770
          %v2772 = vmul.f32 %v2756, %v2771
          %v2773 = vmul.f32 %v2757, %v2771
          %v2774 = vmul.f32 %v2758, %v2771
          %v2775 = vmul.f32 %v2759, %v2771
          %v2776 = vadd.f32 %v2692, %v2772
          %v2777 = vadd.f32 %v2693, %v2773
          %v2778 = vadd.f32 %v2694, %v2774
          %v2779 = vadd.f32 %v2695, %v2775
          %s2780 = sld [smem:[#allocation2 + $0x5a]]
          %v2781 = vstv %s2780
          %v2782 = vmul.f32 %v2756, %v2781
          %v2783 = vmul.f32 %v2757, %v2781
          %v2784 = vmul.f32 %v2758, %v2781
          %v2785 = vmul.f32 %v2759, %v2781
          %v2786 = vadd.f32 %v2702, %v2782
          %v2787 = vadd.f32 %v2703, %v2783
          %v2788 = vadd.f32 %v2704, %v2784
          %v2789 = vadd.f32 %v2705, %v2785
          %s2790 = sld [smem:[#allocation2 + $0x7a]]
          %v2791 = vstv %s2790
          %v2792 = vmul.f32 %v2756, %v2791
          %v2793 = vmul.f32 %v2757, %v2791
          %v2794 = vmul.f32 %v2758, %v2791
          %v2795 = vmul.f32 %v2759, %v2791
          %v2796 = vadd.f32 %v2712, %v2792
          %v2797 = vadd.f32 %v2713, %v2793
          %v2798 = vadd.f32 %v2714, %v2794
          %v2799 = vadd.f32 %v2715, %v2795
          %2800 = vset.pattern.permute.xlu0 27
          %2801 = vperm.xlu0 %2800, %v520
          %v2802 = vpop.permute.xlu0 %2801
          %2804 = vset.pattern.permute.xlu0 27
          %2805 = vperm.xlu0 %2804, %v521
          %v2806 = vpop.permute.xlu0 %2805
          %2808 = vset.pattern.permute.xlu0 27
          %2809 = vperm.xlu0 %2808, %v522
          %v2810 = vpop.permute.xlu0 %2809
          %2812 = vset.pattern.permute.xlu0 27
          %2813 = vperm.xlu0 %2812, %v523
          %v2814 = vpop.permute.xlu0 %2813
          %v2816 = vmul.f32 %v358, %v2802
          %v2817 = vmul.f32 %v359, %v2806
          %v2818 = vmul.f32 %v360, %v2810
          %v2819 = vmul.f32 %v361, %v2814
          %2820 = vset.pattern.permute.xlu0 27
          %2821 = vperm.xlu0 %2820, %v452
          %v2822 = vpop.permute.xlu0 %2821
          %2824 = vset.pattern.permute.xlu0 27
          %2825 = vperm.xlu0 %2824, %v453
          %v2826 = vpop.permute.xlu0 %2825
          %2828 = vset.pattern.permute.xlu0 27
          %2829 = vperm.xlu0 %2828, %v454
          %v2830 = vpop.permute.xlu0 %2829
          %2832 = vset.pattern.permute.xlu0 27
          %2833 = vperm.xlu0 %2832, %v455
          %v2834 = vpop.permute.xlu0 %2833
          %v2836 = vadd.f32 %v2822, %v2816
          %v2837 = vadd.f32 %v2826, %v2817
          %v2838 = vadd.f32 %v2830, %v2818
          %v2839 = vadd.f32 %v2834, %v2819
          %v2840 = vmax.f32 %v2836, 0.0
          %v2841 = vmax.f32 %v2837, 0.0
          %v2842 = vmax.f32 %v2838, 0.0
          %v2843 = vmax.f32 %v2839, 0.0
          %s2844 = sld [smem:[#allocation2 + $0x1b]]
          %v2845 = vstv %s2844
          %v2846 = vmul.f32 %v2840, %v2845
          %v2847 = vmul.f32 %v2841, %v2845
          %v2848 = vmul.f32 %v2842, %v2845
          %v2849 = vmul.f32 %v2843, %v2845
          %v2850 = vadd.f32 %v2766, %v2846
          %v2851 = vadd.f32 %v2767, %v2847
          %v2852 = vadd.f32 %v2768, %v2848
          %v2853 = vadd.f32 %v2769, %v2849
          %s2854 = sld [smem:[#allocation2 + $0x3b]]
          %v2855 = vstv %s2854
          %v2856 = vmul.f32 %v2840, %v2855
          %v2857 = vmul.f32 %v2841, %v2855
          %v2858 = vmul.f32 %v2842, %v2855
          %v2859 = vmul.f32 %v2843, %v2855
          %v2860 = vadd.f32 %v2776, %v2856
          %v2861 = vadd.f32 %v2777, %v2857
          %v2862 = vadd.f32 %v2778, %v2858
          %v2863 = vadd.f32 %v2779, %v2859
          %s2864 = sld [smem:[#allocation2 + $0x5b]]
          %v2865 = vstv %s2864
          %v2866 = vmul.f32 %v2840, %v2865
          %v2867 = vmul.f32 %v2841, %v2865
          %v2868 = vmul.f32 %v2842, %v2865
          %v2869 = vmul.f32 %v2843, %v2865
          %v2870 = vadd.f32 %v2786, %v2866
          %v2871 = vadd.f32 %v2787, %v2867
          %v2872 = vadd.f32 %v2788, %v2868
          %v2873 = vadd.f32 %v2789, %v2869
          %s2874 = sld [smem:[#allocation2 + $0x7b]]
          %v2875 = vstv %s2874
          %v2876 = vmul.f32 %v2840, %v2875
          %v2877 = vmul.f32 %v2841, %v2875
          %v2878 = vmul.f32 %v2842, %v2875
          %v2879 = vmul.f32 %v2843, %v2875
          %v2880 = vadd.f32 %v2796, %v2876
          %v2881 = vadd.f32 %v2797, %v2877
          %v2882 = vadd.f32 %v2798, %v2878
          %v2883 = vadd.f32 %v2799, %v2879
          %2884 = vset.pattern.permute.xlu0 28
          %2885 = vperm.xlu0 %2884, %v520
          %v2886 = vpop.permute.xlu0 %2885
          %2888 = vset.pattern.permute.xlu0 28
          %2889 = vperm.xlu0 %2888, %v521
          %v2890 = vpop.permute.xlu0 %2889
          %2892 = vset.pattern.permute.xlu0 28
          %2893 = vperm.xlu0 %2892, %v522
          %v2894 = vpop.permute.xlu0 %2893
          %2896 = vset.pattern.permute.xlu0 28
          %2897 = vperm.xlu0 %2896, %v523
          %v2898 = vpop.permute.xlu0 %2897
          %v2900 = vmul.f32 %v358, %v2886
          %v2901 = vmul.f32 %v359, %v2890
          %v2902 = vmul.f32 %v360, %v2894
          %v2903 = vmul.f32 %v361, %v2898
          %2904 = vset.pattern.permute.xlu0 28
          %2905 = vperm.xlu0 %2904, %v452
          %v2906 = vpop.permute.xlu0 %2905
          %2908 = vset.pattern.permute.xlu0 28
          %2909 = vperm.xlu0 %2908, %v453
          %v2910 = vpop.permute.xlu0 %2909
          %2912 = vset.pattern.permute.xlu0 28
          %2913 = vperm.xlu0 %2912, %v454
          %v2914 = vpop.permute.xlu0 %2913
          %2916 = vset.pattern.permute.xlu0 28
          %2917 = vperm.xlu0 %2916, %v455
          %v2918 = vpop.permute.xlu0 %2917
          %v2920 = vadd.f32 %v2906, %v2900
          %v2921 = vadd.f32 %v2910, %v2901
          %v2922 = vadd.f32 %v2914, %v2902
          %v2923 = vadd.f32 %v2918, %v2903
          %v2924 = vmax.f32 %v2920, 0.0
          %v2925 = vmax.f32 %v2921, 0.0
          %v2926 = vmax.f32 %v2922, 0.0
          %v2927 = vmax.f32 %v2923, 0.0
          %s2928 = sld [smem:[#allocation2 + $0x1c]]
          %v2929 = vstv %s2928
          %v2930 = vmul.f32 %v2924, %v2929
          %v2931 = vmul.f32 %v2925, %v2929
          %v2932 = vmul.f32 %v2926, %v2929
          %v2933 = vmul.f32 %v2927, %v2929
          %v2934 = vadd.f32 %v2850, %v2930
          %v2935 = vadd.f32 %v2851, %v2931
          %v2936 = vadd.f32 %v2852, %v2932
          %v2937 = vadd.f32 %v2853, %v2933
          %s2938 = sld [smem:[#allocation2 + $0x3c]]
          %v2939 = vstv %s2938
          %v2940 = vmul.f32 %v2924, %v2939
          %v2941 = vmul.f32 %v2925, %v2939
          %v2942 = vmul.f32 %v2926, %v2939
          %v2943 = vmul.f32 %v2927, %v2939
          %v2944 = vadd.f32 %v2860, %v2940
          %v2945 = vadd.f32 %v2861, %v2941
          %v2946 = vadd.f32 %v2862, %v2942
          %v2947 = vadd.f32 %v2863, %v2943
          %s2948 = sld [smem:[#allocation2 + $0x5c]]
          %v2949 = vstv %s2948
          %v2950 = vmul.f32 %v2924, %v2949
          %v2951 = vmul.f32 %v2925, %v2949
          %v2952 = vmul.f32 %v2926, %v2949
          %v2953 = vmul.f32 %v2927, %v2949
          %v2954 = vadd.f32 %v2870, %v2950
          %v2955 = vadd.f32 %v2871, %v2951
          %v2956 = vadd.f32 %v2872, %v2952
          %v2957 = vadd.f32 %v2873, %v2953
          %s2958 = sld [smem:[#allocation2 + $0x7c]]
          %v2959 = vstv %s2958
          %v2960 = vmul.f32 %v2924, %v2959
          %v2961 = vmul.f32 %v2925, %v2959
          %v2962 = vmul.f32 %v2926, %v2959
          %v2963 = vmul.f32 %v2927, %v2959
          %v2964 = vadd.f32 %v2880, %v2960
          %v2965 = vadd.f32 %v2881, %v2961
          %v2966 = vadd.f32 %v2882, %v2962
          %v2967 = vadd.f32 %v2883, %v2963
          %2968 = vset.pattern.permute.xlu0 29
          %2969 = vperm.xlu0 %2968, %v520
          %v2970 = vpop.permute.xlu0 %2969
          %2972 = vset.pattern.permute.xlu0 29
          %2973 = vperm.xlu0 %2972, %v521
          %v2974 = vpop.permute.xlu0 %2973
          %2976 = vset.pattern.permute.xlu0 29
          %2977 = vperm.xlu0 %2976, %v522
          %v2978 = vpop.permute.xlu0 %2977
          %2980 = vset.pattern.permute.xlu0 29
          %2981 = vperm.xlu0 %2980, %v523
          %v2982 = vpop.permute.xlu0 %2981
          %v2984 = vmul.f32 %v358, %v2970
          %v2985 = vmul.f32 %v359, %v2974
          %v2986 = vmul.f32 %v360, %v2978
          %v2987 = vmul.f32 %v361, %v2982
          %2988 = vset.pattern.permute.xlu0 29
          %2989 = vperm.xlu0 %2988, %v452
          %v2990 = vpop.permute.xlu0 %2989
          %2992 = vset.pattern.permute.xlu0 29
          %2993 = vperm.xlu0 %2992, %v453
          %v2994 = vpop.permute.xlu0 %2993
          %2996 = vset.pattern.permute.xlu0 29
          %2997 = vperm.xlu0 %2996, %v454
          %v2998 = vpop.permute.xlu0 %2997
          %3000 = vset.pattern.permute.xlu0 29
          %3001 = vperm.xlu0 %3000, %v455
          %v3002 = vpop.permute.xlu0 %3001
          %v3004 = vadd.f32 %v2990, %v2984
          %v3005 = vadd.f32 %v2994, %v2985
          %v3006 = vadd.f32 %v2998, %v2986
          %v3007 = vadd.f32 %v3002, %v2987
          %v3008 = vmax.f32 %v3004, 0.0
          %v3009 = vmax.f32 %v3005, 0.0
          %v3010 = vmax.f32 %v3006, 0.0
          %v3011 = vmax.f32 %v3007, 0.0
          %s3012 = sld [smem:[#allocation2 + $0x1d]]
          %v3013 = vstv %s3012
          %v3014 = vmul.f32 %v3008, %v3013
          %v3015 = vmul.f32 %v3009, %v3013
          %v3016 = vmul.f32 %v3010, %v3013
          %v3017 = vmul.f32 %v3011, %v3013
          %v3018 = vadd.f32 %v2934, %v3014
          %v3019 = vadd.f32 %v2935, %v3015
          %v3020 = vadd.f32 %v2936, %v3016
          %v3021 = vadd.f32 %v2937, %v3017
          %s3022 = sld [smem:[#allocation2 + $0x3d]]
          %v3023 = vstv %s3022
          %v3024 = vmul.f32 %v3008, %v3023
          %v3025 = vmul.f32 %v3009, %v3023
          %v3026 = vmul.f32 %v3010, %v3023
          %v3027 = vmul.f32 %v3011, %v3023
          %v3028 = vadd.f32 %v2944, %v3024
          %v3029 = vadd.f32 %v2945, %v3025
          %v3030 = vadd.f32 %v2946, %v3026
          %v3031 = vadd.f32 %v2947, %v3027
          %s3032 = sld [smem:[#allocation2 + $0x5d]]
          %v3033 = vstv %s3032
          %v3034 = vmul.f32 %v3008, %v3033
          %v3035 = vmul.f32 %v3009, %v3033
          %v3036 = vmul.f32 %v3010, %v3033
          %v3037 = vmul.f32 %v3011, %v3033
          %v3038 = vadd.f32 %v2954, %v3034
          %v3039 = vadd.f32 %v2955, %v3035
          %v3040 = vadd.f32 %v2956, %v3036
          %v3041 = vadd.f32 %v2957, %v3037
          %s3042 = sld [smem:[#allocation2 + $0x7d]]
          %v3043 = vstv %s3042
          %v3044 = vmul.f32 %v3008, %v3043
          %v3045 = vmul.f32 %v3009, %v3043
          %v3046 = vmul.f32 %v3010, %v3043
          %v3047 = vmul.f32 %v3011, %v3043
          %v3048 = vadd.f32 %v2964, %v3044
          %v3049 = vadd.f32 %v2965, %v3045
          %v3050 = vadd.f32 %v2966, %v3046
          %v3051 = vadd.f32 %v2967, %v3047
          %3052 = vset.pattern.permute.xlu0 30
          %3053 = vperm.xlu0 %3052, %v520
          %v3054 = vpop.permute.xlu0 %3053
          %3056 = vset.pattern.permute.xlu0 30
          %3057 = vperm.xlu0 %3056, %v521
          %v3058 = vpop.permute.xlu0 %3057
          %3060 = vset.pattern.permute.xlu0 30
          %3061 = vperm.xlu0 %3060, %v522
          %v3062 = vpop.permute.xlu0 %3061
          %3064 = vset.pattern.permute.xlu0 30
          %3065 = vperm.xlu0 %3064, %v523
          %v3066 = vpop.permute.xlu0 %3065
          %v3068 = vmul.f32 %v358, %v3054
          %v3069 = vmul.f32 %v359, %v3058
          %v3070 = vmul.f32 %v360, %v3062
          %v3071 = vmul.f32 %v361, %v3066
          %3072 = vset.pattern.permute.xlu0 30
          %3073 = vperm.xlu0 %3072, %v452
          %v3074 = vpop.permute.xlu0 %3073
          %3076 = vset.pattern.permute.xlu0 30
          %3077 = vperm.xlu0 %3076, %v453
          %v3078 = vpop.permute.xlu0 %3077
          %3080 = vset.pattern.permute.xlu0 30
          %3081 = vperm.xlu0 %3080, %v454
          %v3082 = vpop.permute.xlu0 %3081
          %3084 = vset.pattern.permute.xlu0 30
          %3085 = vperm.xlu0 %3084, %v455
          %v3086 = vpop.permute.xlu0 %3085
          %v3088 = vadd.f32 %v3074, %v3068
          %v3089 = vadd.f32 %v3078, %v3069
          %v3090 = vadd.f32 %v3082, %v3070
          %v3091 = vadd.f32 %v3086, %v3071
          %v3092 = vmax.f32 %v3088, 0.0
          %v3093 = vmax.f32 %v3089, 0.0
          %v3094 = vmax.f32 %v3090, 0.0
          %v3095 = vmax.f32 %v3091, 0.0
          %s3096 = sld [smem:[#allocation2 + $0x1e]]
          %v3097 = vstv %s3096
          %v3098 = vmul.f32 %v3092, %v3097
          %v3099 = vmul.f32 %v3093, %v3097
          %v3100 = vmul.f32 %v3094, %v3097
          %v3101 = vmul.f32 %v3095, %v3097
          %v3102 = vadd.f32 %v3018, %v3098
          %v3103 = vadd.f32 %v3019, %v3099
          %v3104 = vadd.f32 %v3020, %v3100
          %v3105 = vadd.f32 %v3021, %v3101
          %s3106 = sld [smem:[#allocation2 + $0x3e]]
          %v3107 = vstv %s3106
          %v3108 = vmul.f32 %v3092, %v3107
          %v3109 = vmul.f32 %v3093, %v3107
          %v3110 = vmul.f32 %v3094, %v3107
          %v3111 = vmul.f32 %v3095, %v3107
          %v3112 = vadd.f32 %v3028, %v3108
          %v3113 = vadd.f32 %v3029, %v3109
          %v3114 = vadd.f32 %v3030, %v3110
          %v3115 = vadd.f32 %v3031, %v3111
          %s3116 = sld [smem:[#allocation2 + $0x5e]]
          %v3117 = vstv %s3116
          %v3118 = vmul.f32 %v3092, %v3117
          %v3119 = vmul.f32 %v3093, %v3117
          %v3120 = vmul.f32 %v3094, %v3117
          %v3121 = vmul.f32 %v3095, %v3117
          %v3122 = vadd.f32 %v3038, %v3118
          %v3123 = vadd.f32 %v3039, %v3119
          %v3124 = vadd.f32 %v3040, %v3120
          %v3125 = vadd.f32 %v3041, %v3121
          %s3126 = sld [smem:[#allocation2 + $0x7e]]
          %v3127 = vstv %s3126
          %v3128 = vmul.f32 %v3092, %v3127
          %v3129 = vmul.f32 %v3093, %v3127
          %v3130 = vmul.f32 %v3094, %v3127
          %v3131 = vmul.f32 %v3095, %v3127
          %v3132 = vadd.f32 %v3048, %v3128
          %v3133 = vadd.f32 %v3049, %v3129
          %v3134 = vadd.f32 %v3050, %v3130
          %v3135 = vadd.f32 %v3051, %v3131
          %3136 = vset.pattern.permute.xlu0 31
          %3137 = vperm.xlu0 %3136, %v520
          %v3138 = vpop.permute.xlu0 %3137
          %3140 = vset.pattern.permute.xlu0 31
          %3141 = vperm.xlu0 %3140, %v521
          %v3142 = vpop.permute.xlu0 %3141
          %3144 = vset.pattern.permute.xlu0 31
          %3145 = vperm.xlu0 %3144, %v522
          %v3146 = vpop.permute.xlu0 %3145
          %3148 = vset.pattern.permute.xlu0 31
          %3149 = vperm.xlu0 %3148, %v523
          %v3150 = vpop.permute.xlu0 %3149
          %v3152 = vmul.f32 %v358, %v3138
          %v3153 = vmul.f32 %v359, %v3142
          %v3154 = vmul.f32 %v360, %v3146
          %v3155 = vmul.f32 %v361, %v3150
          %3156 = vset.pattern.permute.xlu0 31
          %3157 = vperm.xlu0 %3156, %v452
          %v3158 = vpop.permute.xlu0 %3157
          %3160 = vset.pattern.permute.xlu0 31
          %3161 = vperm.xlu0 %3160, %v453
          %v3162 = vpop.permute.xlu0 %3161
          %3164 = vset.pattern.permute.xlu0 31
          %3165 = vperm.xlu0 %3164, %v454
          %v3166 = vpop.permute.xlu0 %3165
          %3168 = vset.pattern.permute.xlu0 31
          %3169 = vperm.xlu0 %3168, %v455
          %v3170 = vpop.permute.xlu0 %3169
          %v3172 = vadd.f32 %v3158, %v3152
          %v3173 = vadd.f32 %v3162, %v3153
          %v3174 = vadd.f32 %v3166, %v3154
          %v3175 = vadd.f32 %v3170, %v3155
          %v3176 = vmax.f32 %v3172, 0.0
          %v3177 = vmax.f32 %v3173, 0.0
          %v3178 = vmax.f32 %v3174, 0.0
          %v3179 = vmax.f32 %v3175, 0.0
          %s3180 = sld [smem:[#allocation2 + $0x1f]]
          %v3181 = vstv %s3180
          %v3182 = vmul.f32 %v3176, %v3181
          %v3183 = vmul.f32 %v3177, %v3181
          %v3184 = vmul.f32 %v3178, %v3181
          %v3185 = vmul.f32 %v3179, %v3181
          %v3186 = vadd.f32 %v3102, %v3182
          %v3187 = vadd.f32 %v3103, %v3183
          %v3188 = vadd.f32 %v3104, %v3184
          %v3189 = vadd.f32 %v3105, %v3185
          %s3190 = sld [smem:[#allocation2 + $0x3f]]
          %v3191 = vstv %s3190
          %v3192 = vmul.f32 %v3176, %v3191
          %v3193 = vmul.f32 %v3177, %v3191
          %v3194 = vmul.f32 %v3178, %v3191
          %v3195 = vmul.f32 %v3179, %v3191
          %v3196 = vadd.f32 %v3112, %v3192
          %v3197 = vadd.f32 %v3113, %v3193
          %v3198 = vadd.f32 %v3114, %v3194
          %v3199 = vadd.f32 %v3115, %v3195
          %s3200 = sld [smem:[#allocation2 + $0x5f]]
          %v3201 = vstv %s3200
          %v3202 = vmul.f32 %v3176, %v3201
          %v3203 = vmul.f32 %v3177, %v3201
          %v3204 = vmul.f32 %v3178, %v3201
          %v3205 = vmul.f32 %v3179, %v3201
          %v3206 = vadd.f32 %v3122, %v3202
          %v3207 = vadd.f32 %v3123, %v3203
          %v3208 = vadd.f32 %v3124, %v3204
          %v3209 = vadd.f32 %v3125, %v3205
          %s3210 = sld [smem:[#allocation2 + $0x7f]]
          %v3211 = vstv %s3210
          %v3212 = vmul.f32 %v3176, %v3211
          %v3213 = vmul.f32 %v3177, %v3211
          %v3214 = vmul.f32 %v3178, %v3211
          %v3215 = vmul.f32 %v3179, %v3211
          %v3216 = vadd.f32 %v3132, %v3212
          %v3217 = vadd.f32 %v3133, %v3213
          %v3218 = vadd.f32 %v3134, %v3214
          %v3219 = vadd.f32 %v3135, %v3215
          %s3220 = sld [smem:[#allocation5 + $0x3]]
          %v3221 = vstv %s3220
          %v3222 = vadd.f32 %v3216, %v3221
          %v3223 = vadd.f32 %v3217, %v3221
          %v3224 = vadd.f32 %v3218, %v3221
          %v3225 = vadd.f32 %v3219, %v3221
          %v3226 = vmax.f32 %v3222, 0.0
          %v3227 = vmax.f32 %v3223, 0.0
          %v3228 = vmax.f32 %v3224, 0.0
          %v3229 = vmax.f32 %v3225, 0.0
          %3234 = vrot.lane.b32.xlu0 %v358, 1
          %v3235 = vpop.permute.xlu0 %3234
          %3236 = vrot.lane.b32.xlu0 %v359, 1
          %v3237 = vpop.permute.xlu0 %3236
          %3238 = vrot.lane.b32.xlu0 %v360, 1
          %v3239 = vpop.permute.xlu0 %3238
          %3240 = vrot.lane.b32.xlu0 %v361, 1
          %v3241 = vpop.permute.xlu0 %3240
          %v3246 = vsub.f32 %v358, %v3235
          %v3247 = vsub.f32 %v359, %v3237
          %v3248 = vsub.f32 %v360, %v3239
          %v3249 = vsub.f32 %v361, %v3241
          %3250 = vrot.lane.b32.xlu0 %v358, 8
          %v3251 = vpop.permute.xlu0 %3250
          %3252 = vrot.lane.b32.xlu0 %v359, 8
          %v3253 = vpop.permute.xlu0 %3252
          %3254 = vrot.lane.b32.xlu0 %v360, 8
          %v3255 = vpop.permute.xlu0 %3254
          %3256 = vrot.lane.b32.xlu0 %v361, 8
          %v3257 = vpop.permute.xlu0 %3256
          %v3262 = vsub.f32 %v353, %v3251
          %v3263 = vsub.f32 %v354, %v3253
          %v3264 = vsub.f32 %v355, %v3255
          %v3265 = vsub.f32 %v356, %v3257
          %3270 = vrot.lane.b32.xlu0 %v3246, 127
          %v3271 = vpop.permute.xlu0 %3270
          %3272 = vrot.lane.b32.xlu0 %v3247, 127
          %v3273 = vpop.permute.xlu0 %3272
          %3274 = vrot.lane.b32.xlu0 %v3248, 127
          %v3275 = vpop.permute.xlu0 %3274
          %3276 = vrot.lane.b32.xlu0 %v3249, 127
          %v3277 = vpop.permute.xlu0 %3276
          %3286 = vrot.lane.b32.xlu0 %v3262, 120
          %v3287 = vpop.permute.xlu0 %3286
          %3288 = vrot.lane.b32.xlu0 %v3263, 120
          %v3289 = vpop.permute.xlu0 %3288
          %3290 = vrot.lane.b32.xlu0 %v3264, 120
          %v3291 = vpop.permute.xlu0 %3290
          %3292 = vrot.lane.b32.xlu0 %v3265, 120
          %v3293 = vpop.permute.xlu0 %3292
          %vm3298 = vcmask 1039360
          %v3299 = vsel %vm3298, %v3271, %v3287
          %v3300 = vsel %vm3298, %v3273, %v3289
          %v3301 = vsel %vm3298, %v3275, %v3291
          %v3302 = vsel %vm3298, %v3277, %v3293
          %v3303 = vsub.f32 0.0, %v3299
          %v3304 = vsub.f32 0.0, %v3300
          %v3305 = vsub.f32 0.0, %v3301
          %v3306 = vsub.f32 0.0, %v3302
          %v3307 = vmul.f32 %v3303, %v3226
          %v3308 = vmul.f32 %v3304, %v3227
          %v3309 = vmul.f32 %v3305, %v3228
          %v3310 = vmul.f32 %v3306, %v3229
          %v3311 = vmul.f32 %v3307, 1.442695
          %v3312 = vpow.pop %v3311
          %v3313 = vmul.f32 %v3308, 1.442695
          %v3314 = vpow.pop %v3313
          %v3315 = vmul.f32 %v3309, 1.442695
          %v3316 = vpow.pop %v3315
          %v3317 = vmul.f32 %v3310, 1.442695
          %v3318 = vpow.pop %v3317
          %v3319 = vsub.f32 1.0, %v3312
          %v3320 = vsub.f32 1.0, %v3314
          %v3321 = vsub.f32 1.0, %v3316
          %v3322 = vsub.f32 1.0, %v3318
          %v3323 = vmax.f32 %v3307, -23.02585
          %v3324 = vmax.f32 %v3308, -23.02585
          %v3325 = vmax.f32 %v3309, -23.02585
          %v3326 = vmax.f32 %v3310, -23.02585
          %3331 = vrot.lane.b32.xlu0 %v3323, 1
          %v3332 = vpop.permute.xlu0 %3331
          %3333 = vrot.lane.b32.xlu0 %v3324, 1
          %v3334 = vpop.permute.xlu0 %3333
          %3335 = vrot.lane.b32.xlu0 %v3325, 1
          %v3336 = vpop.permute.xlu0 %3335
          %3337 = vrot.lane.b32.xlu0 %v3326, 1
          %v3338 = vpop.permute.xlu0 %3337
          %vm3343 = vcmask 7168
          %v3344 = vsel %vm3343, 0.0, %v3332
          %v3345 = vsel %vm3343, 0.0, %v3334
          %v3346 = vsel %vm3343, 0.0, %v3336
          %v3347 = vsel %vm3343, 0.0, %v3338
          %v3348 = vadd.f32 %v3323, %v3344
          %v3349 = vadd.f32 %v3324, %v3345
          %v3350 = vadd.f32 %v3325, %v3346
          %v3351 = vadd.f32 %v3326, %v3347
          %3356 = vrot.lane.b32.xlu0 %v3348, 2
          %v3357 = vpop.permute.xlu0 %3356
          %3358 = vrot.lane.b32.xlu0 %v3349, 2
          %v3359 = vpop.permute.xlu0 %3358
          %3360 = vrot.lane.b32.xlu0 %v3350, 2
          %v3361 = vpop.permute.xlu0 %3360
          %3362 = vrot.lane.b32.xlu0 %v3351, 2
          %v3363 = vpop.permute.xlu0 %3362
          %vm3368 = vcmask 15360
          %v3369 = vsel %vm3368, 0.0, %v3357
          %v3370 = vsel %vm3368, 0.0, %v3359
          %v3371 = vsel %vm3368, 0.0, %v3361
          %v3372 = vsel %vm3368, 0.0, %v3363
          %v3373 = vadd.f32 %v3348, %v3369
          %v3374 = vadd.f32 %v3349, %v3370
          %v3375 = vadd.f32 %v3350, %v3371
          %v3376 = vadd.f32 %v3351, %v3372
          %3381 = vrot.lane.b32.xlu0 %v3373, 4
          %v3382 = vpop.permute.xlu0 %3381
          %3383 = vrot.lane.b32.xlu0 %v3374, 4
          %v3384 = vpop.permute.xlu0 %3383
          %3385 = vrot.lane.b32.xlu0 %v3375, 4
          %v3386 = vpop.permute.xlu0 %3385
          %3387 = vrot.lane.b32.xlu0 %v3376, 4
          %v3388 = vpop.permute.xlu0 %3387
          %vm3393 = vcmask 31744
          %v3394 = vsel %vm3393, 0.0, %v3382
          %v3395 = vsel %vm3393, 0.0, %v3384
          %v3396 = vsel %vm3393, 0.0, %v3386
          %v3397 = vsel %vm3393, 0.0, %v3388
          %v3398 = vadd.f32 %v3373, %v3394
          %v3399 = vadd.f32 %v3374, %v3395
          %v3400 = vadd.f32 %v3375, %v3396
          %v3401 = vadd.f32 %v3376, %v3397
          %3406 = vrot.lane.b32.xlu0 %v3398, 8
          %v3407 = vpop.permute.xlu0 %3406
          %3408 = vrot.lane.b32.xlu0 %v3399, 8
          %v3409 = vpop.permute.xlu0 %3408
          %3410 = vrot.lane.b32.xlu0 %v3400, 8
          %v3411 = vpop.permute.xlu0 %3410
          %3412 = vrot.lane.b32.xlu0 %v3401, 8
          %v3413 = vpop.permute.xlu0 %3412
          %vm3418 = vcmask 64512
          %v3419 = vsel %vm3418, 0.0, %v3407
          %v3420 = vsel %vm3418, 0.0, %v3409
          %v3421 = vsel %vm3418, 0.0, %v3411
          %v3422 = vsel %vm3418, 0.0, %v3413
          %v3423 = vadd.f32 %v3398, %v3419
          %v3424 = vadd.f32 %v3399, %v3420
          %v3425 = vadd.f32 %v3400, %v3421
          %v3426 = vadd.f32 %v3401, %v3422
          %3431 = vrot.lane.b32.xlu0 %v3423, 16
          %v3432 = vpop.permute.xlu0 %3431
          %3433 = vrot.lane.b32.xlu0 %v3424, 16
          %v3434 = vpop.permute.xlu0 %3433
          %3435 = vrot.lane.b32.xlu0 %v3425, 16
          %v3436 = vpop.permute.xlu0 %3435
          %3437 = vrot.lane.b32.xlu0 %v3426, 16
          %v3438 = vpop.permute.xlu0 %3437
          %vm3443 = vcmask 130048
          %v3444 = vsel %vm3443, 0.0, %v3432
          %v3445 = vsel %vm3443, 0.0, %v3434
          %v3446 = vsel %vm3443, 0.0, %v3436
          %v3447 = vsel %vm3443, 0.0, %v3438
          %v3448 = vadd.f32 %v3423, %v3444
          %v3449 = vadd.f32 %v3424, %v3445
          %v3450 = vadd.f32 %v3425, %v3446
          %v3451 = vadd.f32 %v3426, %v3447
          %3456 = vrot.lane.b32.xlu0 %v3448, 32
          %v3457 = vpop.permute.xlu0 %3456
          %3458 = vrot.lane.b32.xlu0 %v3449, 32
          %v3459 = vpop.permute.xlu0 %3458
          %3460 = vrot.lane.b32.xlu0 %v3450, 32
          %v3461 = vpop.permute.xlu0 %3460
          %3462 = vrot.lane.b32.xlu0 %v3451, 32
          %v3463 = vpop.permute.xlu0 %3462
          %vm3468 = vcmask 261120
          %v3469 = vsel %vm3468, 0.0, %v3457
          %v3470 = vsel %vm3468, 0.0, %v3459
          %v3471 = vsel %vm3468, 0.0, %v3461
          %v3472 = vsel %vm3468, 0.0, %v3463
          %v3473 = vadd.f32 %v3448, %v3469
          %v3474 = vadd.f32 %v3449, %v3470
          %v3475 = vadd.f32 %v3450, %v3471
          %v3476 = vadd.f32 %v3451, %v3472
          %3481 = vrot.lane.b32.xlu0 %v3473, 64
          %v3482 = vpop.permute.xlu0 %3481
          %3483 = vrot.lane.b32.xlu0 %v3474, 64
          %v3484 = vpop.permute.xlu0 %3483
          %3485 = vrot.lane.b32.xlu0 %v3475, 64
          %v3486 = vpop.permute.xlu0 %3485
          %3487 = vrot.lane.b32.xlu0 %v3476, 64
          %v3488 = vpop.permute.xlu0 %3487
          %vm3493 = vcmask 523264
          %v3494 = vsel %vm3493, 0.0, %v3482
          %v3495 = vsel %vm3493, 0.0, %v3484
          %v3496 = vsel %vm3493, 0.0, %v3486
          %v3497 = vsel %vm3493, 0.0, %v3488
          %v3498 = vadd.f32 %v3473, %v3494
          %v3499 = vadd.f32 %v3474, %v3495
          %v3500 = vadd.f32 %v3475, %v3496
          %v3501 = vadd.f32 %v3476, %v3497
          %v3502 = vsub.f32 %v3498, %v3323
          %v3503 = vsub.f32 %v3499, %v3324
          %v3504 = vsub.f32 %v3500, %v3325
          %v3505 = vsub.f32 %v3501, %v3326
          %v3506 = vmul.f32 %v3502, 1.442695
          %v3507 = vpow.pop %v3506
          %v3508 = vmul.f32 %v3503, 1.442695
          %v3509 = vpow.pop %v3508
          %v3510 = vmul.f32 %v3504, 1.442695
          %v3511 = vpow.pop %v3510
          %v3512 = vmul.f32 %v3505, 1.442695
          %v3513 = vpow.pop %v3512
          %v3514 = vmul.f32 %v3319, %v3507
          %v3515 = vmul.f32 %v3320, %v3509
          %v3516 = vmul.f32 %v3321, %v3511
          %v3517 = vmul.f32 %v3322, %v3513
          %s3518 = scalar_lea.vmem %s316, %s351 [#allocation7]
          %3519 = vst [vmem:[%s3518] sm:$0xff] %v3514
          %3520 = vst [vmem:[%s3518 + $0x8] sm:$0xff] %v3515
          %3521 = vst [vmem:[%s3518 + $0x10] sm:$0xff] %v3516
          %3522 = vst [vmem:[%s3518 + $0x18] sm:$0xff] %v3517
          %3523 = vadd.xlane.f32.xlu0 %v3514
          %v3524 = vpop.xlane.xlu0 %3523
          %3525 = vadd.xlane.f32.xlu0 %v3515
          %v3526 = vpop.xlane.xlu0 %3525
          %3527 = vadd.xlane.f32.xlu0 %v3516
          %v3528 = vpop.xlane.xlu0 %3527
          %3529 = vadd.xlane.f32.xlu0 %v3517
          %v3530 = vpop.xlane.xlu0 %3529
          %v3531 = vmul.f32 %v3514, %v3186
          %v3532 = vmul.f32 %v3515, %v3187
          %v3533 = vmul.f32 %v3516, %v3188
          %v3534 = vmul.f32 %v3517, %v3189
          %3535 = vadd.xlane.f32.xlu0 %v3531
          %v3536 = vpop.xlane.xlu0 %3535
          %3537 = vadd.xlane.f32.xlu0 %v3532
          %v3538 = vpop.xlane.xlu0 %3537
          %3539 = vadd.xlane.f32.xlu0 %v3533
          %v3540 = vpop.xlane.xlu0 %3539
          %3541 = vadd.xlane.f32.xlu0 %v3534
          %v3542 = vpop.xlane.xlu0 %3541
          %s3543 = sld [smem:[#allocation5]]
          %v3544 = vstv %s3543
          %v3545 = vmul.f32 %v3544, %v3524
          %v3546 = vmul.f32 %v3544, %v3526
          %v3547 = vmul.f32 %v3544, %v3528
          %v3548 = vmul.f32 %v3544, %v3530
          %v3549 = vadd.f32 %v3536, %v3545
          %v3550 = vadd.f32 %v3538, %v3546
          %v3551 = vadd.f32 %v3540, %v3547
          %v3552 = vadd.f32 %v3542, %v3548
          %v3553 = vmul.f32 %v3514, %v3196
          %v3554 = vmul.f32 %v3515, %v3197
          %v3555 = vmul.f32 %v3516, %v3198
          %v3556 = vmul.f32 %v3517, %v3199
          %3557 = vadd.xlane.f32.xlu0 %v3553
          %v3558 = vpop.xlane.xlu0 %3557
          %3559 = vadd.xlane.f32.xlu0 %v3554
          %v3560 = vpop.xlane.xlu0 %3559
          %3561 = vadd.xlane.f32.xlu0 %v3555
          %v3562 = vpop.xlane.xlu0 %3561
          %3563 = vadd.xlane.f32.xlu0 %v3556
          %v3564 = vpop.xlane.xlu0 %3563
          %s3565 = sld [smem:[#allocation5 + $0x1]]
          %v3566 = vstv %s3565
          %v3567 = vmul.f32 %v3566, %v3524
          %v3568 = vmul.f32 %v3566, %v3526
          %v3569 = vmul.f32 %v3566, %v3528
          %v3570 = vmul.f32 %v3566, %v3530
          %v3571 = vadd.f32 %v3558, %v3567
          %v3572 = vadd.f32 %v3560, %v3568
          %v3573 = vadd.f32 %v3562, %v3569
          %v3574 = vadd.f32 %v3564, %v3570
          %v3575 = vmul.f32 %v3514, %v3206
          %v3576 = vmul.f32 %v3515, %v3207
          %v3577 = vmul.f32 %v3516, %v3208
          %v3578 = vmul.f32 %v3517, %v3209
          %3579 = vadd.xlane.f32.xlu0 %v3575
          %v3580 = vpop.xlane.xlu0 %3579
          %3581 = vadd.xlane.f32.xlu0 %v3576
          %v3582 = vpop.xlane.xlu0 %3581
          %3583 = vadd.xlane.f32.xlu0 %v3577
          %v3584 = vpop.xlane.xlu0 %3583
          %3585 = vadd.xlane.f32.xlu0 %v3578
          %v3586 = vpop.xlane.xlu0 %3585
          %s3587 = sld [smem:[#allocation5 + $0x2]]
          %v3588 = vstv %s3587
          %v3589 = vmul.f32 %v3588, %v3524
          %v3590 = vmul.f32 %v3588, %v3526
          %v3591 = vmul.f32 %v3588, %v3528
          %v3592 = vmul.f32 %v3588, %v3530
          %v3593 = vadd.f32 %v3580, %v3589
          %v3594 = vadd.f32 %v3582, %v3590
          %v3595 = vadd.f32 %v3584, %v3591
          %v3596 = vadd.f32 %v3586, %v3592
          %v3597 = vmul.f32 %v3514, %v358
          %v3598 = vmul.f32 %v3515, %v359
          %v3599 = vmul.f32 %v3516, %v360
          %v3600 = vmul.f32 %v3517, %v361
          %3601 = vadd.xlane.f32.xlu0 %v3597
          %v3602 = vpop.xlane.xlu0 %3601
          %3603 = vadd.xlane.f32.xlu0 %v3598
          %v3604 = vpop.xlane.xlu0 %3603
          %3605 = vadd.xlane.f32.xlu0 %v3599
          %v3606 = vpop.xlane.xlu0 %3605
          %3607 = vadd.xlane.f32.xlu0 %v3600
          %v3608 = vpop.xlane.xlu0 %3607
          %v3609 = vsel %vm3343, %v3549, %v3571
          %v3610 = vsel %vm3343, %v3550, %v3572
          %v3611 = vsel %vm3343, %v3551, %v3573
          %v3612 = vsel %vm3343, %v3552, %v3574
          %v3613 = vsel %vm3368, %v3609, %v3593
          %v3614 = vsel %vm3368, %v3610, %v3594
          %v3615 = vsel %vm3368, %v3611, %v3595
          %v3616 = vsel %vm3368, %v3612, %v3596
          %vm3617 = vcmask 23552
          %v3618 = vsel %vm3617, %v3613, %v3602
          %v3619 = vsel %vm3617, %v3614, %v3604
          %v3620 = vsel %vm3617, %v3615, %v3606
          %v3621 = vsel %vm3617, %v3616, %v3608
          %s3622 = scalar_lea.vmem %s341, %s351
          %3623 = vst.msk [vmem:[%s3622] sm:$0xff] %vm3393, %v3618
          %3624 = vst.msk [vmem:[%s3622 + $0x8] sm:$0xff] %vm3393, %v3619
          %3625 = vst.msk [vmem:[%s3622 + $0x10] sm:$0xff] %vm3393, %v3620
          %3626 = vst.msk [vmem:[%s3622 + $0x18] sm:$0xff] %vm3393, %v3621
        $region57: #{_lambda_.1} parent=43 // loop_footer
          %s350 = sadd.s32 1, %s346
        $region58: #{_lambda_.1} parent=43 // loop_footer_branch
          %345 = sbr.rel target = $region54
        $region59: #{_lambda_.1} parent=43 // loop_exit
          _
        %s3627 = sand.u32 %s168, 1
        %s3628 = scalar_lea.sflag [#allocation3], %s3627
        %s3629 = sand.u32 %s168, 1
        %s3630 = smul.addr %s3629, 512
        %s3631 = scalar_lea.vmem [#allocation7], %s3630
        %s3632 = smul.u32 64, %s24
        %p3633 = scmp.lt.s32.totalorder %s3632, 127
        %s3634 = scalar_select %p3633, %s3632, 127
        %s3635 = smul.addr %s3634, 8
        %s3636 = scalar_lea.vmem %s7, %s3635
        // Predicated region
        $region60: #{_lambda_.1} parent=43 // pred_check
          %p3637 = pneg %p178
        $region61: #{_lambda_.1} parent=43 // pred_check_branch
          %3639 = sbr.rel (%p3637) target = $region63
        $region62: #{_lambda_.1} parent=43 // pred_region
          %s3640 = smul.u32 64, %s24
          %s3642 = ssub.s32 8192, 8192
          %3643 = vsyncadd %s3628, %s3642
          %s3644 = smul.addr %s3640, 128
          %s3645 = scalar_lea.hbm %s6, %s3644
          %s3646 = sshll.u32 %s3631, 4
          %s3647 = int_to_ptr.vmem [resolvable:$true] %s3646
          %3652 = dma.vmem_to_hbm [thread:$0]  %s3647, 8192, %s3645, %s3628, 128, 128, 8
        $region63: #{_lambda_.1} parent=43 // pred_fallthru
          _
        // Predicated region
        $region64: #{_lambda_.1} parent=43 // pred_check
          %p3653 = pneg %p204
        $region65: #{_lambda_.1} parent=43 // pred_check_branch
          %3655 = sbr.rel (%p3653) target = $region67
        $region66: #{_lambda_.1} parent=43 // pred_region
          %s3656 = smul.u32 64, %s24
        $region67: #{_lambda_.1} parent=43 // pred_fallthru
          _
      $region44: #{_lambda_.1} parent=5 // pred_fallthru
        _
      %p3657 = scmp.le.s32.totalorder 2, %s19
      // Predicated region
      $region68: #{_lambda_.1} parent=5 // pred_check
        %p3658 = pneg %p3657
      $region69: #{_lambda_.1} parent=5 // pred_check_branch
        %3660 = sbr.rel (%p3658) target = $region71
      $region70: #{_lambda_.1} parent=5 // pred_region
        %s3661 = ssub.s32 %s19, 2
        // Predicated region
        $region72: #{_lambda_.1} parent=70 // pred_check
          %p3662 = pneg %p184
        $region73: #{_lambda_.1} parent=70 // pred_check_branch
          %3664 = sbr.rel (%p3662) target = $region75
        $region74: #{_lambda_.1} parent=70 // pred_region
          %s3665 = sand.u32 %s169, 1
          %s3666 = scalar_lea.sflag [#allocation3], %s3665
          %s3667 = sand.u32 %s169, 1
          %s3668 = smul.addr %s3667, 512
          %s3669 = scalar_lea.vmem [#allocation7], %s3668
          %3670 = dma.done %s3666, 8192
        $region75: #{_lambda_.1} parent=70 // pred_fallthru
          _
        // Predicated region
        $region76: #{_lambda_.1} parent=70 // pred_check
          %p3671 = pneg %p210
        $region77: #{_lambda_.1} parent=70 // pred_check_branch
          %3673 = sbr.rel (%p3671) target = $region79
        $region78: #{_lambda_.1} parent=70 // pred_region
          %s3674 = smul.u32 64, %s25
          %p3675 = scmp.lt.s32.totalorder %s3674, 127
          %s3676 = scalar_select %p3675, %s3674, 127
          %s3677 = smul.addr %s3676, 8
          %s3678 = scalar_lea.vmem %s7, %s3677
        $region79: #{_lambda_.1} parent=70 // pred_fallthru
          _
      $region71: #{_lambda_.1} parent=5 // pred_fallthru
        _
    $region6: #{_lambda_.1} parent=1 // loop_footer
      %s23 = sadd.s32 1, %s19
    $region7: #{_lambda_.1} parent=1 // loop_footer_branch
      %18 = sbr.rel target = $region3
    $region8: #{_lambda_.1} parent=1 // loop_exit
      _
    %3679 = vsyncpa [#allocation3], 1
    %s3680 = scalar_lea.sflag [#allocation3], 1
    %3681 = vsyncpa %s3680, 1
    %3682 = vsyncpa [#allocation4], 1
    %s3683 = scalar_lea.sflag [#allocation4], 1
    %3684 = vsyncpa %s3683, 1
    %3685 = vsyncpa [#allocation6], 1

</llo_original>
